<compile_context>
chip_gen: v5e
topology: v5e:2x2
jax: 0.10.0
libtpu: 0.0.40
codegen_flags: <defaults>
</compile_context>

<pallas_src>
import functools
import math

import jax
import jax.numpy as jnp
from jax.experimental import pallas as pl
from jax.experimental.pallas import tpu as pltpu


def _round_up(x, m):
    return (x + m - 1) // m * m


# ---------------------------------------------------------------------------
# conv1: (KW*Cout) x (Cin*KH) x N GEMM + in-kernel shifted-sum + bias + tanh
# ---------------------------------------------------------------------------
def _conv1_kernel(w_ref, xh_ref, b_ref, o_ref, *, kw, cout, n_out):
    # w_ref : (KW*Cout, Cin*KH) bf16, rows ordered (kj, co)
    # xh_ref: (Cin*KH, n_in)    bf16, lanes = (oi, w) for one batch, n_in >= n_out + kw - 1
    # b_ref : (Cout, 1)         f32
    # o_ref : (Cout, n_out)     bf16
    full = jnp.dot(w_ref[...], xh_ref[...], preferred_element_type=jnp.float32)
    acc = jnp.zeros((cout, n_out), jnp.float32)
    for kj in range(kw):  # 16-term shifted-slice reduction over the kernel width
        acc = acc + full[kj * cout:(kj + 1) * cout, kj:kj + n_out]
    o_ref[...] = jnp.tanh(acc + b_ref[...]).astype(o_ref.dtype)


def _conv1_tanh_bf16(x, w, b):
    """tanh(Conv2d(x, w, b)), stride 1, VALID.  x: (B, Cin, H, W) f32.
    Returns (Cout, B, oh, ow) bf16 in (C, B, H, W) layout (feeds conv2)."""
    B, Cin, H, W = x.shape
    Cout, Cin2, KH, KW = w.shape
    assert Cin == Cin2, (Cin, Cin2)
    oh, ow = H - KH + 1, W - KW + 1

    # Per-batch lane blocks: output block must be a multiple of 128; the input
    # block gets one extra 128-lane group so the per-kj shifted slice stays
    # in bounds (needs KW-1 <= 128 spare lanes).
    step = 128 // math.gcd(W, 128)          # smallest oi count giving 128-aligned lanes
    oh_out = _round_up(oh, step)            # 17 -> 20  (640 lanes)
    oh_in = oh_out + step                   # 24        (768 lanes)
    n_out, n_in = oh_out * W, oh_in * W
    assert step * W >= KW - 1

    # H-only unfold: XH[ci*KH+ki, b*n_in + oi*W + w] = x[ci, b, oi+ki, w]
    # (one pad + one stack -> a single ~0.8 MiB bf16 materialization; the
    #  trailing reshape is layout-free).
    x_c = jnp.transpose(x, (1, 0, 2, 3)).astype(jnp.bfloat16)            # (Cin,B,H,W)
    x_p = jnp.pad(x_c, ((0, 0), (0, 0), (0, oh_in + KH - 1 - H), (0, 0)))
    xh = jnp.stack([x_p[:, :, ki:ki + oh_in, :] for ki in range(KH)], axis=1)
    xh = xh.reshape(Cin * KH, B * n_in)                                   # (256, B*768)

    # Weights: rows (kj, co), cols (ci, ki) -> matches XH row order.
    w_all = jnp.transpose(w, (3, 0, 1, 2)).reshape(KW * Cout, Cin * KH).astype(jnp.bfloat16)
    b_col = b.reshape(Cout, 1).astype(jnp.float32)

    kernel = functools.partial(_conv1_kernel, kw=KW, cout=Cout, n_out=n_out)
    out = pl.pallas_call(
        kernel,
        out_shape=jax.ShapeDtypeStruct((Cout, B * n_out), jnp.bfloat16),
        grid=(B,),
        in_specs=[
            pl.BlockSpec((KW * Cout, Cin * KH), lambda i: (0, 0)),  # weights, resident
            pl.BlockSpec((Cin * KH, n_in), lambda i: (0, i)),       # per-batch lane tile
            pl.BlockSpec((Cout, 1), lambda i: (0, 0)),              # bias
        ],
        out_specs=pl.BlockSpec((Cout, n_out), lambda i: (0, i)),
        compiler_params=pltpu.CompilerParams(
            dimension_semantics=("parallel",),
        ),
    )(w_all, xh, b_col)

    # Keep the valid output window; pad lanes (oi>=17 or oj>=17) are discarded.
    return out.reshape(Cout, B, oh_out, W)[:, :, :oh, :ow]               # (Cout,B,17,17) bf16


# ---------------------------------------------------------------------------
# conv2: tiny (Cout x 4096) @ (4096 x B*4) GEMM, full-array blocks, no padding
# ---------------------------------------------------------------------------
def _matmul_bias_tanh_kernel(w_ref, p_ref, b_ref, o_ref):
    acc = jnp.dot(w_ref[...], p_ref[...], preferred_element_type=jnp.float32)
    o_ref[...] = jnp.tanh(acc + b_ref[...]).astype(o_ref.dtype)


def _conv2_tanh(v_cbhw, w, b):
    """tanh(Conv2d(v, w, b)); v: (Cin, B, H, W) bf16.  Returns (Cout, B, oh, ow) f32."""
    Cin, B, H, W = v_cbhw.shape
    Cout, Cin2, KH, KW = w.shape
    assert Cin == Cin2, (Cin, Cin2)
    oh, ow = H - KH + 1, W - KW + 1

    # Tiny im2col (~64 KiB) stays in XLA; row order (c,ki,kj), col order (b,oi,oj).
    xh = jnp.stack([v_cbhw[:, :, i:i + oh, :] for i in range(KH)], axis=1)   # (C,KH,B,oh,W)
    xw = jnp.stack([xh[..., j:j + ow] for j in range(KW)], axis=2)           # (C,KH,KW,B,oh,ow)
    pT = xw.reshape(Cin * KH * KW, B * oh * ow).astype(jnp.bfloat16)         # (4096, 8)
    wf = w.reshape(Cout, Cin * KH * KW).astype(jnp.bfloat16)
    bf = b.reshape(Cout, 1).astype(jnp.float32)

    # Full-array blocks (legal: block shape == array shape) -> no 128-lane padding.
    out = pl.pallas_call(
        _matmul_bias_tanh_kernel,
        out_shape=jax.ShapeDtypeStruct((Cout, B * oh * ow), jnp.float32),
    )(wf, pT, bf)
    return out.reshape(Cout, B, oh, ow)


# ---------------------------------------------------------------------------
# Full model
# ---------------------------------------------------------------------------
def model_tanh_forward(x, params):
    """x: (B, 16, H, W) f32 NCHW -> (B, 16, H-30, W-30) f32 NCHW."""
    w1, b1, w2, b2 = params
    v1 = _conv1_tanh_bf16(x, w1, b1)          # (16, B, 17, 17) bf16
    v2 = _conv2_tanh(v1, w2, b2)              # (16, B, 2, 2)  f32
    return jnp.transpose(v2, (1, 0, 2, 3))    # (B, 16, 2, 2)


def _reference_forward(x, params):
    w1, b1, w2, b2 = params

    def conv(x, w, b):
        y = jax.lax.conv_general_dilated(
            x, w, window_strides=(1, 1), padding="VALID",
            dimension_numbers=("NCHW", "OIHW", "NCHW"),
            precision=jax.lax.Precision.HIGHEST)
        return jnp.tanh(y + b[None, :, None, None])

    return conv(conv(x, w1, b1), w2, b2)


if __name__ == "__main__":
    key = jax.random.PRNGKey(0)
    kx, kw1, kb1, kw2, kb2 = jax.random.split(key, 5)

    B, Cin, H, W = 2, 16, 32, 32          # conv1 -> 17x17, conv2 -> 2x2
    Cout, KH, KW = 16, 16, 16
    fan_in = Cin * KH * KW
    bound = 1.0 / jnp.sqrt(jnp.float32(fan_in))

    x = jax.random.normal(kx, (B, Cin, H, W), dtype=jnp.float32)
    w1 = jax.random.uniform(kw1, (Cout, Cin, KH, KW), jnp.float32, -bound, bound)
    b1 = jax.random.uniform(kb1, (Cout,), jnp.float32, -bound, bound)
    w2 = jax.random.uniform(kw2, (Cout, Cout, KH, KW), jnp.float32, -bound, bound)
    b2 = jax.random.uniform(kb2, (Cout,), jnp.float32, -bound, bound)
    params = (w1, b1, w2, b2)

    fwd = jax.jit(model_tanh_forward)
    ref_fwd = jax.jit(_reference_forward)

    out = jax.block_until_ready(fwd(x, params))
    ref = jax.block_until_ready(ref_fwd(x, params))

    assert out.shape == (B, Cout, 2, 2), out.shape
    # bf16 operands over a K=4096 reduction (f32 accumulation) vs an f32 HIGHEST
    # reference; tanh saturation keeps the deviation ~1e-3.
    max_err = float(jnp.max(jnp.abs(out - ref)))
    assert jnp.allclose(out, ref, atol=1e-2, rtol=1e-2), max_err
    print("KERNEL_OK")
</pallas_src>

<mosaic_0001>
module attributes {stable_mosaic.version = 11 : i64} {
  func.func @_conv1_kernel(%arg0: i32, %arg1: memref<256x256xbf16, #tpu.memory_space<vmem>>, %arg2: memref<256x768xbf16, #tpu.memory_space<vmem>>, %arg3: memref<16x1xf32, #tpu.memory_space<vmem>>, %arg4: memref<16x640xbf16, #tpu.memory_space<vmem>>) attributes {dimension_semantics = [#tpu.dimension_semantics<parallel>], iteration_bounds = array<i64: 2>, scalar_prefetch = 0 : i64, scratch_operands = 0 : i64, tpu.core_type = #tpu.core_type<tc>, window_params = [{pipeline_mode = #tpu.pipeline_mode<synchronous>, transform_indices = @transform_0, window_bounds = array<i64: 256, 256>}, {transform_indices = @transform_1, window_bounds = array<i64: 256, 768>}, {pipeline_mode = #tpu.pipeline_mode<synchronous>, transform_indices = @transform_2, window_bounds = array<i64: 16, 1>}, {transform_indices = @transform_3, window_bounds = array<i64: 16, 640>}]} {
    %c0 = arith.constant 0 : index
    %c0_0 = arith.constant 0 : index
    %0 = vector.load %arg1[%c0, %c0_0] : memref<256x256xbf16, #tpu.memory_space<vmem>>, vector<256x256xbf16>
    %c0_1 = arith.constant 0 : index
    %c0_2 = arith.constant 0 : index
    %1 = vector.load %arg2[%c0_1, %c0_2] : memref<256x768xbf16, #tpu.memory_space<vmem>>, vector<256x768xbf16>
    %cst = arith.constant dense<0.000000e+00> : vector<256x768xf32>
    %2 = tpu.matmul %0, %1, %cst {dimension_numbers = #tpu.dot_dimension_numbers<[1], [0], [0], [1], [0, 0, 1, 1], [], []>} : vector<256x256xbf16>, vector<256x768xbf16>, vector<256x768xf32> -> vector<256x768xf32>
    %cst_3 = arith.constant 0.000000e+00 : f32
    %3 = vector.broadcast %cst_3 : f32 to vector<16x640xf32>
    %4 = vector.extract_strided_slice %2 {offsets = [0, 0], sizes = [16, 640], strides = [1, 1]} : vector<256x768xf32> to vector<16x640xf32>
    %5 = arith.addf %3, %4 : vector<16x640xf32>
    %6 = vector.extract_strided_slice %2 {offsets = [16, 1], sizes = [16, 640], strides = [1, 1]} : vector<256x768xf32> to vector<16x640xf32>
    %7 = arith.addf %5, %6 : vector<16x640xf32>
    %8 = vector.extract_strided_slice %2 {offsets = [32, 2], sizes = [16, 640], strides = [1, 1]} : vector<256x768xf32> to vector<16x640xf32>
    %9 = arith.addf %7, %8 : vector<16x640xf32>
    %10 = vector.extract_strided_slice %2 {offsets = [48, 3], sizes = [16, 640], strides = [1, 1]} : vector<256x768xf32> to vector<16x640xf32>
    %11 = arith.addf %9, %10 : vector<16x640xf32>
    %12 = vector.extract_strided_slice %2 {offsets = [64, 4], sizes = [16, 640], strides = [1, 1]} : vector<256x768xf32> to vector<16x640xf32>
    %13 = arith.addf %11, %12 : vector<16x640xf32>
    %14 = vector.extract_strided_slice %2 {offsets = [80, 5], sizes = [16, 640], strides = [1, 1]} : vector<256x768xf32> to vector<16x640xf32>
    %15 = arith.addf %13, %14 : vector<16x640xf32>
    %16 = vector.extract_strided_slice %2 {offsets = [96, 6], sizes = [16, 640], strides = [1, 1]} : vector<256x768xf32> to vector<16x640xf32>
    %17 = arith.addf %15, %16 : vector<16x640xf32>
    %18 = vector.extract_strided_slice %2 {offsets = [112, 7], sizes = [16, 640], strides = [1, 1]} : vector<256x768xf32> to vector<16x640xf32>
    %19 = arith.addf %17, %18 : vector<16x640xf32>
    %20 = vector.extract_strided_slice %2 {offsets = [128, 8], sizes = [16, 640], strides = [1, 1]} : vector<256x768xf32> to vector<16x640xf32>
    %21 = arith.addf %19, %20 : vector<16x640xf32>
    %22 = vector.extract_strided_slice %2 {offsets = [144, 9], sizes = [16, 640], strides = [1, 1]} : vector<256x768xf32> to vector<16x640xf32>
    %23 = arith.addf %21, %22 : vector<16x640xf32>
    %24 = vector.extract_strided_slice %2 {offsets = [160, 10], sizes = [16, 640], strides = [1, 1]} : vector<256x768xf32> to vector<16x640xf32>
    %25 = arith.addf %23, %24 : vector<16x640xf32>
    %26 = vector.extract_strided_slice %2 {offsets = [176, 11], sizes = [16, 640], strides = [1, 1]} : vector<256x768xf32> to vector<16x640xf32>
    %27 = arith.addf %25, %26 : vector<16x640xf32>
    %28 = vector.extract_strided_slice %2 {offsets = [192, 12], sizes = [16, 640], strides = [1, 1]} : vector<256x768xf32> to vector<16x640xf32>
    %29 = arith.addf %27, %28 : vector<16x640xf32>
    %30 = vector.extract_strided_slice %2 {offsets = [208, 13], sizes = [16, 640], strides = [1, 1]} : vector<256x768xf32> to vector<16x640xf32>
    %31 = arith.addf %29, %30 : vector<16x640xf32>
    %32 = vector.extract_strided_slice %2 {offsets = [224, 14], sizes = [16, 640], strides = [1, 1]} : vector<256x768xf32> to vector<16x640xf32>
    %33 = arith.addf %31, %32 : vector<16x640xf32>
    %34 = vector.extract_strided_slice %2 {offsets = [240, 15], sizes = [16, 640], strides = [1, 1]} : vector<256x768xf32> to vector<16x640xf32>
    %35 = arith.addf %33, %34 : vector<16x640xf32>
    %c0_4 = arith.constant 0 : index
    %c0_5 = arith.constant 0 : index
    %36 = vector.load %arg3[%c0_4, %c0_5] : memref<16x1xf32, #tpu.memory_space<vmem>>, vector<16x1xf32>
    %37 = vector.broadcast %36 : vector<16x1xf32> to vector<16x640xf32>
    %38 = arith.addf %35, %37 : vector<16x640xf32>
    %39 = math.tanh %38 : vector<16x640xf32>
    %40 = arith.truncf %39 : vector<16x640xf32> to vector<16x640xbf16>
    %c0_6 = arith.constant 0 : index
    %c0_7 = arith.constant 0 : index
    %41 = vector.load %arg4[%c0_6, %c0_7] : memref<16x640xbf16, #tpu.memory_space<vmem>>, vector<16x640xbf16>
    tpu.vector_store %arg4[%c0_6, %c0_7], %40 {strides = array<i32>} : memref<16x640xbf16, #tpu.memory_space<vmem>>, vector<16x640xbf16>,
    return
  }
  func.func @transform_0(%arg0: i32) -> (i32, i32) {
    %c0_i32 = arith.constant 0 : i32
    %c0_i32_0 = arith.constant 0 : i32
    %c0_i32_1 = arith.constant 0 : i32
    return %c0_i32, %c0_i32_0 : i32, i32
  }
  func.func @transform_1(%arg0: i32) -> (i32, i32) {
    %c0_i32 = arith.constant 0 : i32
    %c0_i32_0 = arith.constant 0 : i32
    return %c0_i32, %arg0 : i32, i32
  }
  func.func @transform_2(%arg0: i32) -> (i32, i32) {
    %c0_i32 = arith.constant 0 : i32
    %c0_i32_0 = arith.constant 0 : i32
    %c0_i32_1 = arith.constant 0 : i32
    return %c0_i32, %c0_i32_0 : i32, i32
  }
  func.func @transform_3(%arg0: i32) -> (i32, i32) {
    %c0_i32 = arith.constant 0 : i32
    %c0_i32_0 = arith.constant 0 : i32
    return %c0_i32, %arg0 : i32, i32
  }
}

module attributes {stable_mosaic.version = 11 : i64} {
  func.func @_matmul_bias_tanh_kernel(%arg0: memref<16x4096xbf16, #tpu.memory_space<vmem>>, %arg1: memref<4096x8xbf16, #tpu.memory_space<vmem>>, %arg2: memref<16x1xf32, #tpu.memory_space<vmem>>, %arg3: memref<16x8xf32, #tpu.memory_space<vmem>>) attributes {dimension_semantics = [], scalar_prefetch = 0 : i64, scratch_operands = 0 : i64, tpu.core_type = #tpu.core_type<tc>} {
    %c0 = arith.constant 0 : index
    %c0_0 = arith.constant 0 : index
    %0 = vector.load %arg0[%c0, %c0_0] : memref<16x4096xbf16, #tpu.memory_space<vmem>>, vector<16x4096xbf16>
    %c0_1 = arith.constant 0 : index
    %c0_2 = arith.constant 0 : index
    %1 = vector.load %arg1[%c0_1, %c0_2] : memref<4096x8xbf16, #tpu.memory_space<vmem>>, vector<4096x8xbf16>
    %cst = arith.constant dense<0.000000e+00> : vector<16x8xf32>
    %2 = tpu.matmul %0, %1, %cst {dimension_numbers = #tpu.dot_dimension_numbers<[1], [0], [0], [1], [0, 0, 1, 1], [], []>} : vector<16x4096xbf16>, vector<4096x8xbf16>, vector<16x8xf32> -> vector<16x8xf32>
    %c0_3 = arith.constant 0 : index
    %c0_4 = arith.constant 0 : index
    %3 = vector.load %arg2[%c0_3, %c0_4] : memref<16x1xf32, #tpu.memory_space<vmem>>, vector<16x1xf32>
    %4 = vector.broadcast %3 : vector<16x1xf32> to vector<16x8xf32>
    %5 = arith.addf %2, %4 : vector<16x8xf32>
    %6 = math.tanh %5 : vector<16x8xf32>
    %c0_5 = arith.constant 0 : index
    %c0_6 = arith.constant 0 : index
    %7 = vector.load %arg3[%c0_5, %c0_6] : memref<16x8xf32, #tpu.memory_space<vmem>>, vector<16x8xf32>
    tpu.vector_store %arg3[%c0_5, %c0_6], %6 {strides = array<i32>} : memref<16x8xf32, #tpu.memory_space<vmem>>, vector<16x8xf32>,
    return
  }
}

</mosaic_0001>

<llo_original>
// kernel: model_tanh_forward.2
$region0: #{model_tanh_forward.2}
  #allocation0 [shape = 'u32[]', space=smem, size = 0x4, offset = 0x4, fixed_abs, tag = 'smem constant byte address 0x4 - core index']
  #allocation1 [shape = 'u32[72,128]{1,0:T(1,128)}', space=vmem, size = 0x9000, scoped, tag = 'internal scratch']
  %s0 = inlined_call_operand.vmem [shape: bf16[256,256], index: 0, kind: input, shape index: {}]
  %s1 = inlined_call_operand.vmem [shape: bf16[256,1536], index: 1, kind: input, shape index: {}]
  %s2 = inlined_call_operand.vmem [shape: f32[16,1], index: 2, kind: input, shape index: {}]
  %s3 = inlined_call_operand.vmem [shape: bf16[16,1280], index: 3, kind: output, shape index: {}]
  %s4 = sld [smem:[#allocation0]]
  $region90: #{model_tanh_forward.2} parent=0
    _
  %s6 = ssub.s32 1, %s4
  %s7 = scalar_select 0, %s6, %s4
  $region1: #{model_tanh_forward.2} parent=0
    #allocation2 [shape = 'u8[786432]{0}', space=vmem, size = 0xc0000, scoped, tag = 'input window, operand 1']
    #allocation3 [shape = 'u8[40960]{0}', space=vmem, size = 0xa000, scoped, tag = 'output window, operand 0']
    loop: start=0, step=1, limit=4
    $region2: #{model_tanh_forward.2} parent=1 // loop_pre_header
      _
    $region3: #{model_tanh_forward.2} parent=1 // loop_header
      %s9 = sphi 0, %s13
      %p10 = scmp.ge.s32.totalorder %s9, 4
      %s17 = sphi 0, %s17
      %s19 = sphi 0, %s17
      %s20 = sphi 0, %s19
      %s34 = sphi 0, %s20
      %s40 = sphi 0, %s42
      %s43 = sphi 0, %s40
      %s44 = sphi 0, %s43
      %s60 = sphi 0, %s44
      %s64 = sphi 0, %s64
      %s66 = sphi 0, %s64
      %s67 = sphi 0, %s66
      %s81 = sphi 0, %s67
      %s87 = sphi 0, %s89
      %s90 = sphi 0, %s87
      %s91 = sphi 0, %s90
      %s107 = sphi 0, %s91
    $region4: #{model_tanh_forward.2} parent=1 // loop_header_branch
      %12 = sbr.rel (%p10) target = $region8
    $region5: #{model_tanh_forward.2} parent=1 // loop_body
      %s14 = ssub.s32 %s9, 1
      %s15 = ssub.s32 %s9, 2
      %s16 = sadd.s32 %s9, 1
      %s18 = sadd.s32 %s17, 1
      %p21 = scmp.eq.s32.totalorder %s9, 1
      %p22 = scmp.ne.s32.totalorder %s17, %s19
      %p23 = scmp.eq.s32.totalorder %s9, 0
      %p24 = por %p22, %p23
      %p25 = scmp.ne.s32.totalorder %s17, %s19
      %p26 = scmp.eq.s32.totalorder %s14, 1
      %p27 = por %p25, %p26
      %p28 = scmp.ne.s32.totalorder %s19, %s20
      %p29 = scmp.eq.s32.totalorder %s14, 0
      %p30 = por %p28, %p29
      %p31 = scmp.ne.s32.totalorder %s19, %s20
      %p32 = scmp.eq.s32.totalorder %s15, 1
      %p33 = por %p31, %p32
      %p35 = scmp.ne.s32.totalorder %s20, %s34
      %p36 = scmp.eq.s32.totalorder %s15, 0
      %p37 = por %p35, %p36
      %s38 = ssub.s32 %s9, %s16
      %p39 = scmp.eq.s32.totalorder %s38, 0
      %s41 = sadd.s32 %s40, 1
      %s42 = scalar_select %p39, %s40, %s41
      %p45 = pneg %p39
      %p46 = scmp.eq.s32.totalorder %s9, 1
      %p47 = por %p45, %p46
      %p48 = scmp.ne.s32.totalorder %s40, %s43
      %p49 = scmp.eq.s32.totalorder %s9, 0
      %p50 = por %p48, %p49
      %p51 = scmp.ne.s32.totalorder %s40, %s43
      %p52 = scmp.eq.s32.totalorder %s14, 1
      %p53 = por %p51, %p52
      %p54 = scmp.ne.s32.totalorder %s43, %s44
      %p55 = scmp.eq.s32.totalorder %s14, 0
      %p56 = por %p54, %p55
      %p57 = scmp.ne.s32.totalorder %s43, %s44
      %p58 = scmp.eq.s32.totalorder %s15, 1
      %p59 = por %p57, %p58
      %p61 = scmp.ne.s32.totalorder %s44, %s60
      %p62 = scmp.eq.s32.totalorder %s15, 0
      %p63 = por %p61, %p62
      %s65 = sadd.s32 %s64, 1
      %p68 = scmp.eq.s32.totalorder %s9, 1
      %p69 = scmp.ne.s32.totalorder %s64, %s66
      %p70 = scmp.eq.s32.totalorder %s9, 0
      %p71 = por %p69, %p70
      %p72 = scmp.ne.s32.totalorder %s64, %s66
      %p73 = scmp.eq.s32.totalorder %s14, 1
      %p74 = por %p72, %p73
      %p75 = scmp.ne.s32.totalorder %s66, %s67
      %p76 = scmp.eq.s32.totalorder %s14, 0
      %p77 = por %p75, %p76
      %p78 = scmp.ne.s32.totalorder %s66, %s67
      %p79 = scmp.eq.s32.totalorder %s15, 1
      %p80 = por %p78, %p79
      %p82 = scmp.ne.s32.totalorder %s67, %s81
      %p83 = scmp.eq.s32.totalorder %s15, 0
      %p84 = por %p82, %p83
      %s85 = ssub.s32 %s9, %s16
      %p86 = scmp.eq.s32.totalorder %s85, 0
      %s88 = sadd.s32 %s87, 1
      %s89 = scalar_select %p86, %s87, %s88
      %p92 = pneg %p86
      %p93 = scmp.eq.s32.totalorder %s9, 1
      %p94 = por %p92, %p93
      %p95 = scmp.ne.s32.totalorder %s87, %s90
      %p96 = scmp.eq.s32.totalorder %s9, 0
      %p97 = por %p95, %p96
      %p98 = scmp.ne.s32.totalorder %s87, %s90
      %p99 = scmp.eq.s32.totalorder %s14, 1
      %p100 = por %p98, %p99
      %p101 = scmp.ne.s32.totalorder %s90, %s91
      %p102 = scmp.eq.s32.totalorder %s14, 0
      %p103 = por %p101, %p102
      %p104 = scmp.ne.s32.totalorder %s90, %s91
      %p105 = scmp.eq.s32.totalorder %s15, 1
      %p106 = por %p104, %p105
      %p108 = scmp.ne.s32.totalorder %s91, %s107
      %p109 = scmp.eq.s32.totalorder %s15, 0
      %p110 = por %p108, %p109
      %p111 = scmp.le.s32.totalorder 1, %s9
      %p112 = scmp.lt.s32.totalorder %s9, 3
      %p113 = pnand %p111, %p112
      %p114 = pneg %p113
      // Predicated region
      $region9: #{model_tanh_forward.2} parent=5 // pred_check
        _
      $region10: #{model_tanh_forward.2} parent=5 // pred_check_branch
        %116 = sbr.rel (%p113) target = $region12
      $region11: #{model_tanh_forward.2} parent=5 // pred_region
        %s117 = ssub.s32 %s9, 1
        // Predicated region
        $region13: #{model_tanh_forward.2} parent=11 // pred_check
          %p118 = pneg %p30
        $region14: #{model_tanh_forward.2} parent=11 // pred_check_branch
          %120 = sbr.rel (%p118) target = $region16
        $region15: #{model_tanh_forward.2} parent=11 // pred_region
          _
        $region16: #{model_tanh_forward.2} parent=11 // pred_fallthru
          _
        // Predicated region
        $region17: #{model_tanh_forward.2} parent=11 // pred_check
          %p121 = pneg %p77
        $region18: #{model_tanh_forward.2} parent=11 // pred_check_branch
          %123 = sbr.rel (%p121) target = $region20
        $region19: #{model_tanh_forward.2} parent=11 // pred_region
          _
        $region20: #{model_tanh_forward.2} parent=11 // pred_fallthru
          _
      $region12: #{model_tanh_forward.2} parent=5 // pred_fallthru
        _
      %p124 = scmp.lt.s32.totalorder %s9, 2
      // Predicated region
      $region21: #{model_tanh_forward.2} parent=5 // pred_check
        %p125 = pneg %p124
      $region22: #{model_tanh_forward.2} parent=5 // pred_check_branch
        %127 = sbr.rel (%p125) target = $region24
      $region23: #{model_tanh_forward.2} parent=5 // pred_region
        // Predicated region
        $region25: #{model_tanh_forward.2} parent=23 // pred_check
          %p128 = pneg %p50
        $region26: #{model_tanh_forward.2} parent=23 // pred_check_branch
          %130 = sbr.rel (%p128) target = $region28
        $region27: #{model_tanh_forward.2} parent=23 // pred_region
          %s131 = sand.u32 %s40, 1
          %s132 = sand.u32 %s40, 1
          %s133 = smul.addr %s132, 768
          %s134 = scalar_lea.vmem [#allocation2], %s133
          %s135 = smul.u32 6, %s9
          %s136 = smul.addr %s135, 4
          %s137 = scalar_lea.vmem %s1, %s136
          // Predicated region
          $region29: #{model_tanh_forward.2} parent=27 // pred_check
            _
          $region30: #{model_tanh_forward.2} parent=27 // pred_check_branch
            %139 = sbr.rel (0) target = $region32
          $region31: #{model_tanh_forward.2} parent=27 // pred_region
            // Predicated region
            $region33: #{model_tanh_forward.2} parent=31 // pred_check
              _
            $region34: #{model_tanh_forward.2} parent=31 // pred_check_branch
              %141 = sbr.rel (0) target = $region36
            $region35: #{model_tanh_forward.2} parent=31 // pred_region
              loop: start=0, step=1, limit=1
              $region37: #{model_tanh_forward.2} parent=35 // loop_pre_header
                _
              $region38: #{model_tanh_forward.2} parent=35 // loop_header
                %s143 = sphi 0, %s147
                %p144 = scmp.ge.s32.totalorder %s143, 1
                %s148 = sphi %s137, %s137
                %s149 = sphi %s134, %s134
              $region39: #{model_tanh_forward.2} parent=35 // loop_header_branch
                %146 = sbr.rel (%p144) target = $region43
              $region40: #{model_tanh_forward.2} parent=35 // loop_body
                %v150 = vld [vmem:[%s148] sm:$0xff]
                %151 = vst [vmem:[%s149] sm:$0xff] %v150
                %v152 = vld [vmem:[%s148 + $0x8] sm:$0xff]
                %153 = vst [vmem:[%s149 + $0x8] sm:$0xff] %v152
                %v154 = vld [vmem:[%s148 + $0x10] sm:$0xff]
                %155 = vst [vmem:[%s149 + $0x10] sm:$0xff] %v154
                %v156 = vld [vmem:[%s148 + $0x30] sm:$0xff]
                %157 = vst [vmem:[%s149 + $0x18] sm:$0xff] %v156
                %v158 = vld [vmem:[%s148 + $0x38] sm:$0xff]
                %159 = vst [vmem:[%s149 + $0x20] sm:$0xff] %v158
                %v160 = vld [vmem:[%s148 + $0x40] sm:$0xff]
                %161 = vst [vmem:[%s149 + $0x28] sm:$0xff] %v160
                %v162 = vld [vmem:[%s148 + $0x60] sm:$0xff]
                %163 = vst [vmem:[%s149 + $0x30] sm:$0xff] %v162
                %v164 = vld [vmem:[%s148 + $0x68] sm:$0xff]
                %165 = vst [vmem:[%s149 + $0x38] sm:$0xff] %v164
                %v166 = vld [vmem:[%s148 + $0x70] sm:$0xff]
                %167 = vst [vmem:[%s149 + $0x40] sm:$0xff] %v166
                %v168 = vld [vmem:[%s148 + $0x90] sm:$0xff]
                %169 = vst [vmem:[%s149 + $0x48] sm:$0xff] %v168
                %v170 = vld [vmem:[%s148 + $0x98] sm:$0xff]
                %171 = vst [vmem:[%s149 + $0x50] sm:$0xff] %v170
                %v172 = vld [vmem:[%s148 + $0xa0] sm:$0xff]
                %173 = vst [vmem:[%s149 + $0x58] sm:$0xff] %v172
                %v174 = vld [vmem:[%s148 + $0xc0] sm:$0xff]
                %175 = vst [vmem:[%s149 + $0x60] sm:$0xff] %v174
                %v176 = vld [vmem:[%s148 + $0xc8] sm:$0xff]
                %177 = vst [vmem:[%s149 + $0x68] sm:$0xff] %v176
                %v178 = vld [vmem:[%s148 + $0xd0] sm:$0xff]
                %179 = vst [vmem:[%s149 + $0x70] sm:$0xff] %v178
                %v180 = vld [vmem:[%s148 + $0xf0] sm:$0xff]
                %181 = vst [vmem:[%s149 + $0x78] sm:$0xff] %v180
                %v182 = vld [vmem:[%s148 + $0xf8] sm:$0xff]
                %183 = vst [vmem:[%s149 + $0x80] sm:$0xff] %v182
                %v184 = vld [vmem:[%s148 + $0x100] sm:$0xff]
                %185 = vst [vmem:[%s149 + $0x88] sm:$0xff] %v184
                %v186 = vld [vmem:[%s148 + $0x120] sm:$0xff]
                %187 = vst [vmem:[%s149 + $0x90] sm:$0xff] %v186
                %v188 = vld [vmem:[%s148 + $0x128] sm:$0xff]
                %189 = vst [vmem:[%s149 + $0x98] sm:$0xff] %v188
                %v190 = vld [vmem:[%s148 + $0x130] sm:$0xff]
                %191 = vst [vmem:[%s149 + $0xa0] sm:$0xff] %v190
                %v192 = vld [vmem:[%s148 + $0x150] sm:$0xff]
                %193 = vst [vmem:[%s149 + $0xa8] sm:$0xff] %v192
                %v194 = vld [vmem:[%s148 + $0x158] sm:$0xff]
                %195 = vst [vmem:[%s149 + $0xb0] sm:$0xff] %v194
                %v196 = vld [vmem:[%s148 + $0x160] sm:$0xff]
                %197 = vst [vmem:[%s149 + $0xb8] sm:$0xff] %v196
                %v198 = vld [vmem:[%s148 + $0x180] sm:$0xff]
                %199 = vst [vmem:[%s149 + $0xc0] sm:$0xff] %v198
                %v200 = vld [vmem:[%s148 + $0x188] sm:$0xff]
                %201 = vst [vmem:[%s149 + $0xc8] sm:$0xff] %v200
                %v202 = vld [vmem:[%s148 + $0x190] sm:$0xff]
                %203 = vst [vmem:[%s149 + $0xd0] sm:$0xff] %v202
                %v204 = vld [vmem:[%s148 + $0x1b0] sm:$0xff]
                %205 = vst [vmem:[%s149 + $0xd8] sm:$0xff] %v204
                %v206 = vld [vmem:[%s148 + $0x1b8] sm:$0xff]
                %207 = vst [vmem:[%s149 + $0xe0] sm:$0xff] %v206
                %v208 = vld [vmem:[%s148 + $0x1c0] sm:$0xff]
                %209 = vst [vmem:[%s149 + $0xe8] sm:$0xff] %v208
                %v210 = vld [vmem:[%s148 + $0x1e0] sm:$0xff]
                %211 = vst [vmem:[%s149 + $0xf0] sm:$0xff] %v210
                %v212 = vld [vmem:[%s148 + $0x1e8] sm:$0xff]
                %213 = vst [vmem:[%s149 + $0xf8] sm:$0xff] %v212
                %v214 = vld [vmem:[%s148 + $0x1f0] sm:$0xff]
                %215 = vst [vmem:[%s149 + $0x100] sm:$0xff] %v214
                %v216 = vld [vmem:[%s148 + $0x210] sm:$0xff]
                %217 = vst [vmem:[%s149 + $0x108] sm:$0xff] %v216
                %v218 = vld [vmem:[%s148 + $0x218] sm:$0xff]
                %219 = vst [vmem:[%s149 + $0x110] sm:$0xff] %v218
                %v220 = vld [vmem:[%s148 + $0x220] sm:$0xff]
                %221 = vst [vmem:[%s149 + $0x118] sm:$0xff] %v220
                %v222 = vld [vmem:[%s148 + $0x240] sm:$0xff]
                %223 = vst [vmem:[%s149 + $0x120] sm:$0xff] %v222
                %v224 = vld [vmem:[%s148 + $0x248] sm:$0xff]
                %225 = vst [vmem:[%s149 + $0x128] sm:$0xff] %v224
                %v226 = vld [vmem:[%s148 + $0x250] sm:$0xff]
                %227 = vst [vmem:[%s149 + $0x130] sm:$0xff] %v226
                %v228 = vld [vmem:[%s148 + $0x270] sm:$0xff]
                %229 = vst [vmem:[%s149 + $0x138] sm:$0xff] %v228
                %v230 = vld [vmem:[%s148 + $0x278] sm:$0xff]
                %231 = vst [vmem:[%s149 + $0x140] sm:$0xff] %v230
                %v232 = vld [vmem:[%s148 + $0x280] sm:$0xff]
                %233 = vst [vmem:[%s149 + $0x148] sm:$0xff] %v232
                %v234 = vld [vmem:[%s148 + $0x2a0] sm:$0xff]
                %235 = vst [vmem:[%s149 + $0x150] sm:$0xff] %v234
                %v236 = vld [vmem:[%s148 + $0x2a8] sm:$0xff]
                %237 = vst [vmem:[%s149 + $0x158] sm:$0xff] %v236
                %v238 = vld [vmem:[%s148 + $0x2b0] sm:$0xff]
                %239 = vst [vmem:[%s149 + $0x160] sm:$0xff] %v238
                %v240 = vld [vmem:[%s148 + $0x2d0] sm:$0xff]
                %241 = vst [vmem:[%s149 + $0x168] sm:$0xff] %v240
                %v242 = vld [vmem:[%s148 + $0x2d8] sm:$0xff]
                %243 = vst [vmem:[%s149 + $0x170] sm:$0xff] %v242
                %v244 = vld [vmem:[%s148 + $0x2e0] sm:$0xff]
                %245 = vst [vmem:[%s149 + $0x178] sm:$0xff] %v244
                %v246 = vld [vmem:[%s148 + $0x300] sm:$0xff]
                %247 = vst [vmem:[%s149 + $0x180] sm:$0xff] %v246
                %v248 = vld [vmem:[%s148 + $0x308] sm:$0xff]
                %249 = vst [vmem:[%s149 + $0x188] sm:$0xff] %v248
                %v250 = vld [vmem:[%s148 + $0x310] sm:$0xff]
                %251 = vst [vmem:[%s149 + $0x190] sm:$0xff] %v250
                %v252 = vld [vmem:[%s148 + $0x330] sm:$0xff]
                %253 = vst [vmem:[%s149 + $0x198] sm:$0xff] %v252
                %v254 = vld [vmem:[%s148 + $0x338] sm:$0xff]
                %255 = vst [vmem:[%s149 + $0x1a0] sm:$0xff] %v254
                %v256 = vld [vmem:[%s148 + $0x340] sm:$0xff]
                %257 = vst [vmem:[%s149 + $0x1a8] sm:$0xff] %v256
                %v258 = vld [vmem:[%s148 + $0x360] sm:$0xff]
                %259 = vst [vmem:[%s149 + $0x1b0] sm:$0xff] %v258
                %v260 = vld [vmem:[%s148 + $0x368] sm:$0xff]
                %261 = vst [vmem:[%s149 + $0x1b8] sm:$0xff] %v260
                %v262 = vld [vmem:[%s148 + $0x370] sm:$0xff]
                %263 = vst [vmem:[%s149 + $0x1c0] sm:$0xff] %v262
                %v264 = vld [vmem:[%s148 + $0x390] sm:$0xff]
                %265 = vst [vmem:[%s149 + $0x1c8] sm:$0xff] %v264
                %v266 = vld [vmem:[%s148 + $0x398] sm:$0xff]
                %267 = vst [vmem:[%s149 + $0x1d0] sm:$0xff] %v266
                %v268 = vld [vmem:[%s148 + $0x3a0] sm:$0xff]
                %269 = vst [vmem:[%s149 + $0x1d8] sm:$0xff] %v268
                %v270 = vld [vmem:[%s148 + $0x3c0] sm:$0xff]
                %271 = vst [vmem:[%s149 + $0x1e0] sm:$0xff] %v270
                %v272 = vld [vmem:[%s148 + $0x3c8] sm:$0xff]
                %273 = vst [vmem:[%s149 + $0x1e8] sm:$0xff] %v272
                %v274 = vld [vmem:[%s148 + $0x3d0] sm:$0xff]
                %275 = vst [vmem:[%s149 + $0x1f0] sm:$0xff] %v274
                %v276 = vld [vmem:[%s148 + $0x3f0] sm:$0xff]
                %277 = vst [vmem:[%s149 + $0x1f8] sm:$0xff] %v276
                %v278 = vld [vmem:[%s148 + $0x3f8] sm:$0xff]
                %279 = vst [vmem:[%s149 + $0x200] sm:$0xff] %v278
                %v280 = vld [vmem:[%s148 + $0x400] sm:$0xff]
                %281 = vst [vmem:[%s149 + $0x208] sm:$0xff] %v280
                %v282 = vld [vmem:[%s148 + $0x420] sm:$0xff]
                %283 = vst [vmem:[%s149 + $0x210] sm:$0xff] %v282
                %v284 = vld [vmem:[%s148 + $0x428] sm:$0xff]
                %285 = vst [vmem:[%s149 + $0x218] sm:$0xff] %v284
                %v286 = vld [vmem:[%s148 + $0x430] sm:$0xff]
                %287 = vst [vmem:[%s149 + $0x220] sm:$0xff] %v286
                %v288 = vld [vmem:[%s148 + $0x450] sm:$0xff]
                %289 = vst [vmem:[%s149 + $0x228] sm:$0xff] %v288
                %v290 = vld [vmem:[%s148 + $0x458] sm:$0xff]
                %291 = vst [vmem:[%s149 + $0x230] sm:$0xff] %v290
                %v292 = vld [vmem:[%s148 + $0x460] sm:$0xff]
                %293 = vst [vmem:[%s149 + $0x238] sm:$0xff] %v292
                %v294 = vld [vmem:[%s148 + $0x480] sm:$0xff]
                %295 = vst [vmem:[%s149 + $0x240] sm:$0xff] %v294
                %v296 = vld [vmem:[%s148 + $0x488] sm:$0xff]
                %297 = vst [vmem:[%s149 + $0x248] sm:$0xff] %v296
                %v298 = vld [vmem:[%s148 + $0x490] sm:$0xff]
                %299 = vst [vmem:[%s149 + $0x250] sm:$0xff] %v298
                %v300 = vld [vmem:[%s148 + $0x4b0] sm:$0xff]
                %301 = vst [vmem:[%s149 + $0x258] sm:$0xff] %v300
                %v302 = vld [vmem:[%s148 + $0x4b8] sm:$0xff]
                %303 = vst [vmem:[%s149 + $0x260] sm:$0xff] %v302
                %v304 = vld [vmem:[%s148 + $0x4c0] sm:$0xff]
                %305 = vst [vmem:[%s149 + $0x268] sm:$0xff] %v304
                %v306 = vld [vmem:[%s148 + $0x4e0] sm:$0xff]
                %307 = vst [vmem:[%s149 + $0x270] sm:$0xff] %v306
                %v308 = vld [vmem:[%s148 + $0x4e8] sm:$0xff]
                %309 = vst [vmem:[%s149 + $0x278] sm:$0xff] %v308
                %v310 = vld [vmem:[%s148 + $0x4f0] sm:$0xff]
                %311 = vst [vmem:[%s149 + $0x280] sm:$0xff] %v310
                %v312 = vld [vmem:[%s148 + $0x510] sm:$0xff]
                %313 = vst [vmem:[%s149 + $0x288] sm:$0xff] %v312
                %v314 = vld [vmem:[%s148 + $0x518] sm:$0xff]
                %315 = vst [vmem:[%s149 + $0x290] sm:$0xff] %v314
                %v316 = vld [vmem:[%s148 + $0x520] sm:$0xff]
                %317 = vst [vmem:[%s149 + $0x298] sm:$0xff] %v316
                %v318 = vld [vmem:[%s148 + $0x540] sm:$0xff]
                %319 = vst [vmem:[%s149 + $0x2a0] sm:$0xff] %v318
                %v320 = vld [vmem:[%s148 + $0x548] sm:$0xff]
                %321 = vst [vmem:[%s149 + $0x2a8] sm:$0xff] %v320
                %v322 = vld [vmem:[%s148 + $0x550] sm:$0xff]
                %323 = vst [vmem:[%s149 + $0x2b0] sm:$0xff] %v322
                %v324 = vld [vmem:[%s148 + $0x570] sm:$0xff]
                %325 = vst [vmem:[%s149 + $0x2b8] sm:$0xff] %v324
                %v326 = vld [vmem:[%s148 + $0x578] sm:$0xff]
                %327 = vst [vmem:[%s149 + $0x2c0] sm:$0xff] %v326
                %v328 = vld [vmem:[%s148 + $0x580] sm:$0xff]
                %329 = vst [vmem:[%s149 + $0x2c8] sm:$0xff] %v328
                %v330 = vld [vmem:[%s148 + $0x5a0] sm:$0xff]
                %331 = vst [vmem:[%s149 + $0x2d0] sm:$0xff] %v330
                %v332 = vld [vmem:[%s148 + $0x5a8] sm:$0xff]
                %333 = vst [vmem:[%s149 + $0x2d8] sm:$0xff] %v332
                %v334 = vld [vmem:[%s148 + $0x5b0] sm:$0xff]
                %335 = vst [vmem:[%s149 + $0x2e0] sm:$0xff] %v334
                %v336 = vld [vmem:[%s148 + $0x5d0] sm:$0xff]
                %337 = vst [vmem:[%s149 + $0x2e8] sm:$0xff] %v336
                %v338 = vld [vmem:[%s148 + $0x5d8] sm:$0xff]
                %339 = vst [vmem:[%s149 + $0x2f0] sm:$0xff] %v338
                %v340 = vld [vmem:[%s148 + $0x5e0] sm:$0xff]
                %341 = vst [vmem:[%s149 + $0x2f8] sm:$0xff] %v340
              $region41: #{model_tanh_forward.2} parent=35 // loop_footer
                %s147 = sadd.s32 1, %s143
              $region42: #{model_tanh_forward.2} parent=35 // loop_footer_branch
                %142 = sbr.rel target = $region38
              $region43: #{model_tanh_forward.2} parent=35 // loop_exit
                _
            $region36: #{model_tanh_forward.2} parent=31 // pred_fallthru
              _
            // Predicated region
            $region44: #{model_tanh_forward.2} parent=31 // pred_check
              _
            $region45: #{model_tanh_forward.2} parent=31 // pred_check_branch
              %343 = sbr.rel target = $region47
            $region46: #{model_tanh_forward.2} parent=31 // pred_region
              _
            $region47: #{model_tanh_forward.2} parent=31 // pred_fallthru
              _
          $region32: #{model_tanh_forward.2} parent=27 // pred_fallthru
            _
          %344 = vnop
        $region28: #{model_tanh_forward.2} parent=23 // pred_fallthru
          _
      $region24: #{model_tanh_forward.2} parent=5 // pred_fallthru
        _
      %p345 = scmp.le.s32.totalorder 1, %s9
      %p346 = scmp.lt.s32.totalorder %s9, 3
      %p347 = pnand %p345, %p346
      %p348 = pneg %p347
      // Predicated region
      $region48: #{model_tanh_forward.2} parent=5 // pred_check
        _
      $region49: #{model_tanh_forward.2} parent=5 // pred_check_branch
        %350 = sbr.rel (%p347) target = $region51
      $region50: #{model_tanh_forward.2} parent=5 // pred_region
        %s351 = ssub.s32 %s9, 1
        %s352 = sand.u32 %s43, 1
        %s353 = sand.u32 %s43, 1
        %s354 = smul.addr %s353, 768
        %s355 = scalar_lea.vmem [#allocation2], %s354
        // Predicated region
        $region52: #{model_tanh_forward.2} parent=50 // pred_check
          %p356 = pneg %p56
        $region53: #{model_tanh_forward.2} parent=50 // pred_check_branch
          %358 = sbr.rel (%p356) target = $region55
        $region54: #{model_tanh_forward.2} parent=50 // pred_region
          _
        $region55: #{model_tanh_forward.2} parent=50 // pred_fallthru
          _
        %p359 = pneg %p30
        %p360 = pneg %p27
        %s361 = sand.u32 %s43, 1
        %s362 = sand.u32 %s43, 1
        %s363 = smul.addr %s362, 768
        %s364 = scalar_lea.vmem [#allocation2], %s363
        %p365 = pneg %p56
        %p366 = pneg %p53
        %p367 = pneg %p77
        %p368 = pneg %p74
        %p369 = pneg %p103
        %p370 = pneg %p100
        %s371 = sand.u32 %s90, 1
        %s372 = sand.u32 %s90, 1
        %s373 = smul.addr %s372, 40
        %s374 = scalar_lea.vmem [#allocation3], %s373
        %s375 = smul.u32 6, %s14
        %s376 = smul.u32 5, %s14
        %v377 = vld [vmem:[%s0] sm:$0xff]
        %v378 = vld [vmem:[%s0 + $0x8] sm:$0xff]
        %v379 = vld [vmem:[%s0 + $0x10] sm:$0xff]
        %v380 = vld [vmem:[%s0 + $0x18] sm:$0xff]
        %v381 = vld [vmem:[%s0 + $0x20] sm:$0xff]
        %v382 = vld [vmem:[%s0 + $0x28] sm:$0xff]
        %v383 = vld [vmem:[%s0 + $0x30] sm:$0xff]
        %v384 = vld [vmem:[%s0 + $0x38] sm:$0xff]
        %v385 = vld [vmem:[%s0 + $0x40] sm:$0xff]
        %v386 = vld [vmem:[%s0 + $0x48] sm:$0xff]
        %v387 = vld [vmem:[%s0 + $0x50] sm:$0xff]
        %v388 = vld [vmem:[%s0 + $0x58] sm:$0xff]
        %v389 = vld [vmem:[%s0 + $0x60] sm:$0xff]
        %v390 = vld [vmem:[%s0 + $0x68] sm:$0xff]
        %v391 = vld [vmem:[%s0 + $0x70] sm:$0xff]
        %v392 = vld [vmem:[%s0 + $0x78] sm:$0xff]
        %v393 = vld [vmem:[%s0 + $0x80] sm:$0xff]
        %v394 = vld [vmem:[%s0 + $0x88] sm:$0xff]
        %v395 = vld [vmem:[%s0 + $0x90] sm:$0xff]
        %v396 = vld [vmem:[%s0 + $0x98] sm:$0xff]
        %v397 = vld [vmem:[%s0 + $0xa0] sm:$0xff]
        %v398 = vld [vmem:[%s0 + $0xa8] sm:$0xff]
        %v399 = vld [vmem:[%s0 + $0xb0] sm:$0xff]
        %v400 = vld [vmem:[%s0 + $0xb8] sm:$0xff]
        %v401 = vld [vmem:[%s0 + $0xc0] sm:$0xff]
        %v402 = vld [vmem:[%s0 + $0xc8] sm:$0xff]
        %v403 = vld [vmem:[%s0 + $0xd0] sm:$0xff]
        %v404 = vld [vmem:[%s0 + $0xd8] sm:$0xff]
        %v405 = vld [vmem:[%s0 + $0xe0] sm:$0xff]
        %v406 = vld [vmem:[%s0 + $0xe8] sm:$0xff]
        %v407 = vld [vmem:[%s0 + $0xf0] sm:$0xff]
        %v408 = vld [vmem:[%s0 + $0xf8] sm:$0xff]
        %v409 = vld [vmem:[%s355] sm:$0xff]
        %v410 = vld [vmem:[%s355 + $0x8] sm:$0xff]
        %v411 = vld [vmem:[%s355 + $0x10] sm:$0xff]
        %v412 = vld [vmem:[%s355 + $0x18] sm:$0xff]
        %v413 = vld [vmem:[%s355 + $0x20] sm:$0xff]
        %v414 = vld [vmem:[%s355 + $0x28] sm:$0xff]
        %v415 = vld [vmem:[%s355 + $0x30] sm:$0xff]
        %v416 = vld [vmem:[%s355 + $0x38] sm:$0xff]
        %v417 = vld [vmem:[%s355 + $0x40] sm:$0xff]
        %v418 = vld [vmem:[%s355 + $0x48] sm:$0xff]
        %v419 = vld [vmem:[%s355 + $0x50] sm:$0xff]
        %v420 = vld [vmem:[%s355 + $0x58] sm:$0xff]
        %v421 = vld [vmem:[%s355 + $0x60] sm:$0xff]
        %v422 = vld [vmem:[%s355 + $0x68] sm:$0xff]
        %v423 = vld [vmem:[%s355 + $0x70] sm:$0xff]
        %v424 = vld [vmem:[%s355 + $0x78] sm:$0xff]
        %v425 = vld [vmem:[%s355 + $0x80] sm:$0xff]
        %v426 = vld [vmem:[%s355 + $0x88] sm:$0xff]
        %v427 = vld [vmem:[%s355 + $0x90] sm:$0xff]
        %v428 = vld [vmem:[%s355 + $0x98] sm:$0xff]
        %v429 = vld [vmem:[%s355 + $0xa0] sm:$0xff]
        %v430 = vld [vmem:[%s355 + $0xa8] sm:$0xff]
        %v431 = vld [vmem:[%s355 + $0xb0] sm:$0xff]
        %v432 = vld [vmem:[%s355 + $0xb8] sm:$0xff]
        %v433 = vld [vmem:[%s355 + $0xc0] sm:$0xff]
        %v434 = vld [vmem:[%s355 + $0xc8] sm:$0xff]
        %v435 = vld [vmem:[%s355 + $0xd0] sm:$0xff]
        %v436 = vld [vmem:[%s355 + $0xd8] sm:$0xff]
        %v437 = vld [vmem:[%s355 + $0xe0] sm:$0xff]
        %v438 = vld [vmem:[%s355 + $0xe8] sm:$0xff]
        %v439 = vld [vmem:[%s355 + $0xf0] sm:$0xff]
        %v440 = vld [vmem:[%s355 + $0xf8] sm:$0xff]
        %v441 = vld [vmem:[%s355 + $0x100] sm:$0xff]
        %v442 = vld [vmem:[%s355 + $0x108] sm:$0xff]
        %v443 = vld [vmem:[%s355 + $0x110] sm:$0xff]
        %v444 = vld [vmem:[%s355 + $0x118] sm:$0xff]
        %v445 = vld [vmem:[%s355 + $0x120] sm:$0xff]
        %v446 = vld [vmem:[%s355 + $0x128] sm:$0xff]
        %v447 = vld [vmem:[%s355 + $0x130] sm:$0xff]
        %v448 = vld [vmem:[%s355 + $0x138] sm:$0xff]
        %v449 = vld [vmem:[%s355 + $0x140] sm:$0xff]
        %v450 = vld [vmem:[%s355 + $0x148] sm:$0xff]
        %v451 = vld [vmem:[%s355 + $0x150] sm:$0xff]
        %v452 = vld [vmem:[%s355 + $0x158] sm:$0xff]
        %v453 = vld [vmem:[%s355 + $0x160] sm:$0xff]
        %v454 = vld [vmem:[%s355 + $0x168] sm:$0xff]
        %v455 = vld [vmem:[%s355 + $0x170] sm:$0xff]
        %v456 = vld [vmem:[%s355 + $0x178] sm:$0xff]
        %v457 = vld [vmem:[%s355 + $0x180] sm:$0xff]
        %v458 = vld [vmem:[%s355 + $0x188] sm:$0xff]
        %v459 = vld [vmem:[%s355 + $0x190] sm:$0xff]
        %v460 = vld [vmem:[%s355 + $0x198] sm:$0xff]
        %v461 = vld [vmem:[%s355 + $0x1a0] sm:$0xff]
        %v462 = vld [vmem:[%s355 + $0x1a8] sm:$0xff]
        %v463 = vld [vmem:[%s355 + $0x1b0] sm:$0xff]
        %v464 = vld [vmem:[%s355 + $0x1b8] sm:$0xff]
        %v465 = vld [vmem:[%s355 + $0x1c0] sm:$0xff]
        %v466 = vld [vmem:[%s355 + $0x1c8] sm:$0xff]
        %v467 = vld [vmem:[%s355 + $0x1d0] sm:$0xff]
        %v468 = vld [vmem:[%s355 + $0x1d8] sm:$0xff]
        %v469 = vld [vmem:[%s355 + $0x1e0] sm:$0xff]
        %v470 = vld [vmem:[%s355 + $0x1e8] sm:$0xff]
        %v471 = vld [vmem:[%s355 + $0x1f0] sm:$0xff]
        %v472 = vld [vmem:[%s355 + $0x1f8] sm:$0xff]
        %v473 = vld [vmem:[%s355 + $0x200] sm:$0xff]
        %v474 = vld [vmem:[%s355 + $0x208] sm:$0xff]
        %v475 = vld [vmem:[%s355 + $0x210] sm:$0xff]
        %v476 = vld [vmem:[%s355 + $0x218] sm:$0xff]
        %v477 = vld [vmem:[%s355 + $0x220] sm:$0xff]
        %v478 = vld [vmem:[%s355 + $0x228] sm:$0xff]
        %v479 = vld [vmem:[%s355 + $0x230] sm:$0xff]
        %v480 = vld [vmem:[%s355 + $0x238] sm:$0xff]
        %v481 = vld [vmem:[%s355 + $0x240] sm:$0xff]
        %v482 = vld [vmem:[%s355 + $0x248] sm:$0xff]
        %v483 = vld [vmem:[%s355 + $0x250] sm:$0xff]
        %v484 = vld [vmem:[%s355 + $0x258] sm:$0xff]
        %v485 = vld [vmem:[%s355 + $0x260] sm:$0xff]
        %v486 = vld [vmem:[%s355 + $0x268] sm:$0xff]
        %v487 = vld [vmem:[%s355 + $0x270] sm:$0xff]
        %v488 = vld [vmem:[%s355 + $0x278] sm:$0xff]
        %v489 = vld [vmem:[%s355 + $0x280] sm:$0xff]
        %v490 = vld [vmem:[%s355 + $0x288] sm:$0xff]
        %v491 = vld [vmem:[%s355 + $0x290] sm:$0xff]
        %v492 = vld [vmem:[%s355 + $0x298] sm:$0xff]
        %v493 = vld [vmem:[%s355 + $0x2a0] sm:$0xff]
        %v494 = vld [vmem:[%s355 + $0x2a8] sm:$0xff]
        %v495 = vld [vmem:[%s355 + $0x2b0] sm:$0xff]
        %v496 = vld [vmem:[%s355 + $0x2b8] sm:$0xff]
        %v497 = vld [vmem:[%s355 + $0x2c0] sm:$0xff]
        %v498 = vld [vmem:[%s355 + $0x2c8] sm:$0xff]
        %v499 = vld [vmem:[%s355 + $0x2d0] sm:$0xff]
        %v500 = vld [vmem:[%s355 + $0x2d8] sm:$0xff]
        %v501 = vld [vmem:[%s355 + $0x2e0] sm:$0xff]
        %v502 = vld [vmem:[%s355 + $0x2e8] sm:$0xff]
        %v503 = vld [vmem:[%s355 + $0x2f0] sm:$0xff]
        %v504 = vld [vmem:[%s355 + $0x2f8] sm:$0xff]
        %v537 = vunpack.c.l.b16 %v377
        %v538 = vunpack.c.h.b16 %v377
        %v539 = vunpack.c.l.b16 %v378
        %v540 = vunpack.c.h.b16 %v378
        %v541 = vunpack.c.l.b16 %v379
        %v542 = vunpack.c.h.b16 %v379
        %v543 = vunpack.c.l.b16 %v380
        %v544 = vunpack.c.h.b16 %v380
        %v545 = vunpack.c.l.b16 %v381
        %v546 = vunpack.c.h.b16 %v381
        %v547 = vunpack.c.l.b16 %v382
        %v548 = vunpack.c.h.b16 %v382
        %v549 = vunpack.c.l.b16 %v383
        %v550 = vunpack.c.h.b16 %v383
        %v551 = vunpack.c.l.b16 %v384
        %v552 = vunpack.c.h.b16 %v384
        %v553 = vunpack.c.l.b16 %v385
        %v554 = vunpack.c.h.b16 %v385
        %v555 = vunpack.c.l.b16 %v386
        %v556 = vunpack.c.h.b16 %v386
        %v557 = vunpack.c.l.b16 %v387
        %v558 = vunpack.c.h.b16 %v387
        %v559 = vunpack.c.l.b16 %v388
        %v560 = vunpack.c.h.b16 %v388
        %v561 = vunpack.c.l.b16 %v389
        %v562 = vunpack.c.h.b16 %v389
        %v563 = vunpack.c.l.b16 %v390
        %v564 = vunpack.c.h.b16 %v390
        %v565 = vunpack.c.l.b16 %v391
        %v566 = vunpack.c.h.b16 %v391
        %v567 = vunpack.c.l.b16 %v392
        %v568 = vunpack.c.h.b16 %v392
        %v569 = vunpack.c.l.b16 %v393
        %v570 = vunpack.c.h.b16 %v393
        %v571 = vunpack.c.l.b16 %v394
        %v572 = vunpack.c.h.b16 %v394
        %v573 = vunpack.c.l.b16 %v395
        %v574 = vunpack.c.h.b16 %v395
        %v575 = vunpack.c.l.b16 %v396
        %v576 = vunpack.c.h.b16 %v396
        %v577 = vunpack.c.l.b16 %v397
        %v578 = vunpack.c.h.b16 %v397
        %v579 = vunpack.c.l.b16 %v398
        %v580 = vunpack.c.h.b16 %v398
        %v581 = vunpack.c.l.b16 %v399
        %v582 = vunpack.c.h.b16 %v399
        %v583 = vunpack.c.l.b16 %v400
        %v584 = vunpack.c.h.b16 %v400
        %v585 = vunpack.c.l.b16 %v401
        %v586 = vunpack.c.h.b16 %v401
        %v587 = vunpack.c.l.b16 %v402
        %v588 = vunpack.c.h.b16 %v402
        %v589 = vunpack.c.l.b16 %v403
        %v590 = vunpack.c.h.b16 %v403
        %v591 = vunpack.c.l.b16 %v404
        %v592 = vunpack.c.h.b16 %v404
        %v593 = vunpack.c.l.b16 %v405
        %v594 = vunpack.c.h.b16 %v405
        %v595 = vunpack.c.l.b16 %v406
        %v596 = vunpack.c.h.b16 %v406
        %v597 = vunpack.c.l.b16 %v407
        %v598 = vunpack.c.h.b16 %v407
        %v599 = vunpack.c.l.b16 %v408
        %v600 = vunpack.c.h.b16 %v408
        %v601 = vpack.c.b16 %v539, %v537
        %v602 = vpack.c.b16 %v540, %v538
        %v603 = vpack.c.b16 %v543, %v541
        %v604 = vpack.c.b16 %v544, %v542
        %v605 = vpack.c.b16 %v547, %v545
        %v606 = vpack.c.b16 %v548, %v546
        %v607 = vpack.c.b16 %v551, %v549
        %v608 = vpack.c.b16 %v552, %v550
        %v609 = vpack.c.b16 %v555, %v553
        %v610 = vpack.c.b16 %v556, %v554
        %v611 = vpack.c.b16 %v559, %v557
        %v612 = vpack.c.b16 %v560, %v558
        %v613 = vpack.c.b16 %v563, %v561
        %v614 = vpack.c.b16 %v564, %v562
        %v615 = vpack.c.b16 %v567, %v565
        %v616 = vpack.c.b16 %v568, %v566
        %v617 = vpack.c.b16 %v571, %v569
        %v618 = vpack.c.b16 %v572, %v570
        %v619 = vpack.c.b16 %v575, %v573
        %v620 = vpack.c.b16 %v576, %v574
        %v621 = vpack.c.b16 %v579, %v577
        %v622 = vpack.c.b16 %v580, %v578
        %v623 = vpack.c.b16 %v583, %v581
        %v624 = vpack.c.b16 %v584, %v582
        %v625 = vpack.c.b16 %v587, %v585
        %v626 = vpack.c.b16 %v588, %v586
        %v627 = vpack.c.b16 %v591, %v589
        %v628 = vpack.c.b16 %v592, %v590
        %v629 = vpack.c.b16 %v595, %v593
        %v630 = vpack.c.b16 %v596, %v594
        %v631 = vpack.c.b16 %v599, %v597
        %v632 = vpack.c.b16 %v600, %v598
        %v761 = vunpack.c.l.b16 %v409
        %v762 = vunpack.c.h.b16 %v409
        %v763 = vunpack.c.l.b16 %v410
        %v764 = vunpack.c.h.b16 %v410
        %v765 = vunpack.c.l.b16 %v411
        %v766 = vunpack.c.h.b16 %v411
        %v767 = vunpack.c.l.b16 %v412
        %v768 = vunpack.c.h.b16 %v412
        %v769 = vunpack.c.l.b16 %v413
        %v770 = vunpack.c.h.b16 %v413
        %v771 = vunpack.c.l.b16 %v414
        %v772 = vunpack.c.h.b16 %v414
        %v773 = vunpack.c.l.b16 %v415
        %v774 = vunpack.c.h.b16 %v415
        %v775 = vunpack.c.l.b16 %v416
        %v776 = vunpack.c.h.b16 %v416
        %v777 = vunpack.c.l.b16 %v417
        %v778 = vunpack.c.h.b16 %v417
        %v779 = vunpack.c.l.b16 %v418
        %v780 = vunpack.c.h.b16 %v418
        %v781 = vunpack.c.l.b16 %v419
        %v782 = vunpack.c.h.b16 %v419
        %v783 = vunpack.c.l.b16 %v420
        %v784 = vunpack.c.h.b16 %v420
        %v785 = vunpack.c.l.b16 %v421
        %v786 = vunpack.c.h.b16 %v421
        %v787 = vunpack.c.l.b16 %v422
        %v788 = vunpack.c.h.b16 %v422
        %v789 = vunpack.c.l.b16 %v423
        %v790 = vunpack.c.h.b16 %v423
        %v791 = vunpack.c.l.b16 %v424
        %v792 = vunpack.c.h.b16 %v424
        %v793 = vunpack.c.l.b16 %v425
        %v794 = vunpack.c.h.b16 %v425
        %v795 = vunpack.c.l.b16 %v426
        %v796 = vunpack.c.h.b16 %v426
        %v797 = vunpack.c.l.b16 %v427
        %v798 = vunpack.c.h.b16 %v427
        %v799 = vunpack.c.l.b16 %v428
        %v800 = vunpack.c.h.b16 %v428
        %v801 = vunpack.c.l.b16 %v429
        %v802 = vunpack.c.h.b16 %v429
        %v803 = vunpack.c.l.b16 %v430
        %v804 = vunpack.c.h.b16 %v430
        %v805 = vunpack.c.l.b16 %v431
        %v806 = vunpack.c.h.b16 %v431
        %v807 = vunpack.c.l.b16 %v432
        %v808 = vunpack.c.h.b16 %v432
        %v809 = vunpack.c.l.b16 %v433
        %v810 = vunpack.c.h.b16 %v433
        %v811 = vunpack.c.l.b16 %v434
        %v812 = vunpack.c.h.b16 %v434
        %v813 = vunpack.c.l.b16 %v435
        %v814 = vunpack.c.h.b16 %v435
        %v815 = vunpack.c.l.b16 %v436
        %v816 = vunpack.c.h.b16 %v436
        %v817 = vunpack.c.l.b16 %v437
        %v818 = vunpack.c.h.b16 %v437
        %v819 = vunpack.c.l.b16 %v438
        %v820 = vunpack.c.h.b16 %v438
        %v821 = vunpack.c.l.b16 %v439
        %v822 = vunpack.c.h.b16 %v439
        %v823 = vunpack.c.l.b16 %v440
        %v824 = vunpack.c.h.b16 %v440
        %v825 = vunpack.c.l.b16 %v441
        %v826 = vunpack.c.h.b16 %v441
        %v827 = vunpack.c.l.b16 %v442
        %v828 = vunpack.c.h.b16 %v442
        %v829 = vunpack.c.l.b16 %v443
        %v830 = vunpack.c.h.b16 %v443
        %v831 = vunpack.c.l.b16 %v444
        %v832 = vunpack.c.h.b16 %v444
        %v833 = vunpack.c.l.b16 %v445
        %v834 = vunpack.c.h.b16 %v445
        %v835 = vunpack.c.l.b16 %v446
        %v836 = vunpack.c.h.b16 %v446
        %v837 = vunpack.c.l.b16 %v447
        %v838 = vunpack.c.h.b16 %v447
        %v839 = vunpack.c.l.b16 %v448
        %v840 = vunpack.c.h.b16 %v448
        %v841 = vunpack.c.l.b16 %v449
        %v842 = vunpack.c.h.b16 %v449
        %v843 = vunpack.c.l.b16 %v450
        %v844 = vunpack.c.h.b16 %v450
        %v845 = vunpack.c.l.b16 %v451
        %v846 = vunpack.c.h.b16 %v451
        %v847 = vunpack.c.l.b16 %v452
        %v848 = vunpack.c.h.b16 %v452
        %v849 = vunpack.c.l.b16 %v453
        %v850 = vunpack.c.h.b16 %v453
        %v851 = vunpack.c.l.b16 %v454
        %v852 = vunpack.c.h.b16 %v454
        %v853 = vunpack.c.l.b16 %v455
        %v854 = vunpack.c.h.b16 %v455
        %v855 = vunpack.c.l.b16 %v456
        %v856 = vunpack.c.h.b16 %v456
        %v857 = vunpack.c.l.b16 %v457
        %v858 = vunpack.c.h.b16 %v457
        %v859 = vunpack.c.l.b16 %v458
        %v860 = vunpack.c.h.b16 %v458
        %v861 = vunpack.c.l.b16 %v459
        %v862 = vunpack.c.h.b16 %v459
        %v863 = vunpack.c.l.b16 %v460
        %v864 = vunpack.c.h.b16 %v460
        %v865 = vunpack.c.l.b16 %v461
        %v866 = vunpack.c.h.b16 %v461
        %v867 = vunpack.c.l.b16 %v462
        %v868 = vunpack.c.h.b16 %v462
        %v869 = vunpack.c.l.b16 %v463
        %v870 = vunpack.c.h.b16 %v463
        %v871 = vunpack.c.l.b16 %v464
        %v872 = vunpack.c.h.b16 %v464
        %v873 = vunpack.c.l.b16 %v465
        %v874 = vunpack.c.h.b16 %v465
        %v875 = vunpack.c.l.b16 %v466
        %v876 = vunpack.c.h.b16 %v466
        %v877 = vunpack.c.l.b16 %v467
        %v878 = vunpack.c.h.b16 %v467
        %v879 = vunpack.c.l.b16 %v468
        %v880 = vunpack.c.h.b16 %v468
        %v881 = vunpack.c.l.b16 %v469
        %v882 = vunpack.c.h.b16 %v469
        %v883 = vunpack.c.l.b16 %v470
        %v884 = vunpack.c.h.b16 %v470
        %v885 = vunpack.c.l.b16 %v471
        %v886 = vunpack.c.h.b16 %v471
        %v887 = vunpack.c.l.b16 %v472
        %v888 = vunpack.c.h.b16 %v472
        %v889 = vunpack.c.l.b16 %v473
        %v890 = vunpack.c.h.b16 %v473
        %v891 = vunpack.c.l.b16 %v474
        %v892 = vunpack.c.h.b16 %v474
        %v893 = vunpack.c.l.b16 %v475
        %v894 = vunpack.c.h.b16 %v475
        %v895 = vunpack.c.l.b16 %v476
        %v896 = vunpack.c.h.b16 %v476
        %v897 = vunpack.c.l.b16 %v477
        %v898 = vunpack.c.h.b16 %v477
        %v899 = vunpack.c.l.b16 %v478
        %v900 = vunpack.c.h.b16 %v478
        %v901 = vunpack.c.l.b16 %v479
        %v902 = vunpack.c.h.b16 %v479
        %v903 = vunpack.c.l.b16 %v480
        %v904 = vunpack.c.h.b16 %v480
        %v905 = vunpack.c.l.b16 %v481
        %v906 = vunpack.c.h.b16 %v481
        %v907 = vunpack.c.l.b16 %v482
        %v908 = vunpack.c.h.b16 %v482
        %v909 = vunpack.c.l.b16 %v483
        %v910 = vunpack.c.h.b16 %v483
        %v911 = vunpack.c.l.b16 %v484
        %v912 = vunpack.c.h.b16 %v484
        %v913 = vunpack.c.l.b16 %v485
        %v914 = vunpack.c.h.b16 %v485
        %v915 = vunpack.c.l.b16 %v486
        %v916 = vunpack.c.h.b16 %v486
        %v917 = vunpack.c.l.b16 %v487
        %v918 = vunpack.c.h.b16 %v487
        %v919 = vunpack.c.l.b16 %v488
        %v920 = vunpack.c.h.b16 %v488
        %v921 = vunpack.c.l.b16 %v489
        %v922 = vunpack.c.h.b16 %v489
        %v923 = vunpack.c.l.b16 %v490
        %v924 = vunpack.c.h.b16 %v490
        %v925 = vunpack.c.l.b16 %v491
        %v926 = vunpack.c.h.b16 %v491
        %v927 = vunpack.c.l.b16 %v492
        %v928 = vunpack.c.h.b16 %v492
        %v929 = vunpack.c.l.b16 %v493
        %v930 = vunpack.c.h.b16 %v493
        %v931 = vunpack.c.l.b16 %v494
        %v932 = vunpack.c.h.b16 %v494
        %v933 = vunpack.c.l.b16 %v495
        %v934 = vunpack.c.h.b16 %v495
        %v935 = vunpack.c.l.b16 %v496
        %v936 = vunpack.c.h.b16 %v496
        %v937 = vunpack.c.l.b16 %v497
        %v938 = vunpack.c.h.b16 %v497
        %v939 = vunpack.c.l.b16 %v498
        %v940 = vunpack.c.h.b16 %v498
        %v941 = vunpack.c.l.b16 %v499
        %v942 = vunpack.c.h.b16 %v499
        %v943 = vunpack.c.l.b16 %v500
        %v944 = vunpack.c.h.b16 %v500
        %v945 = vunpack.c.l.b16 %v501
        %v946 = vunpack.c.h.b16 %v501
        %v947 = vunpack.c.l.b16 %v502
        %v948 = vunpack.c.h.b16 %v502
        %v949 = vunpack.c.l.b16 %v503
        %v950 = vunpack.c.h.b16 %v503
        %v951 = vunpack.c.l.b16 %v504
        %v952 = vunpack.c.h.b16 %v504
        %v953 = vpack.c.b16 %v767, %v761
        %v954 = vpack.c.b16 %v768, %v762
        %v955 = vpack.c.b16 %v769, %v763
        %v956 = vpack.c.b16 %v770, %v764
        %v957 = vpack.c.b16 %v771, %v765
        %v958 = vpack.c.b16 %v772, %v766
        %v959 = vpack.c.b16 %v779, %v773
        %v960 = vpack.c.b16 %v780, %v774
        %v961 = vpack.c.b16 %v781, %v775
        %v962 = vpack.c.b16 %v782, %v776
        %v963 = vpack.c.b16 %v783, %v777
        %v964 = vpack.c.b16 %v784, %v778
        %v965 = vpack.c.b16 %v791, %v785
        %v966 = vpack.c.b16 %v792, %v786
        %v967 = vpack.c.b16 %v793, %v787
        %v968 = vpack.c.b16 %v794, %v788
        %v969 = vpack.c.b16 %v795, %v789
        %v970 = vpack.c.b16 %v796, %v790
        %v971 = vpack.c.b16 %v803, %v797
        %v972 = vpack.c.b16 %v804, %v798
        %v973 = vpack.c.b16 %v805, %v799
        %v974 = vpack.c.b16 %v806, %v800
        %v975 = vpack.c.b16 %v807, %v801
        %v976 = vpack.c.b16 %v808, %v802
        %v977 = vpack.c.b16 %v815, %v809
        %v978 = vpack.c.b16 %v816, %v810
        %v979 = vpack.c.b16 %v817, %v811
        %v980 = vpack.c.b16 %v818, %v812
        %v981 = vpack.c.b16 %v819, %v813
        %v982 = vpack.c.b16 %v820, %v814
        %v983 = vpack.c.b16 %v827, %v821
        %v984 = vpack.c.b16 %v828, %v822
        %v985 = vpack.c.b16 %v829, %v823
        %v986 = vpack.c.b16 %v830, %v824
        %v987 = vpack.c.b16 %v831, %v825
        %v988 = vpack.c.b16 %v832, %v826
        %v989 = vpack.c.b16 %v839, %v833
        %v990 = vpack.c.b16 %v840, %v834
        %v991 = vpack.c.b16 %v841, %v835
        %v992 = vpack.c.b16 %v842, %v836
        %v993 = vpack.c.b16 %v843, %v837
        %v994 = vpack.c.b16 %v844, %v838
        %v995 = vpack.c.b16 %v851, %v845
        %v996 = vpack.c.b16 %v852, %v846
        %v997 = vpack.c.b16 %v853, %v847
        %v998 = vpack.c.b16 %v854, %v848
        %v999 = vpack.c.b16 %v855, %v849
        %v1000 = vpack.c.b16 %v856, %v850
        %v1001 = vpack.c.b16 %v863, %v857
        %v1002 = vpack.c.b16 %v864, %v858
        %v1003 = vpack.c.b16 %v865, %v859
        %v1004 = vpack.c.b16 %v866, %v860
        %v1005 = vpack.c.b16 %v867, %v861
        %v1006 = vpack.c.b16 %v868, %v862
        %v1007 = vpack.c.b16 %v875, %v869
        %v1008 = vpack.c.b16 %v876, %v870
        %v1009 = vpack.c.b16 %v877, %v871
        %v1010 = vpack.c.b16 %v878, %v872
        %v1011 = vpack.c.b16 %v879, %v873
        %v1012 = vpack.c.b16 %v880, %v874
        %v1013 = vpack.c.b16 %v887, %v881
        %v1014 = vpack.c.b16 %v888, %v882
        %v1015 = vpack.c.b16 %v889, %v883
        %v1016 = vpack.c.b16 %v890, %v884
        %v1017 = vpack.c.b16 %v891, %v885
        %v1018 = vpack.c.b16 %v892, %v886
        %v1019 = vpack.c.b16 %v899, %v893
        %v1020 = vpack.c.b16 %v900, %v894
        %v1021 = vpack.c.b16 %v901, %v895
        %v1022 = vpack.c.b16 %v902, %v896
        %v1023 = vpack.c.b16 %v903, %v897
        %v1024 = vpack.c.b16 %v904, %v898
        %v1025 = vpack.c.b16 %v911, %v905
        %v1026 = vpack.c.b16 %v912, %v906
        %v1027 = vpack.c.b16 %v913, %v907
        %v1028 = vpack.c.b16 %v914, %v908
        %v1029 = vpack.c.b16 %v915, %v909
        %v1030 = vpack.c.b16 %v916, %v910
        %v1031 = vpack.c.b16 %v923, %v917
        %v1032 = vpack.c.b16 %v924, %v918
        %v1033 = vpack.c.b16 %v925, %v919
        %v1034 = vpack.c.b16 %v926, %v920
        %v1035 = vpack.c.b16 %v927, %v921
        %v1036 = vpack.c.b16 %v928, %v922
        %v1037 = vpack.c.b16 %v935, %v929
        %v1038 = vpack.c.b16 %v936, %v930
        %v1039 = vpack.c.b16 %v937, %v931
        %v1040 = vpack.c.b16 %v938, %v932
        %v1041 = vpack.c.b16 %v939, %v933
        %v1042 = vpack.c.b16 %v940, %v934
        %v1043 = vpack.c.b16 %v947, %v941
        %v1044 = vpack.c.b16 %v948, %v942
        %v1045 = vpack.c.b16 %v949, %v943
        %v1046 = vpack.c.b16 %v950, %v944
        %v1047 = vpack.c.b16 %v951, %v945
        %v1048 = vpack.c.b16 %v952, %v946
        %1145 = vmatpush.bf16.msra.mxu0 %v995
        %1146 = vmatpush.bf16.msra.mxu0 %v989
        %1147 = vmatpush.bf16.msra.mxu0 %v983
        %1148 = vmatpush.bf16.msra.mxu0 %v977
        %1149 = vmatpush.bf16.msra.mxu0 %v971
        %1150 = vmatpush.bf16.msra.mxu0 %v965
        %1151 = vmatpush.bf16.msra.mxu0 %v959
        %1152 = vmatpush.bf16.msra.mxu0 %v953
        %1153 = vmatmul.bf16.gmra.mxu0 %v601
        %v1154 = vpop.f32.mrf.mxu0
        %v1155 = vadd.f32 0.0, %v1154
        %v1156 = vpop.f32.mrf.mxu0
        %v1157 = vadd.f32 0.0, %v1156
        %1158 = vmatmul.bf16.gmra.mxu0 %v603
        %v1159 = vpop.f32.mrf.mxu0
        %v1160 = vadd.f32 0.0, %v1159
        %v1161 = vpop.f32.mrf.mxu0
        %v1162 = vadd.f32 0.0, %v1161
        %1163 = vmatmul.bf16.gmra.mxu0 %v605
        %v1164 = vpop.f32.mrf.mxu0
        %v1165 = vadd.f32 0.0, %v1164
        %v1166 = vpop.f32.mrf.mxu0
        %v1167 = vadd.f32 0.0, %v1166
        %1168 = vmatmul.bf16.gmra.mxu0 %v607
        %v1169 = vpop.f32.mrf.mxu0
        %v1170 = vadd.f32 0.0, %v1169
        %v1171 = vpop.f32.mrf.mxu0
        %v1172 = vadd.f32 0.0, %v1171
        %1173 = vmatmul.bf16.gmra.mxu0 %v609
        %v1174 = vpop.f32.mrf.mxu0
        %v1175 = vadd.f32 0.0, %v1174
        %v1176 = vpop.f32.mrf.mxu0
        %v1177 = vadd.f32 0.0, %v1176
        %1178 = vmatmul.bf16.gmra.mxu0 %v611
        %v1179 = vpop.f32.mrf.mxu0
        %v1180 = vadd.f32 0.0, %v1179
        %v1181 = vpop.f32.mrf.mxu0
        %v1182 = vadd.f32 0.0, %v1181
        %1183 = vmatmul.bf16.gmra.mxu0 %v613
        %v1184 = vpop.f32.mrf.mxu0
        %v1185 = vadd.f32 0.0, %v1184
        %v1186 = vpop.f32.mrf.mxu0
        %v1187 = vadd.f32 0.0, %v1186
        %1188 = vmatmul.bf16.gmra.mxu0 %v615
        %v1189 = vpop.f32.mrf.mxu0
        %v1190 = vadd.f32 0.0, %v1189
        %v1191 = vpop.f32.mrf.mxu0
        %v1192 = vadd.f32 0.0, %v1191
        %1193 = vmatmul.bf16.gmra.mxu0 %v617
        %v1194 = vpop.f32.mrf.mxu0
        %v1195 = vadd.f32 0.0, %v1194
        %v1196 = vpop.f32.mrf.mxu0
        %v1197 = vadd.f32 0.0, %v1196
        %1198 = vmatmul.bf16.gmra.mxu0 %v619
        %v1199 = vpop.f32.mrf.mxu0
        %v1200 = vadd.f32 0.0, %v1199
        %v1201 = vpop.f32.mrf.mxu0
        %v1202 = vadd.f32 0.0, %v1201
        %1203 = vmatmul.bf16.gmra.mxu0 %v621
        %v1204 = vpop.f32.mrf.mxu0
        %v1205 = vadd.f32 0.0, %v1204
        %v1206 = vpop.f32.mrf.mxu0
        %v1207 = vadd.f32 0.0, %v1206
        %1208 = vmatmul.bf16.gmra.mxu0 %v623
        %v1209 = vpop.f32.mrf.mxu0
        %v1210 = vadd.f32 0.0, %v1209
        %v1211 = vpop.f32.mrf.mxu0
        %v1212 = vadd.f32 0.0, %v1211
        %1213 = vmatmul.bf16.gmra.mxu0 %v625
        %v1214 = vpop.f32.mrf.mxu0
        %v1215 = vadd.f32 0.0, %v1214
        %v1216 = vpop.f32.mrf.mxu0
        %v1217 = vadd.f32 0.0, %v1216
        %1218 = vmatmul.bf16.gmra.mxu0 %v627
        %v1219 = vpop.f32.mrf.mxu0
        %v1220 = vadd.f32 0.0, %v1219
        %v1221 = vpop.f32.mrf.mxu0
        %v1222 = vadd.f32 0.0, %v1221
        %1223 = vmatmul.bf16.gmra.mxu0 %v629
        %v1224 = vpop.f32.mrf.mxu0
        %v1225 = vadd.f32 0.0, %v1224
        %v1226 = vpop.f32.mrf.mxu0
        %v1227 = vadd.f32 0.0, %v1226
        %1228 = vmatmul.bf16.gmra.mxu0 %v631
        %v1229 = vpop.f32.mrf.mxu0
        %v1230 = vadd.f32 0.0, %v1229
        %v1231 = vpop.f32.mrf.mxu0
        %v1232 = vadd.f32 0.0, %v1231
        %1233 = vdwg.mxu0
        %1234 = vmatpush.bf16.msra.mxu0 %v1043
        %1235 = vmatpush.bf16.msra.mxu0 %v1037
        %1236 = vmatpush.bf16.msra.mxu0 %v1031
        %1237 = vmatpush.bf16.msra.mxu0 %v1025
        %1238 = vmatpush.bf16.msra.mxu0 %v1019
        %1239 = vmatpush.bf16.msra.mxu0 %v1013
        %1240 = vmatpush.bf16.msra.mxu0 %v1007
        %1241 = vmatpush.bf16.msra.mxu0 %v1001
        %1242 = vmatmul.bf16.gmra.mxu0 %v602
        %v1243 = vpop.f32.mrf.mxu0
        %v1244 = vadd.f32 %v1155, %v1243
        %v1245 = vpop.f32.mrf.mxu0
        %v1246 = vadd.f32 %v1157, %v1245
        %1247 = vmatmul.bf16.gmra.mxu0 %v604
        %v1248 = vpop.f32.mrf.mxu0
        %v1249 = vadd.f32 %v1160, %v1248
        %v1250 = vpop.f32.mrf.mxu0
        %v1251 = vadd.f32 %v1162, %v1250
        %1252 = vmatmul.bf16.gmra.mxu0 %v606
        %v1253 = vpop.f32.mrf.mxu0
        %v1254 = vadd.f32 %v1165, %v1253
        %v1255 = vpop.f32.mrf.mxu0
        %v1256 = vadd.f32 %v1167, %v1255
        %1257 = vmatmul.bf16.gmra.mxu0 %v608
        %v1258 = vpop.f32.mrf.mxu0
        %v1259 = vadd.f32 %v1170, %v1258
        %v1260 = vpop.f32.mrf.mxu0
        %v1261 = vadd.f32 %v1172, %v1260
        %1262 = vmatmul.bf16.gmra.mxu0 %v610
        %v1263 = vpop.f32.mrf.mxu0
        %v1264 = vadd.f32 %v1175, %v1263
        %v1265 = vpop.f32.mrf.mxu0
        %v1266 = vadd.f32 %v1177, %v1265
        %1267 = vmatmul.bf16.gmra.mxu0 %v612
        %v1268 = vpop.f32.mrf.mxu0
        %v1269 = vadd.f32 %v1180, %v1268
        %v1270 = vpop.f32.mrf.mxu0
        %v1271 = vadd.f32 %v1182, %v1270
        %1272 = vmatmul.bf16.gmra.mxu0 %v614
        %v1273 = vpop.f32.mrf.mxu0
        %v1274 = vadd.f32 %v1185, %v1273
        %v1275 = vpop.f32.mrf.mxu0
        %v1276 = vadd.f32 %v1187, %v1275
        %1277 = vmatmul.bf16.gmra.mxu0 %v616
        %v1278 = vpop.f32.mrf.mxu0
        %v1279 = vadd.f32 %v1190, %v1278
        %v1280 = vpop.f32.mrf.mxu0
        %v1281 = vadd.f32 %v1192, %v1280
        %1282 = vmatmul.bf16.gmra.mxu0 %v618
        %v1283 = vpop.f32.mrf.mxu0
        %v1284 = vadd.f32 %v1195, %v1283
        %v1285 = vpop.f32.mrf.mxu0
        %v1286 = vadd.f32 %v1197, %v1285
        %1287 = vmatmul.bf16.gmra.mxu0 %v620
        %v1288 = vpop.f32.mrf.mxu0
        %v1289 = vadd.f32 %v1200, %v1288
        %v1290 = vpop.f32.mrf.mxu0
        %v1291 = vadd.f32 %v1202, %v1290
        %1292 = vmatmul.bf16.gmra.mxu0 %v622
        %v1293 = vpop.f32.mrf.mxu0
        %v1294 = vadd.f32 %v1205, %v1293
        %v1295 = vpop.f32.mrf.mxu0
        %v1296 = vadd.f32 %v1207, %v1295
        %1297 = vmatmul.bf16.gmra.mxu0 %v624
        %v1298 = vpop.f32.mrf.mxu0
        %v1299 = vadd.f32 %v1210, %v1298
        %v1300 = vpop.f32.mrf.mxu0
        %v1301 = vadd.f32 %v1212, %v1300
        %1302 = vmatmul.bf16.gmra.mxu0 %v626
        %v1303 = vpop.f32.mrf.mxu0
        %v1304 = vadd.f32 %v1215, %v1303
        %v1305 = vpop.f32.mrf.mxu0
        %v1306 = vadd.f32 %v1217, %v1305
        %1307 = vmatmul.bf16.gmra.mxu0 %v628
        %v1308 = vpop.f32.mrf.mxu0
        %v1309 = vadd.f32 %v1220, %v1308
        %v1310 = vpop.f32.mrf.mxu0
        %v1311 = vadd.f32 %v1222, %v1310
        %1312 = vmatmul.bf16.gmra.mxu0 %v630
        %v1313 = vpop.f32.mrf.mxu0
        %v1314 = vadd.f32 %v1225, %v1313
        %v1315 = vpop.f32.mrf.mxu0
        %v1316 = vadd.f32 %v1227, %v1315
        %1317 = vmatmul.bf16.gmra.mxu0 %v632
        %v1318 = vpop.f32.mrf.mxu0
        %v1319 = vadd.f32 %v1230, %v1318
        %v1320 = vpop.f32.mrf.mxu0
        %v1321 = vadd.f32 %v1232, %v1320
        %1322 = vdwg.mxu0
        %1323 = vmatpush.bf16.msra.mxu0 %v996
        %1324 = vmatpush.bf16.msra.mxu0 %v990
        %1325 = vmatpush.bf16.msra.mxu0 %v984
        %1326 = vmatpush.bf16.msra.mxu0 %v978
        %1327 = vmatpush.bf16.msra.mxu0 %v972
        %1328 = vmatpush.bf16.msra.mxu0 %v966
        %1329 = vmatpush.bf16.msra.mxu0 %v960
        %1330 = vmatpush.bf16.msra.mxu0 %v954
        %1331 = vmatmul.bf16.gmra.mxu0 %v601
        %v1332 = vpop.f32.mrf.mxu0
        %v1333 = vadd.f32 0.0, %v1332
        %v1334 = vpop.f32.mrf.mxu0
        %v1335 = vadd.f32 0.0, %v1334
        %1336 = vmatmul.bf16.gmra.mxu0 %v603
        %v1337 = vpop.f32.mrf.mxu0
        %v1338 = vadd.f32 0.0, %v1337
        %v1339 = vpop.f32.mrf.mxu0
        %v1340 = vadd.f32 0.0, %v1339
        %1341 = vmatmul.bf16.gmra.mxu0 %v605
        %v1342 = vpop.f32.mrf.mxu0
        %v1343 = vadd.f32 0.0, %v1342
        %v1344 = vpop.f32.mrf.mxu0
        %v1345 = vadd.f32 0.0, %v1344
        %1346 = vmatmul.bf16.gmra.mxu0 %v607
        %v1347 = vpop.f32.mrf.mxu0
        %v1348 = vadd.f32 0.0, %v1347
        %v1349 = vpop.f32.mrf.mxu0
        %v1350 = vadd.f32 0.0, %v1349
        %1351 = vmatmul.bf16.gmra.mxu0 %v609
        %v1352 = vpop.f32.mrf.mxu0
        %v1353 = vadd.f32 0.0, %v1352
        %v1354 = vpop.f32.mrf.mxu0
        %v1355 = vadd.f32 0.0, %v1354
        %1356 = vmatmul.bf16.gmra.mxu0 %v611
        %v1357 = vpop.f32.mrf.mxu0
        %v1358 = vadd.f32 0.0, %v1357
        %v1359 = vpop.f32.mrf.mxu0
        %v1360 = vadd.f32 0.0, %v1359
        %1361 = vmatmul.bf16.gmra.mxu0 %v613
        %v1362 = vpop.f32.mrf.mxu0
        %v1363 = vadd.f32 0.0, %v1362
        %v1364 = vpop.f32.mrf.mxu0
        %v1365 = vadd.f32 0.0, %v1364
        %1366 = vmatmul.bf16.gmra.mxu0 %v615
        %v1367 = vpop.f32.mrf.mxu0
        %v1368 = vadd.f32 0.0, %v1367
        %v1369 = vpop.f32.mrf.mxu0
        %v1370 = vadd.f32 0.0, %v1369
        %1371 = vmatmul.bf16.gmra.mxu0 %v617
        %v1372 = vpop.f32.mrf.mxu0
        %v1373 = vadd.f32 0.0, %v1372
        %v1374 = vpop.f32.mrf.mxu0
        %v1375 = vadd.f32 0.0, %v1374
        %1376 = vmatmul.bf16.gmra.mxu0 %v619
        %v1377 = vpop.f32.mrf.mxu0
        %v1378 = vadd.f32 0.0, %v1377
        %v1379 = vpop.f32.mrf.mxu0
        %v1380 = vadd.f32 0.0, %v1379
        %1381 = vmatmul.bf16.gmra.mxu0 %v621
        %v1382 = vpop.f32.mrf.mxu0
        %v1383 = vadd.f32 0.0, %v1382
        %v1384 = vpop.f32.mrf.mxu0
        %v1385 = vadd.f32 0.0, %v1384
        %1386 = vmatmul.bf16.gmra.mxu0 %v623
        %v1387 = vpop.f32.mrf.mxu0
        %v1388 = vadd.f32 0.0, %v1387
        %v1389 = vpop.f32.mrf.mxu0
        %v1390 = vadd.f32 0.0, %v1389
        %1391 = vmatmul.bf16.gmra.mxu0 %v625
        %v1392 = vpop.f32.mrf.mxu0
        %v1393 = vadd.f32 0.0, %v1392
        %v1394 = vpop.f32.mrf.mxu0
        %v1395 = vadd.f32 0.0, %v1394
        %1396 = vmatmul.bf16.gmra.mxu0 %v627
        %v1397 = vpop.f32.mrf.mxu0
        %v1398 = vadd.f32 0.0, %v1397
        %v1399 = vpop.f32.mrf.mxu0
        %v1400 = vadd.f32 0.0, %v1399
        %1401 = vmatmul.bf16.gmra.mxu0 %v629
        %v1402 = vpop.f32.mrf.mxu0
        %v1403 = vadd.f32 0.0, %v1402
        %v1404 = vpop.f32.mrf.mxu0
        %v1405 = vadd.f32 0.0, %v1404
        %1406 = vmatmul.bf16.gmra.mxu0 %v631
        %v1407 = vpop.f32.mrf.mxu0
        %v1408 = vadd.f32 0.0, %v1407
        %v1409 = vpop.f32.mrf.mxu0
        %v1410 = vadd.f32 0.0, %v1409
        %1411 = vdwg.mxu0
        %1412 = vmatpush.bf16.msra.mxu0 %v1044
        %1413 = vmatpush.bf16.msra.mxu0 %v1038
        %1414 = vmatpush.bf16.msra.mxu0 %v1032
        %1415 = vmatpush.bf16.msra.mxu0 %v1026
        %1416 = vmatpush.bf16.msra.mxu0 %v1020
        %1417 = vmatpush.bf16.msra.mxu0 %v1014
        %1418 = vmatpush.bf16.msra.mxu0 %v1008
        %1419 = vmatpush.bf16.msra.mxu0 %v1002
        %1420 = vmatmul.bf16.gmra.mxu0 %v602
        %v1421 = vpop.f32.mrf.mxu0
        %v1422 = vadd.f32 %v1333, %v1421
        %v1423 = vpop.f32.mrf.mxu0
        %v1424 = vadd.f32 %v1335, %v1423
        %1425 = vmatmul.bf16.gmra.mxu0 %v604
        %v1426 = vpop.f32.mrf.mxu0
        %v1427 = vadd.f32 %v1338, %v1426
        %v1428 = vpop.f32.mrf.mxu0
        %v1429 = vadd.f32 %v1340, %v1428
        %1430 = vmatmul.bf16.gmra.mxu0 %v606
        %v1431 = vpop.f32.mrf.mxu0
        %v1432 = vadd.f32 %v1343, %v1431
        %v1433 = vpop.f32.mrf.mxu0
        %v1434 = vadd.f32 %v1345, %v1433
        %1435 = vmatmul.bf16.gmra.mxu0 %v608
        %v1436 = vpop.f32.mrf.mxu0
        %v1437 = vadd.f32 %v1348, %v1436
        %v1438 = vpop.f32.mrf.mxu0
        %v1439 = vadd.f32 %v1350, %v1438
        %1440 = vmatmul.bf16.gmra.mxu0 %v610
        %v1441 = vpop.f32.mrf.mxu0
        %v1442 = vadd.f32 %v1353, %v1441
        %v1443 = vpop.f32.mrf.mxu0
        %v1444 = vadd.f32 %v1355, %v1443
        %1445 = vmatmul.bf16.gmra.mxu0 %v612
        %v1446 = vpop.f32.mrf.mxu0
        %v1447 = vadd.f32 %v1358, %v1446
        %v1448 = vpop.f32.mrf.mxu0
        %v1449 = vadd.f32 %v1360, %v1448
        %1450 = vmatmul.bf16.gmra.mxu0 %v614
        %v1451 = vpop.f32.mrf.mxu0
        %v1452 = vadd.f32 %v1363, %v1451
        %v1453 = vpop.f32.mrf.mxu0
        %v1454 = vadd.f32 %v1365, %v1453
        %1455 = vmatmul.bf16.gmra.mxu0 %v616
        %v1456 = vpop.f32.mrf.mxu0
        %v1457 = vadd.f32 %v1368, %v1456
        %v1458 = vpop.f32.mrf.mxu0
        %v1459 = vadd.f32 %v1370, %v1458
        %1460 = vmatmul.bf16.gmra.mxu0 %v618
        %v1461 = vpop.f32.mrf.mxu0
        %v1462 = vadd.f32 %v1373, %v1461
        %v1463 = vpop.f32.mrf.mxu0
        %v1464 = vadd.f32 %v1375, %v1463
        %1465 = vmatmul.bf16.gmra.mxu0 %v620
        %v1466 = vpop.f32.mrf.mxu0
        %v1467 = vadd.f32 %v1378, %v1466
        %v1468 = vpop.f32.mrf.mxu0
        %v1469 = vadd.f32 %v1380, %v1468
        %1470 = vmatmul.bf16.gmra.mxu0 %v622
        %v1471 = vpop.f32.mrf.mxu0
        %v1472 = vadd.f32 %v1383, %v1471
        %v1473 = vpop.f32.mrf.mxu0
        %v1474 = vadd.f32 %v1385, %v1473
        %1475 = vmatmul.bf16.gmra.mxu0 %v624
        %v1476 = vpop.f32.mrf.mxu0
        %v1477 = vadd.f32 %v1388, %v1476
        %v1478 = vpop.f32.mrf.mxu0
        %v1479 = vadd.f32 %v1390, %v1478
        %1480 = vmatmul.bf16.gmra.mxu0 %v626
        %v1481 = vpop.f32.mrf.mxu0
        %v1482 = vadd.f32 %v1393, %v1481
        %v1483 = vpop.f32.mrf.mxu0
        %v1484 = vadd.f32 %v1395, %v1483
        %1485 = vmatmul.bf16.gmra.mxu0 %v628
        %v1486 = vpop.f32.mrf.mxu0
        %v1487 = vadd.f32 %v1398, %v1486
        %v1488 = vpop.f32.mrf.mxu0
        %v1489 = vadd.f32 %v1400, %v1488
        %1490 = vmatmul.bf16.gmra.mxu0 %v630
        %v1491 = vpop.f32.mrf.mxu0
        %v1492 = vadd.f32 %v1403, %v1491
        %v1493 = vpop.f32.mrf.mxu0
        %v1494 = vadd.f32 %v1405, %v1493
        %1495 = vmatmul.bf16.gmra.mxu0 %v632
        %v1496 = vpop.f32.mrf.mxu0
        %v1497 = vadd.f32 %v1408, %v1496
        %v1498 = vpop.f32.mrf.mxu0
        %v1499 = vadd.f32 %v1410, %v1498
        %1500 = vdwg.mxu0
        %1501 = vmatpush.bf16.msra.mxu0 %v997
        %1502 = vmatpush.bf16.msra.mxu0 %v991
        %1503 = vmatpush.bf16.msra.mxu0 %v985
        %1504 = vmatpush.bf16.msra.mxu0 %v979
        %1505 = vmatpush.bf16.msra.mxu0 %v973
        %1506 = vmatpush.bf16.msra.mxu0 %v967
        %1507 = vmatpush.bf16.msra.mxu0 %v961
        %1508 = vmatpush.bf16.msra.mxu0 %v955
        %1509 = vmatmul.bf16.gmra.mxu0 %v601
        %v1510 = vpop.f32.mrf.mxu0
        %v1511 = vadd.f32 0.0, %v1510
        %v1512 = vpop.f32.mrf.mxu0
        %v1513 = vadd.f32 0.0, %v1512
        %1514 = vmatmul.bf16.gmra.mxu0 %v603
        %v1515 = vpop.f32.mrf.mxu0
        %v1516 = vadd.f32 0.0, %v1515
        %v1517 = vpop.f32.mrf.mxu0
        %v1518 = vadd.f32 0.0, %v1517
        %1519 = vmatmul.bf16.gmra.mxu0 %v605
        %v1520 = vpop.f32.mrf.mxu0
        %v1521 = vadd.f32 0.0, %v1520
        %v1522 = vpop.f32.mrf.mxu0
        %v1523 = vadd.f32 0.0, %v1522
        %1524 = vmatmul.bf16.gmra.mxu0 %v607
        %v1525 = vpop.f32.mrf.mxu0
        %v1526 = vadd.f32 0.0, %v1525
        %v1527 = vpop.f32.mrf.mxu0
        %v1528 = vadd.f32 0.0, %v1527
        %1529 = vmatmul.bf16.gmra.mxu0 %v609
        %v1530 = vpop.f32.mrf.mxu0
        %v1531 = vadd.f32 0.0, %v1530
        %v1532 = vpop.f32.mrf.mxu0
        %v1533 = vadd.f32 0.0, %v1532
        %1534 = vmatmul.bf16.gmra.mxu0 %v611
        %v1535 = vpop.f32.mrf.mxu0
        %v1536 = vadd.f32 0.0, %v1535
        %v1537 = vpop.f32.mrf.mxu0
        %v1538 = vadd.f32 0.0, %v1537
        %1539 = vmatmul.bf16.gmra.mxu0 %v613
        %v1540 = vpop.f32.mrf.mxu0
        %v1541 = vadd.f32 0.0, %v1540
        %v1542 = vpop.f32.mrf.mxu0
        %v1543 = vadd.f32 0.0, %v1542
        %1544 = vmatmul.bf16.gmra.mxu0 %v615
        %v1545 = vpop.f32.mrf.mxu0
        %v1546 = vadd.f32 0.0, %v1545
        %v1547 = vpop.f32.mrf.mxu0
        %v1548 = vadd.f32 0.0, %v1547
        %1549 = vmatmul.bf16.gmra.mxu0 %v617
        %v1550 = vpop.f32.mrf.mxu0
        %v1551 = vadd.f32 0.0, %v1550
        %v1552 = vpop.f32.mrf.mxu0
        %v1553 = vadd.f32 0.0, %v1552
        %1554 = vmatmul.bf16.gmra.mxu0 %v619
        %v1555 = vpop.f32.mrf.mxu0
        %v1556 = vadd.f32 0.0, %v1555
        %v1557 = vpop.f32.mrf.mxu0
        %v1558 = vadd.f32 0.0, %v1557
        %1559 = vmatmul.bf16.gmra.mxu0 %v621
        %v1560 = vpop.f32.mrf.mxu0
        %v1561 = vadd.f32 0.0, %v1560
        %v1562 = vpop.f32.mrf.mxu0
        %v1563 = vadd.f32 0.0, %v1562
        %1564 = vmatmul.bf16.gmra.mxu0 %v623
        %v1565 = vpop.f32.mrf.mxu0
        %v1566 = vadd.f32 0.0, %v1565
        %v1567 = vpop.f32.mrf.mxu0
        %v1568 = vadd.f32 0.0, %v1567
        %1569 = vmatmul.bf16.gmra.mxu0 %v625
        %v1570 = vpop.f32.mrf.mxu0
        %v1571 = vadd.f32 0.0, %v1570
        %v1572 = vpop.f32.mrf.mxu0
        %v1573 = vadd.f32 0.0, %v1572
        %1574 = vmatmul.bf16.gmra.mxu0 %v627
        %v1575 = vpop.f32.mrf.mxu0
        %v1576 = vadd.f32 0.0, %v1575
        %v1577 = vpop.f32.mrf.mxu0
        %v1578 = vadd.f32 0.0, %v1577
        %1579 = vmatmul.bf16.gmra.mxu0 %v629
        %v1580 = vpop.f32.mrf.mxu0
        %v1581 = vadd.f32 0.0, %v1580
        %v1582 = vpop.f32.mrf.mxu0
        %v1583 = vadd.f32 0.0, %v1582
        %1584 = vmatmul.bf16.gmra.mxu0 %v631
        %v1585 = vpop.f32.mrf.mxu0
        %v1586 = vadd.f32 0.0, %v1585
        %v1587 = vpop.f32.mrf.mxu0
        %v1588 = vadd.f32 0.0, %v1587
        %1589 = vdwg.mxu0
        %1590 = vmatpush.bf16.msra.mxu0 %v1045
        %1591 = vmatpush.bf16.msra.mxu0 %v1039
        %1592 = vmatpush.bf16.msra.mxu0 %v1033
        %1593 = vmatpush.bf16.msra.mxu0 %v1027
        %1594 = vmatpush.bf16.msra.mxu0 %v1021
        %1595 = vmatpush.bf16.msra.mxu0 %v1015
        %1596 = vmatpush.bf16.msra.mxu0 %v1009
        %1597 = vmatpush.bf16.msra.mxu0 %v1003
        %1598 = vmatmul.bf16.gmra.mxu0 %v602
        %v1599 = vpop.f32.mrf.mxu0
        %v1600 = vadd.f32 %v1511, %v1599
        %v1601 = vpop.f32.mrf.mxu0
        %v1602 = vadd.f32 %v1513, %v1601
        %1603 = vmatmul.bf16.gmra.mxu0 %v604
        %v1604 = vpop.f32.mrf.mxu0
        %v1605 = vadd.f32 %v1516, %v1604
        %v1606 = vpop.f32.mrf.mxu0
        %v1607 = vadd.f32 %v1518, %v1606
        %1608 = vmatmul.bf16.gmra.mxu0 %v606
        %v1609 = vpop.f32.mrf.mxu0
        %v1610 = vadd.f32 %v1521, %v1609
        %v1611 = vpop.f32.mrf.mxu0
        %v1612 = vadd.f32 %v1523, %v1611
        %1613 = vmatmul.bf16.gmra.mxu0 %v608
        %v1614 = vpop.f32.mrf.mxu0
        %v1615 = vadd.f32 %v1526, %v1614
        %v1616 = vpop.f32.mrf.mxu0
        %v1617 = vadd.f32 %v1528, %v1616
        %1618 = vmatmul.bf16.gmra.mxu0 %v610
        %v1619 = vpop.f32.mrf.mxu0
        %v1620 = vadd.f32 %v1531, %v1619
        %v1621 = vpop.f32.mrf.mxu0
        %v1622 = vadd.f32 %v1533, %v1621
        %1623 = vmatmul.bf16.gmra.mxu0 %v612
        %v1624 = vpop.f32.mrf.mxu0
        %v1625 = vadd.f32 %v1536, %v1624
        %v1626 = vpop.f32.mrf.mxu0
        %v1627 = vadd.f32 %v1538, %v1626
        %1628 = vmatmul.bf16.gmra.mxu0 %v614
        %v1629 = vpop.f32.mrf.mxu0
        %v1630 = vadd.f32 %v1541, %v1629
        %v1631 = vpop.f32.mrf.mxu0
        %v1632 = vadd.f32 %v1543, %v1631
        %1633 = vmatmul.bf16.gmra.mxu0 %v616
        %v1634 = vpop.f32.mrf.mxu0
        %v1635 = vadd.f32 %v1546, %v1634
        %v1636 = vpop.f32.mrf.mxu0
        %v1637 = vadd.f32 %v1548, %v1636
        %1638 = vmatmul.bf16.gmra.mxu0 %v618
        %v1639 = vpop.f32.mrf.mxu0
        %v1640 = vadd.f32 %v1551, %v1639
        %v1641 = vpop.f32.mrf.mxu0
        %v1642 = vadd.f32 %v1553, %v1641
        %1643 = vmatmul.bf16.gmra.mxu0 %v620
        %v1644 = vpop.f32.mrf.mxu0
        %v1645 = vadd.f32 %v1556, %v1644
        %v1646 = vpop.f32.mrf.mxu0
        %v1647 = vadd.f32 %v1558, %v1646
        %1648 = vmatmul.bf16.gmra.mxu0 %v622
        %v1649 = vpop.f32.mrf.mxu0
        %v1650 = vadd.f32 %v1561, %v1649
        %v1651 = vpop.f32.mrf.mxu0
        %v1652 = vadd.f32 %v1563, %v1651
        %1653 = vmatmul.bf16.gmra.mxu0 %v624
        %v1654 = vpop.f32.mrf.mxu0
        %v1655 = vadd.f32 %v1566, %v1654
        %v1656 = vpop.f32.mrf.mxu0
        %v1657 = vadd.f32 %v1568, %v1656
        %1658 = vmatmul.bf16.gmra.mxu0 %v626
        %v1659 = vpop.f32.mrf.mxu0
        %v1660 = vadd.f32 %v1571, %v1659
        %v1661 = vpop.f32.mrf.mxu0
        %v1662 = vadd.f32 %v1573, %v1661
        %1663 = vmatmul.bf16.gmra.mxu0 %v628
        %v1664 = vpop.f32.mrf.mxu0
        %v1665 = vadd.f32 %v1576, %v1664
        %v1666 = vpop.f32.mrf.mxu0
        %v1667 = vadd.f32 %v1578, %v1666
        %1668 = vmatmul.bf16.gmra.mxu0 %v630
        %v1669 = vpop.f32.mrf.mxu0
        %v1670 = vadd.f32 %v1581, %v1669
        %v1671 = vpop.f32.mrf.mxu0
        %v1672 = vadd.f32 %v1583, %v1671
        %1673 = vmatmul.bf16.gmra.mxu0 %v632
        %v1674 = vpop.f32.mrf.mxu0
        %v1675 = vadd.f32 %v1586, %v1674
        %v1676 = vpop.f32.mrf.mxu0
        %v1677 = vadd.f32 %v1588, %v1676
        %1678 = vdwg.mxu0
        %1679 = vmatpush.bf16.msra.mxu0 %v998
        %1680 = vmatpush.bf16.msra.mxu0 %v992
        %1681 = vmatpush.bf16.msra.mxu0 %v986
        %1682 = vmatpush.bf16.msra.mxu0 %v980
        %1683 = vmatpush.bf16.msra.mxu0 %v974
        %1684 = vmatpush.bf16.msra.mxu0 %v968
        %1685 = vmatpush.bf16.msra.mxu0 %v962
        %1686 = vmatpush.bf16.msra.mxu0 %v956
        %1687 = vmatmul.bf16.gmra.mxu0 %v601
        %v1688 = vpop.f32.mrf.mxu0
        %v1689 = vadd.f32 0.0, %v1688
        %v1690 = vpop.f32.mrf.mxu0
        %v1691 = vadd.f32 0.0, %v1690
        %1692 = vmatmul.bf16.gmra.mxu0 %v603
        %v1693 = vpop.f32.mrf.mxu0
        %v1694 = vadd.f32 0.0, %v1693
        %v1695 = vpop.f32.mrf.mxu0
        %v1696 = vadd.f32 0.0, %v1695
        %1697 = vmatmul.bf16.gmra.mxu0 %v605
        %v1698 = vpop.f32.mrf.mxu0
        %v1699 = vadd.f32 0.0, %v1698
        %v1700 = vpop.f32.mrf.mxu0
        %v1701 = vadd.f32 0.0, %v1700
        %1702 = vmatmul.bf16.gmra.mxu0 %v607
        %v1703 = vpop.f32.mrf.mxu0
        %v1704 = vadd.f32 0.0, %v1703
        %v1705 = vpop.f32.mrf.mxu0
        %v1706 = vadd.f32 0.0, %v1705
        %1707 = vmatmul.bf16.gmra.mxu0 %v609
        %v1708 = vpop.f32.mrf.mxu0
        %v1709 = vadd.f32 0.0, %v1708
        %v1710 = vpop.f32.mrf.mxu0
        %v1711 = vadd.f32 0.0, %v1710
        %1712 = vmatmul.bf16.gmra.mxu0 %v611
        %v1713 = vpop.f32.mrf.mxu0
        %v1714 = vadd.f32 0.0, %v1713
        %v1715 = vpop.f32.mrf.mxu0
        %v1716 = vadd.f32 0.0, %v1715
        %1717 = vmatmul.bf16.gmra.mxu0 %v613
        %v1718 = vpop.f32.mrf.mxu0
        %v1719 = vadd.f32 0.0, %v1718
        %v1720 = vpop.f32.mrf.mxu0
        %v1721 = vadd.f32 0.0, %v1720
        %1722 = vmatmul.bf16.gmra.mxu0 %v615
        %v1723 = vpop.f32.mrf.mxu0
        %v1724 = vadd.f32 0.0, %v1723
        %v1725 = vpop.f32.mrf.mxu0
        %v1726 = vadd.f32 0.0, %v1725
        %1727 = vmatmul.bf16.gmra.mxu0 %v617
        %v1728 = vpop.f32.mrf.mxu0
        %v1729 = vadd.f32 0.0, %v1728
        %v1730 = vpop.f32.mrf.mxu0
        %v1731 = vadd.f32 0.0, %v1730
        %1732 = vmatmul.bf16.gmra.mxu0 %v619
        %v1733 = vpop.f32.mrf.mxu0
        %v1734 = vadd.f32 0.0, %v1733
        %v1735 = vpop.f32.mrf.mxu0
        %v1736 = vadd.f32 0.0, %v1735
        %1737 = vmatmul.bf16.gmra.mxu0 %v621
        %v1738 = vpop.f32.mrf.mxu0
        %v1739 = vadd.f32 0.0, %v1738
        %v1740 = vpop.f32.mrf.mxu0
        %v1741 = vadd.f32 0.0, %v1740
        %1742 = vmatmul.bf16.gmra.mxu0 %v623
        %v1743 = vpop.f32.mrf.mxu0
        %v1744 = vadd.f32 0.0, %v1743
        %v1745 = vpop.f32.mrf.mxu0
        %v1746 = vadd.f32 0.0, %v1745
        %1747 = vmatmul.bf16.gmra.mxu0 %v625
        %v1748 = vpop.f32.mrf.mxu0
        %v1749 = vadd.f32 0.0, %v1748
        %v1750 = vpop.f32.mrf.mxu0
        %v1751 = vadd.f32 0.0, %v1750
        %1752 = vmatmul.bf16.gmra.mxu0 %v627
        %v1753 = vpop.f32.mrf.mxu0
        %v1754 = vadd.f32 0.0, %v1753
        %v1755 = vpop.f32.mrf.mxu0
        %v1756 = vadd.f32 0.0, %v1755
        %1757 = vmatmul.bf16.gmra.mxu0 %v629
        %v1758 = vpop.f32.mrf.mxu0
        %v1759 = vadd.f32 0.0, %v1758
        %v1760 = vpop.f32.mrf.mxu0
        %v1761 = vadd.f32 0.0, %v1760
        %1762 = vmatmul.bf16.gmra.mxu0 %v631
        %v1763 = vpop.f32.mrf.mxu0
        %v1764 = vadd.f32 0.0, %v1763
        %v1765 = vpop.f32.mrf.mxu0
        %v1766 = vadd.f32 0.0, %v1765
        %1767 = vdwg.mxu0
        %1768 = vmatpush.bf16.msra.mxu0 %v1046
        %1769 = vmatpush.bf16.msra.mxu0 %v1040
        %1770 = vmatpush.bf16.msra.mxu0 %v1034
        %1771 = vmatpush.bf16.msra.mxu0 %v1028
        %1772 = vmatpush.bf16.msra.mxu0 %v1022
        %1773 = vmatpush.bf16.msra.mxu0 %v1016
        %1774 = vmatpush.bf16.msra.mxu0 %v1010
        %1775 = vmatpush.bf16.msra.mxu0 %v1004
        %1776 = vmatmul.bf16.gmra.mxu0 %v602
        %v1777 = vpop.f32.mrf.mxu0
        %v1778 = vadd.f32 %v1689, %v1777
        %v1779 = vpop.f32.mrf.mxu0
        %v1780 = vadd.f32 %v1691, %v1779
        %1781 = vmatmul.bf16.gmra.mxu0 %v604
        %v1782 = vpop.f32.mrf.mxu0
        %v1783 = vadd.f32 %v1694, %v1782
        %v1784 = vpop.f32.mrf.mxu0
        %v1785 = vadd.f32 %v1696, %v1784
        %1786 = vmatmul.bf16.gmra.mxu0 %v606
        %v1787 = vpop.f32.mrf.mxu0
        %v1788 = vadd.f32 %v1699, %v1787
        %v1789 = vpop.f32.mrf.mxu0
        %v1790 = vadd.f32 %v1701, %v1789
        %1791 = vmatmul.bf16.gmra.mxu0 %v608
        %v1792 = vpop.f32.mrf.mxu0
        %v1793 = vadd.f32 %v1704, %v1792
        %v1794 = vpop.f32.mrf.mxu0
        %v1795 = vadd.f32 %v1706, %v1794
        %1796 = vmatmul.bf16.gmra.mxu0 %v610
        %v1797 = vpop.f32.mrf.mxu0
        %v1798 = vadd.f32 %v1709, %v1797
        %v1799 = vpop.f32.mrf.mxu0
        %v1800 = vadd.f32 %v1711, %v1799
        %1801 = vmatmul.bf16.gmra.mxu0 %v612
        %v1802 = vpop.f32.mrf.mxu0
        %v1803 = vadd.f32 %v1714, %v1802
        %v1804 = vpop.f32.mrf.mxu0
        %v1805 = vadd.f32 %v1716, %v1804
        %1806 = vmatmul.bf16.gmra.mxu0 %v614
        %v1807 = vpop.f32.mrf.mxu0
        %v1808 = vadd.f32 %v1719, %v1807
        %v1809 = vpop.f32.mrf.mxu0
        %v1810 = vadd.f32 %v1721, %v1809
        %1811 = vmatmul.bf16.gmra.mxu0 %v616
        %v1812 = vpop.f32.mrf.mxu0
        %v1813 = vadd.f32 %v1724, %v1812
        %v1814 = vpop.f32.mrf.mxu0
        %v1815 = vadd.f32 %v1726, %v1814
        %1816 = vmatmul.bf16.gmra.mxu0 %v618
        %v1817 = vpop.f32.mrf.mxu0
        %v1818 = vadd.f32 %v1729, %v1817
        %v1819 = vpop.f32.mrf.mxu0
        %v1820 = vadd.f32 %v1731, %v1819
        %1821 = vmatmul.bf16.gmra.mxu0 %v620
        %v1822 = vpop.f32.mrf.mxu0
        %v1823 = vadd.f32 %v1734, %v1822
        %v1824 = vpop.f32.mrf.mxu0
        %v1825 = vadd.f32 %v1736, %v1824
        %1826 = vmatmul.bf16.gmra.mxu0 %v622
        %v1827 = vpop.f32.mrf.mxu0
        %v1828 = vadd.f32 %v1739, %v1827
        %v1829 = vpop.f32.mrf.mxu0
        %v1830 = vadd.f32 %v1741, %v1829
        %1831 = vmatmul.bf16.gmra.mxu0 %v624
        %v1832 = vpop.f32.mrf.mxu0
        %v1833 = vadd.f32 %v1744, %v1832
        %v1834 = vpop.f32.mrf.mxu0
        %v1835 = vadd.f32 %v1746, %v1834
        %1836 = vmatmul.bf16.gmra.mxu0 %v626
        %v1837 = vpop.f32.mrf.mxu0
        %v1838 = vadd.f32 %v1749, %v1837
        %v1839 = vpop.f32.mrf.mxu0
        %v1840 = vadd.f32 %v1751, %v1839
        %1841 = vmatmul.bf16.gmra.mxu0 %v628
        %v1842 = vpop.f32.mrf.mxu0
        %v1843 = vadd.f32 %v1754, %v1842
        %v1844 = vpop.f32.mrf.mxu0
        %v1845 = vadd.f32 %v1756, %v1844
        %1846 = vmatmul.bf16.gmra.mxu0 %v630
        %v1847 = vpop.f32.mrf.mxu0
        %v1848 = vadd.f32 %v1759, %v1847
        %v1849 = vpop.f32.mrf.mxu0
        %v1850 = vadd.f32 %v1761, %v1849
        %1851 = vmatmul.bf16.gmra.mxu0 %v632
        %v1852 = vpop.f32.mrf.mxu0
        %v1853 = vadd.f32 %v1764, %v1852
        %v1854 = vpop.f32.mrf.mxu0
        %v1855 = vadd.f32 %v1766, %v1854
        %1856 = vdwg.mxu0
        %1857 = vmatpush.bf16.msra.mxu0 %v999
        %1858 = vmatpush.bf16.msra.mxu0 %v993
        %1859 = vmatpush.bf16.msra.mxu0 %v987
        %1860 = vmatpush.bf16.msra.mxu0 %v981
        %1861 = vmatpush.bf16.msra.mxu0 %v975
        %1862 = vmatpush.bf16.msra.mxu0 %v969
        %1863 = vmatpush.bf16.msra.mxu0 %v963
        %1864 = vmatpush.bf16.msra.mxu0 %v957
        %1865 = vmatmul.bf16.gmra.mxu0 %v601
        %v1866 = vpop.f32.mrf.mxu0
        %v1867 = vadd.f32 0.0, %v1866
        %v1868 = vpop.f32.mrf.mxu0
        %v1869 = vadd.f32 0.0, %v1868
        %1870 = vmatmul.bf16.gmra.mxu0 %v603
        %v1871 = vpop.f32.mrf.mxu0
        %v1872 = vadd.f32 0.0, %v1871
        %v1873 = vpop.f32.mrf.mxu0
        %v1874 = vadd.f32 0.0, %v1873
        %1875 = vmatmul.bf16.gmra.mxu0 %v605
        %v1876 = vpop.f32.mrf.mxu0
        %v1877 = vadd.f32 0.0, %v1876
        %v1878 = vpop.f32.mrf.mxu0
        %v1879 = vadd.f32 0.0, %v1878
        %1880 = vmatmul.bf16.gmra.mxu0 %v607
        %v1881 = vpop.f32.mrf.mxu0
        %v1882 = vadd.f32 0.0, %v1881
        %v1883 = vpop.f32.mrf.mxu0
        %v1884 = vadd.f32 0.0, %v1883
        %1885 = vmatmul.bf16.gmra.mxu0 %v609
        %v1886 = vpop.f32.mrf.mxu0
        %v1887 = vadd.f32 0.0, %v1886
        %v1888 = vpop.f32.mrf.mxu0
        %v1889 = vadd.f32 0.0, %v1888
        %1890 = vmatmul.bf16.gmra.mxu0 %v611
        %v1891 = vpop.f32.mrf.mxu0
        %v1892 = vadd.f32 0.0, %v1891
        %v1893 = vpop.f32.mrf.mxu0
        %v1894 = vadd.f32 0.0, %v1893
        %1895 = vmatmul.bf16.gmra.mxu0 %v613
        %v1896 = vpop.f32.mrf.mxu0
        %v1897 = vadd.f32 0.0, %v1896
        %v1898 = vpop.f32.mrf.mxu0
        %v1899 = vadd.f32 0.0, %v1898
        %1900 = vmatmul.bf16.gmra.mxu0 %v615
        %v1901 = vpop.f32.mrf.mxu0
        %v1902 = vadd.f32 0.0, %v1901
        %v1903 = vpop.f32.mrf.mxu0
        %v1904 = vadd.f32 0.0, %v1903
        %1905 = vmatmul.bf16.gmra.mxu0 %v617
        %v1906 = vpop.f32.mrf.mxu0
        %v1907 = vadd.f32 0.0, %v1906
        %v1908 = vpop.f32.mrf.mxu0
        %v1909 = vadd.f32 0.0, %v1908
        %1910 = vmatmul.bf16.gmra.mxu0 %v619
        %v1911 = vpop.f32.mrf.mxu0
        %v1912 = vadd.f32 0.0, %v1911
        %v1913 = vpop.f32.mrf.mxu0
        %v1914 = vadd.f32 0.0, %v1913
        %1915 = vmatmul.bf16.gmra.mxu0 %v621
        %v1916 = vpop.f32.mrf.mxu0
        %v1917 = vadd.f32 0.0, %v1916
        %v1918 = vpop.f32.mrf.mxu0
        %v1919 = vadd.f32 0.0, %v1918
        %1920 = vmatmul.bf16.gmra.mxu0 %v623
        %v1921 = vpop.f32.mrf.mxu0
        %v1922 = vadd.f32 0.0, %v1921
        %v1923 = vpop.f32.mrf.mxu0
        %v1924 = vadd.f32 0.0, %v1923
        %1925 = vmatmul.bf16.gmra.mxu0 %v625
        %v1926 = vpop.f32.mrf.mxu0
        %v1927 = vadd.f32 0.0, %v1926
        %v1928 = vpop.f32.mrf.mxu0
        %v1929 = vadd.f32 0.0, %v1928
        %1930 = vmatmul.bf16.gmra.mxu0 %v627
        %v1931 = vpop.f32.mrf.mxu0
        %v1932 = vadd.f32 0.0, %v1931
        %v1933 = vpop.f32.mrf.mxu0
        %v1934 = vadd.f32 0.0, %v1933
        %1935 = vmatmul.bf16.gmra.mxu0 %v629
        %v1936 = vpop.f32.mrf.mxu0
        %v1937 = vadd.f32 0.0, %v1936
        %v1938 = vpop.f32.mrf.mxu0
        %v1939 = vadd.f32 0.0, %v1938
        %1940 = vmatmul.bf16.gmra.mxu0 %v631
        %v1941 = vpop.f32.mrf.mxu0
        %v1942 = vadd.f32 0.0, %v1941
        %v1943 = vpop.f32.mrf.mxu0
        %v1944 = vadd.f32 0.0, %v1943
        %1945 = vdwg.mxu0
        %1946 = vmatpush.bf16.msra.mxu0 %v1047
        %1947 = vmatpush.bf16.msra.mxu0 %v1041
        %1948 = vmatpush.bf16.msra.mxu0 %v1035
        %1949 = vmatpush.bf16.msra.mxu0 %v1029
        %1950 = vmatpush.bf16.msra.mxu0 %v1023
        %1951 = vmatpush.bf16.msra.mxu0 %v1017
        %1952 = vmatpush.bf16.msra.mxu0 %v1011
        %1953 = vmatpush.bf16.msra.mxu0 %v1005
        %1954 = vmatmul.bf16.gmra.mxu0 %v602
        %v1955 = vpop.f32.mrf.mxu0
        %v1956 = vadd.f32 %v1867, %v1955
        %v1957 = vpop.f32.mrf.mxu0
        %v1958 = vadd.f32 %v1869, %v1957
        %1959 = vmatmul.bf16.gmra.mxu0 %v604
        %v1960 = vpop.f32.mrf.mxu0
        %v1961 = vadd.f32 %v1872, %v1960
        %v1962 = vpop.f32.mrf.mxu0
        %v1963 = vadd.f32 %v1874, %v1962
        %1964 = vmatmul.bf16.gmra.mxu0 %v606
        %v1965 = vpop.f32.mrf.mxu0
        %v1966 = vadd.f32 %v1877, %v1965
        %v1967 = vpop.f32.mrf.mxu0
        %v1968 = vadd.f32 %v1879, %v1967
        %1969 = vmatmul.bf16.gmra.mxu0 %v608
        %v1970 = vpop.f32.mrf.mxu0
        %v1971 = vadd.f32 %v1882, %v1970
        %v1972 = vpop.f32.mrf.mxu0
        %v1973 = vadd.f32 %v1884, %v1972
        %1974 = vmatmul.bf16.gmra.mxu0 %v610
        %v1975 = vpop.f32.mrf.mxu0
        %v1976 = vadd.f32 %v1887, %v1975
        %v1977 = vpop.f32.mrf.mxu0
        %v1978 = vadd.f32 %v1889, %v1977
        %1979 = vmatmul.bf16.gmra.mxu0 %v612
        %v1980 = vpop.f32.mrf.mxu0
        %v1981 = vadd.f32 %v1892, %v1980
        %v1982 = vpop.f32.mrf.mxu0
        %v1983 = vadd.f32 %v1894, %v1982
        %1984 = vmatmul.bf16.gmra.mxu0 %v614
        %v1985 = vpop.f32.mrf.mxu0
        %v1986 = vadd.f32 %v1897, %v1985
        %v1987 = vpop.f32.mrf.mxu0
        %v1988 = vadd.f32 %v1899, %v1987
        %1989 = vmatmul.bf16.gmra.mxu0 %v616
        %v1990 = vpop.f32.mrf.mxu0
        %v1991 = vadd.f32 %v1902, %v1990
        %v1992 = vpop.f32.mrf.mxu0
        %v1993 = vadd.f32 %v1904, %v1992
        %1994 = vmatmul.bf16.gmra.mxu0 %v618
        %v1995 = vpop.f32.mrf.mxu0
        %v1996 = vadd.f32 %v1907, %v1995
        %v1997 = vpop.f32.mrf.mxu0
        %v1998 = vadd.f32 %v1909, %v1997
        %1999 = vmatmul.bf16.gmra.mxu0 %v620
        %v2000 = vpop.f32.mrf.mxu0
        %v2001 = vadd.f32 %v1912, %v2000
        %v2002 = vpop.f32.mrf.mxu0
        %v2003 = vadd.f32 %v1914, %v2002
        %2004 = vmatmul.bf16.gmra.mxu0 %v622
        %v2005 = vpop.f32.mrf.mxu0
        %v2006 = vadd.f32 %v1917, %v2005
        %v2007 = vpop.f32.mrf.mxu0
        %v2008 = vadd.f32 %v1919, %v2007
        %2009 = vmatmul.bf16.gmra.mxu0 %v624
        %v2010 = vpop.f32.mrf.mxu0
        %v2011 = vadd.f32 %v1922, %v2010
        %v2012 = vpop.f32.mrf.mxu0
        %v2013 = vadd.f32 %v1924, %v2012
        %2014 = vmatmul.bf16.gmra.mxu0 %v626
        %v2015 = vpop.f32.mrf.mxu0
        %v2016 = vadd.f32 %v1927, %v2015
        %v2017 = vpop.f32.mrf.mxu0
        %v2018 = vadd.f32 %v1929, %v2017
        %2019 = vmatmul.bf16.gmra.mxu0 %v628
        %v2020 = vpop.f32.mrf.mxu0
        %v2021 = vadd.f32 %v1932, %v2020
        %v2022 = vpop.f32.mrf.mxu0
        %v2023 = vadd.f32 %v1934, %v2022
        %2024 = vmatmul.bf16.gmra.mxu0 %v630
        %v2025 = vpop.f32.mrf.mxu0
        %v2026 = vadd.f32 %v1937, %v2025
        %v2027 = vpop.f32.mrf.mxu0
        %v2028 = vadd.f32 %v1939, %v2027
        %2029 = vmatmul.bf16.gmra.mxu0 %v632
        %v2030 = vpop.f32.mrf.mxu0
        %v2031 = vadd.f32 %v1942, %v2030
        %v2032 = vpop.f32.mrf.mxu0
        %v2033 = vadd.f32 %v1944, %v2032
        %2034 = vdwg.mxu0
        %2035 = vmatpush.bf16.msra.mxu0 %v1000
        %2036 = vmatpush.bf16.msra.mxu0 %v994
        %2037 = vmatpush.bf16.msra.mxu0 %v988
        %2038 = vmatpush.bf16.msra.mxu0 %v982
        %2039 = vmatpush.bf16.msra.mxu0 %v976
        %2040 = vmatpush.bf16.msra.mxu0 %v970
        %2041 = vmatpush.bf16.msra.mxu0 %v964
        %2042 = vmatpush.bf16.msra.mxu0 %v958
        %2043 = vmatmul.bf16.gmra.mxu0 %v601
        %v2044 = vpop.f32.mrf.mxu0
        %v2045 = vpop.f32.mrf.mxu0
        %2046 = vmatmul.bf16.gmra.mxu0 %v603
        %v2047 = vpop.f32.mrf.mxu0
        %v2048 = vadd.f32 0.0, %v2047
        %v2049 = vpop.f32.mrf.mxu0
        %v2050 = vadd.f32 0.0, %v2049
        %2051 = vmatmul.bf16.gmra.mxu0 %v605
        %v2052 = vpop.f32.mrf.mxu0
        %v2053 = vadd.f32 0.0, %v2052
        %v2054 = vpop.f32.mrf.mxu0
        %v2055 = vadd.f32 0.0, %v2054
        %2056 = vmatmul.bf16.gmra.mxu0 %v607
        %v2057 = vpop.f32.mrf.mxu0
        %v2058 = vadd.f32 0.0, %v2057
        %v2059 = vpop.f32.mrf.mxu0
        %v2060 = vadd.f32 0.0, %v2059
        %2061 = vmatmul.bf16.gmra.mxu0 %v609
        %v2062 = vpop.f32.mrf.mxu0
        %v2063 = vadd.f32 0.0, %v2062
        %v2064 = vpop.f32.mrf.mxu0
        %v2065 = vadd.f32 0.0, %v2064
        %2066 = vmatmul.bf16.gmra.mxu0 %v611
        %v2067 = vpop.f32.mrf.mxu0
        %v2068 = vadd.f32 0.0, %v2067
        %v2069 = vpop.f32.mrf.mxu0
        %v2070 = vadd.f32 0.0, %v2069
        %2071 = vmatmul.bf16.gmra.mxu0 %v613
        %v2072 = vpop.f32.mrf.mxu0
        %v2073 = vadd.f32 0.0, %v2072
        %v2074 = vpop.f32.mrf.mxu0
        %v2075 = vadd.f32 0.0, %v2074
        %2076 = vmatmul.bf16.gmra.mxu0 %v615
        %v2077 = vpop.f32.mrf.mxu0
        %v2078 = vadd.f32 0.0, %v2077
        %v2079 = vpop.f32.mrf.mxu0
        %v2080 = vadd.f32 0.0, %v2079
        %2081 = vmatmul.bf16.gmra.mxu0 %v617
        %v2082 = vpop.f32.mrf.mxu0
        %v2083 = vadd.f32 0.0, %v2082
        %v2084 = vpop.f32.mrf.mxu0
        %v2085 = vadd.f32 0.0, %v2084
        %2086 = vmatmul.bf16.gmra.mxu0 %v619
        %v2087 = vpop.f32.mrf.mxu0
        %v2088 = vadd.f32 0.0, %v2087
        %v2089 = vpop.f32.mrf.mxu0
        %v2090 = vadd.f32 0.0, %v2089
        %2091 = vmatmul.bf16.gmra.mxu0 %v621
        %v2092 = vpop.f32.mrf.mxu0
        %v2093 = vadd.f32 0.0, %v2092
        %v2094 = vpop.f32.mrf.mxu0
        %v2095 = vadd.f32 0.0, %v2094
        %2096 = vmatmul.bf16.gmra.mxu0 %v623
        %v2097 = vpop.f32.mrf.mxu0
        %v2098 = vadd.f32 0.0, %v2097
        %v2099 = vpop.f32.mrf.mxu0
        %v2100 = vadd.f32 0.0, %v2099
        %2101 = vmatmul.bf16.gmra.mxu0 %v625
        %v2102 = vpop.f32.mrf.mxu0
        %v2103 = vadd.f32 0.0, %v2102
        %v2104 = vpop.f32.mrf.mxu0
        %v2105 = vadd.f32 0.0, %v2104
        %2106 = vmatmul.bf16.gmra.mxu0 %v627
        %v2107 = vpop.f32.mrf.mxu0
        %v2108 = vadd.f32 0.0, %v2107
        %v2109 = vpop.f32.mrf.mxu0
        %v2110 = vadd.f32 0.0, %v2109
        %2111 = vmatmul.bf16.gmra.mxu0 %v629
        %v2112 = vpop.f32.mrf.mxu0
        %v2113 = vadd.f32 0.0, %v2112
        %v2114 = vpop.f32.mrf.mxu0
        %v2115 = vadd.f32 0.0, %v2114
        %2116 = vmatmul.bf16.gmra.mxu0 %v631
        %v2117 = vpop.f32.mrf.mxu0
        %v2118 = vadd.f32 0.0, %v2117
        %v2119 = vpop.f32.mrf.mxu0
        %v2120 = vadd.f32 0.0, %v2119
        %2121 = vdwg.mxu0
        %2122 = vmatpush.bf16.msra.mxu0 %v1048
        %2123 = vmatpush.bf16.msra.mxu0 %v1042
        %2124 = vmatpush.bf16.msra.mxu0 %v1036
        %2125 = vmatpush.bf16.msra.mxu0 %v1030
        %2126 = vmatpush.bf16.msra.mxu0 %v1024
        %2127 = vmatpush.bf16.msra.mxu0 %v1018
        %2128 = vmatpush.bf16.msra.mxu0 %v1012
        %2129 = vmatpush.bf16.msra.mxu0 %v1006
        %2130 = vmatmul.bf16.gmra.mxu0 %v602
        %v2131 = vpop.f32.mrf.mxu0
        %v2132 = vpop.f32.mrf.mxu0
        %2133 = vmatmul.bf16.gmra.mxu0 %v604
        %v2134 = vpop.f32.mrf.mxu0
        %v2135 = vadd.f32 %v2048, %v2134
        %v2136 = vpop.f32.mrf.mxu0
        %v2137 = vadd.f32 %v2050, %v2136
        %2138 = vmatmul.bf16.gmra.mxu0 %v606
        %v2139 = vpop.f32.mrf.mxu0
        %v2140 = vadd.f32 %v2053, %v2139
        %v2141 = vpop.f32.mrf.mxu0
        %v2142 = vadd.f32 %v2055, %v2141
        %2143 = vmatmul.bf16.gmra.mxu0 %v608
        %v2144 = vpop.f32.mrf.mxu0
        %v2145 = vadd.f32 %v2058, %v2144
        %v2146 = vpop.f32.mrf.mxu0
        %v2147 = vadd.f32 %v2060, %v2146
        %2148 = vmatmul.bf16.gmra.mxu0 %v610
        %v2149 = vpop.f32.mrf.mxu0
        %v2150 = vadd.f32 %v2063, %v2149
        %v2151 = vpop.f32.mrf.mxu0
        %v2152 = vadd.f32 %v2065, %v2151
        %2153 = vmatmul.bf16.gmra.mxu0 %v612
        %v2154 = vpop.f32.mrf.mxu0
        %v2155 = vadd.f32 %v2068, %v2154
        %v2156 = vpop.f32.mrf.mxu0
        %v2157 = vadd.f32 %v2070, %v2156
        %2158 = vmatmul.bf16.gmra.mxu0 %v614
        %v2159 = vpop.f32.mrf.mxu0
        %v2160 = vadd.f32 %v2073, %v2159
        %v2161 = vpop.f32.mrf.mxu0
        %v2162 = vadd.f32 %v2075, %v2161
        %2163 = vmatmul.bf16.gmra.mxu0 %v616
        %v2164 = vpop.f32.mrf.mxu0
        %v2165 = vadd.f32 %v2078, %v2164
        %v2166 = vpop.f32.mrf.mxu0
        %v2167 = vadd.f32 %v2080, %v2166
        %2168 = vmatmul.bf16.gmra.mxu0 %v618
        %v2169 = vpop.f32.mrf.mxu0
        %v2170 = vadd.f32 %v2083, %v2169
        %v2171 = vpop.f32.mrf.mxu0
        %v2172 = vadd.f32 %v2085, %v2171
        %2173 = vmatmul.bf16.gmra.mxu0 %v620
        %v2174 = vpop.f32.mrf.mxu0
        %v2175 = vadd.f32 %v2088, %v2174
        %v2176 = vpop.f32.mrf.mxu0
        %v2177 = vadd.f32 %v2090, %v2176
        %2178 = vmatmul.bf16.gmra.mxu0 %v622
        %v2179 = vpop.f32.mrf.mxu0
        %v2180 = vadd.f32 %v2093, %v2179
        %v2181 = vpop.f32.mrf.mxu0
        %v2182 = vadd.f32 %v2095, %v2181
        %2183 = vmatmul.bf16.gmra.mxu0 %v624
        %v2184 = vpop.f32.mrf.mxu0
        %v2185 = vadd.f32 %v2098, %v2184
        %v2186 = vpop.f32.mrf.mxu0
        %v2187 = vadd.f32 %v2100, %v2186
        %2188 = vmatmul.bf16.gmra.mxu0 %v626
        %v2189 = vpop.f32.mrf.mxu0
        %v2190 = vadd.f32 %v2103, %v2189
        %v2191 = vpop.f32.mrf.mxu0
        %v2192 = vadd.f32 %v2105, %v2191
        %2193 = vmatmul.bf16.gmra.mxu0 %v628
        %v2194 = vpop.f32.mrf.mxu0
        %v2195 = vadd.f32 %v2108, %v2194
        %v2196 = vpop.f32.mrf.mxu0
        %v2197 = vadd.f32 %v2110, %v2196
        %2198 = vmatmul.bf16.gmra.mxu0 %v630
        %v2199 = vpop.f32.mrf.mxu0
        %v2200 = vadd.f32 %v2113, %v2199
        %v2201 = vpop.f32.mrf.mxu0
        %v2202 = vadd.f32 %v2115, %v2201
        %2203 = vmatmul.bf16.gmra.mxu0 %v632
        %v2204 = vpop.f32.mrf.mxu0
        %v2205 = vadd.f32 %v2118, %v2204
        %v2206 = vpop.f32.mrf.mxu0
        %v2207 = vadd.f32 %v2120, %v2206
        %2208 = vdwg.mxu0
        %v2209 = vadd.f32 %v1244, 0.0
        %v2210 = vadd.f32 %v1422, 0.0
        %v2211 = vadd.f32 %v1600, 0.0
        %v2212 = vadd.f32 %v1778, 0.0
        %v2213 = vadd.f32 %v1956, 0.0
        %v2214 = vadd.f32 %v1246, 0.0
        %v2215 = vadd.f32 %v1424, 0.0
        %v2216 = vadd.f32 %v1602, 0.0
        %v2217 = vadd.f32 %v1780, 0.0
        %v2218 = vadd.f32 %v1958, 0.0
        %2231 = vrot.lane.b32.xlu0 %v1249, 127
        %v2232 = vpop.permute.xlu0 %2231
        %2233 = vrot.lane.b32.xlu0 %v1427, 127
        %v2234 = vpop.permute.xlu0 %2233
        %2235 = vrot.lane.b32.xlu0 %v1605, 127
        %v2236 = vpop.permute.xlu0 %2235
        %2237 = vrot.lane.b32.xlu0 %v1783, 127
        %v2238 = vpop.permute.xlu0 %2237
        %2239 = vrot.lane.b32.xlu0 %v1961, 127
        %v2240 = vpop.permute.xlu0 %2239
        %2241 = vrot.lane.b32.xlu0 %v2135, 127
        %v2242 = vpop.permute.xlu0 %2241
        %2243 = vrot.lane.b32.xlu0 %v1251, 127
        %v2244 = vpop.permute.xlu0 %2243
        %2245 = vrot.lane.b32.xlu0 %v1429, 127
        %v2246 = vpop.permute.xlu0 %2245
        %2247 = vrot.lane.b32.xlu0 %v1607, 127
        %v2248 = vpop.permute.xlu0 %2247
        %2249 = vrot.lane.b32.xlu0 %v1785, 127
        %v2250 = vpop.permute.xlu0 %2249
        %2251 = vrot.lane.b32.xlu0 %v1963, 127
        %v2252 = vpop.permute.xlu0 %2251
        %2253 = vrot.lane.b32.xlu0 %v2137, 127
        %v2254 = vpop.permute.xlu0 %2253
        %vm2255 = vcmask 1039360
        %v2256 = vsel %vm2255, %v2232, %v2234
        %v2257 = vsel %vm2255, %v2234, %v2236
        %v2258 = vsel %vm2255, %v2236, %v2238
        %v2259 = vsel %vm2255, %v2238, %v2240
        %v2260 = vsel %vm2255, %v2240, %v2242
        %v2261 = vsel %vm2255, %v2244, %v2246
        %v2262 = vsel %vm2255, %v2246, %v2248
        %v2263 = vsel %vm2255, %v2248, %v2250
        %v2264 = vsel %vm2255, %v2250, %v2252
        %v2265 = vsel %vm2255, %v2252, %v2254
        %v2276 = vadd.f32 %v2209, %v2256
        %v2277 = vadd.f32 %v2210, %v2257
        %v2278 = vadd.f32 %v2211, %v2258
        %v2279 = vadd.f32 %v2212, %v2259
        %v2280 = vadd.f32 %v2213, %v2260
        %v2281 = vadd.f32 %v2214, %v2261
        %v2282 = vadd.f32 %v2215, %v2262
        %v2283 = vadd.f32 %v2216, %v2263
        %v2284 = vadd.f32 %v2217, %v2264
        %v2285 = vadd.f32 %v2218, %v2265
        %2298 = vrot.lane.b32.xlu0 %v1254, 126
        %v2299 = vpop.permute.xlu0 %2298
        %2300 = vrot.lane.b32.xlu0 %v1432, 126
        %v2301 = vpop.permute.xlu0 %2300
        %2302 = vrot.lane.b32.xlu0 %v1610, 126
        %v2303 = vpop.permute.xlu0 %2302
        %2304 = vrot.lane.b32.xlu0 %v1788, 126
        %v2305 = vpop.permute.xlu0 %2304
        %2306 = vrot.lane.b32.xlu0 %v1966, 126
        %v2307 = vpop.permute.xlu0 %2306
        %2308 = vrot.lane.b32.xlu0 %v2140, 126
        %v2309 = vpop.permute.xlu0 %2308
        %2310 = vrot.lane.b32.xlu0 %v1256, 126
        %v2311 = vpop.permute.xlu0 %2310
        %2312 = vrot.lane.b32.xlu0 %v1434, 126
        %v2313 = vpop.permute.xlu0 %2312
        %2314 = vrot.lane.b32.xlu0 %v1612, 126
        %v2315 = vpop.permute.xlu0 %2314
        %2316 = vrot.lane.b32.xlu0 %v1790, 126
        %v2317 = vpop.permute.xlu0 %2316
        %2318 = vrot.lane.b32.xlu0 %v1968, 126
        %v2319 = vpop.permute.xlu0 %2318
        %2320 = vrot.lane.b32.xlu0 %v2142, 126
        %v2321 = vpop.permute.xlu0 %2320
        %vm2322 = vcmask 1031168
        %v2323 = vsel %vm2322, %v2299, %v2301
        %v2324 = vsel %vm2322, %v2301, %v2303
        %v2325 = vsel %vm2322, %v2303, %v2305
        %v2326 = vsel %vm2322, %v2305, %v2307
        %v2327 = vsel %vm2322, %v2307, %v2309
        %v2328 = vsel %vm2322, %v2311, %v2313
        %v2329 = vsel %vm2322, %v2313, %v2315
        %v2330 = vsel %vm2322, %v2315, %v2317
        %v2331 = vsel %vm2322, %v2317, %v2319
        %v2332 = vsel %vm2322, %v2319, %v2321
        %v2343 = vadd.f32 %v2276, %v2323
        %v2344 = vadd.f32 %v2277, %v2324
        %v2345 = vadd.f32 %v2278, %v2325
        %v2346 = vadd.f32 %v2279, %v2326
        %v2347 = vadd.f32 %v2280, %v2327
        %v2348 = vadd.f32 %v2281, %v2328
        %v2349 = vadd.f32 %v2282, %v2329
        %v2350 = vadd.f32 %v2283, %v2330
        %v2351 = vadd.f32 %v2284, %v2331
        %v2352 = vadd.f32 %v2285, %v2332
        %2365 = vrot.lane.b32.xlu0 %v1259, 125
        %v2366 = vpop.permute.xlu0 %2365
        %2367 = vrot.lane.b32.xlu0 %v1437, 125
        %v2368 = vpop.permute.xlu0 %2367
        %2369 = vrot.lane.b32.xlu0 %v1615, 125
        %v2370 = vpop.permute.xlu0 %2369
        %2371 = vrot.lane.b32.xlu0 %v1793, 125
        %v2372 = vpop.permute.xlu0 %2371
        %2373 = vrot.lane.b32.xlu0 %v1971, 125
        %v2374 = vpop.permute.xlu0 %2373
        %2375 = vrot.lane.b32.xlu0 %v2145, 125
        %v2376 = vpop.permute.xlu0 %2375
        %2377 = vrot.lane.b32.xlu0 %v1261, 125
        %v2378 = vpop.permute.xlu0 %2377
        %2379 = vrot.lane.b32.xlu0 %v1439, 125
        %v2380 = vpop.permute.xlu0 %2379
        %2381 = vrot.lane.b32.xlu0 %v1617, 125
        %v2382 = vpop.permute.xlu0 %2381
        %2383 = vrot.lane.b32.xlu0 %v1795, 125
        %v2384 = vpop.permute.xlu0 %2383
        %2385 = vrot.lane.b32.xlu0 %v1973, 125
        %v2386 = vpop.permute.xlu0 %2385
        %2387 = vrot.lane.b32.xlu0 %v2147, 125
        %v2388 = vpop.permute.xlu0 %2387
        %vm2389 = vcmask 1022976
        %v2390 = vsel %vm2389, %v2366, %v2368
        %v2391 = vsel %vm2389, %v2368, %v2370
        %v2392 = vsel %vm2389, %v2370, %v2372
        %v2393 = vsel %vm2389, %v2372, %v2374
        %v2394 = vsel %vm2389, %v2374, %v2376
        %v2395 = vsel %vm2389, %v2378, %v2380
        %v2396 = vsel %vm2389, %v2380, %v2382
        %v2397 = vsel %vm2389, %v2382, %v2384
        %v2398 = vsel %vm2389, %v2384, %v2386
        %v2399 = vsel %vm2389, %v2386, %v2388
        %v2410 = vadd.f32 %v2343, %v2390
        %v2411 = vadd.f32 %v2344, %v2391
        %v2412 = vadd.f32 %v2345, %v2392
        %v2413 = vadd.f32 %v2346, %v2393
        %v2414 = vadd.f32 %v2347, %v2394
        %v2415 = vadd.f32 %v2348, %v2395
        %v2416 = vadd.f32 %v2349, %v2396
        %v2417 = vadd.f32 %v2350, %v2397
        %v2418 = vadd.f32 %v2351, %v2398
        %v2419 = vadd.f32 %v2352, %v2399
        %2432 = vrot.lane.b32.xlu0 %v1264, 124
        %v2433 = vpop.permute.xlu0 %2432
        %2434 = vrot.lane.b32.xlu0 %v1442, 124
        %v2435 = vpop.permute.xlu0 %2434
        %2436 = vrot.lane.b32.xlu0 %v1620, 124
        %v2437 = vpop.permute.xlu0 %2436
        %2438 = vrot.lane.b32.xlu0 %v1798, 124
        %v2439 = vpop.permute.xlu0 %2438
        %2440 = vrot.lane.b32.xlu0 %v1976, 124
        %v2441 = vpop.permute.xlu0 %2440
        %2442 = vrot.lane.b32.xlu0 %v2150, 124
        %v2443 = vpop.permute.xlu0 %2442
        %2444 = vrot.lane.b32.xlu0 %v1266, 124
        %v2445 = vpop.permute.xlu0 %2444
        %2446 = vrot.lane.b32.xlu0 %v1444, 124
        %v2447 = vpop.permute.xlu0 %2446
        %2448 = vrot.lane.b32.xlu0 %v1622, 124
        %v2449 = vpop.permute.xlu0 %2448
        %2450 = vrot.lane.b32.xlu0 %v1800, 124
        %v2451 = vpop.permute.xlu0 %2450
        %2452 = vrot.lane.b32.xlu0 %v1978, 124
        %v2453 = vpop.permute.xlu0 %2452
        %2454 = vrot.lane.b32.xlu0 %v2152, 124
        %v2455 = vpop.permute.xlu0 %2454
        %vm2456 = vcmask 1014784
        %v2457 = vsel %vm2456, %v2433, %v2435
        %v2458 = vsel %vm2456, %v2435, %v2437
        %v2459 = vsel %vm2456, %v2437, %v2439
        %v2460 = vsel %vm2456, %v2439, %v2441
        %v2461 = vsel %vm2456, %v2441, %v2443
        %v2462 = vsel %vm2456, %v2445, %v2447
        %v2463 = vsel %vm2456, %v2447, %v2449
        %v2464 = vsel %vm2456, %v2449, %v2451
        %v2465 = vsel %vm2456, %v2451, %v2453
        %v2466 = vsel %vm2456, %v2453, %v2455
        %v2477 = vadd.f32 %v2410, %v2457
        %v2478 = vadd.f32 %v2411, %v2458
        %v2479 = vadd.f32 %v2412, %v2459
        %v2480 = vadd.f32 %v2413, %v2460
        %v2481 = vadd.f32 %v2414, %v2461
        %v2482 = vadd.f32 %v2415, %v2462
        %v2483 = vadd.f32 %v2416, %v2463
        %v2484 = vadd.f32 %v2417, %v2464
        %v2485 = vadd.f32 %v2418, %v2465
        %v2486 = vadd.f32 %v2419, %v2466
        %2499 = vrot.lane.b32.xlu0 %v1269, 123
        %v2500 = vpop.permute.xlu0 %2499
        %2501 = vrot.lane.b32.xlu0 %v1447, 123
        %v2502 = vpop.permute.xlu0 %2501
        %2503 = vrot.lane.b32.xlu0 %v1625, 123
        %v2504 = vpop.permute.xlu0 %2503
        %2505 = vrot.lane.b32.xlu0 %v1803, 123
        %v2506 = vpop.permute.xlu0 %2505
        %2507 = vrot.lane.b32.xlu0 %v1981, 123
        %v2508 = vpop.permute.xlu0 %2507
        %2509 = vrot.lane.b32.xlu0 %v2155, 123
        %v2510 = vpop.permute.xlu0 %2509
        %2511 = vrot.lane.b32.xlu0 %v1271, 123
        %v2512 = vpop.permute.xlu0 %2511
        %2513 = vrot.lane.b32.xlu0 %v1449, 123
        %v2514 = vpop.permute.xlu0 %2513
        %2515 = vrot.lane.b32.xlu0 %v1627, 123
        %v2516 = vpop.permute.xlu0 %2515
        %2517 = vrot.lane.b32.xlu0 %v1805, 123
        %v2518 = vpop.permute.xlu0 %2517
        %2519 = vrot.lane.b32.xlu0 %v1983, 123
        %v2520 = vpop.permute.xlu0 %2519
        %2521 = vrot.lane.b32.xlu0 %v2157, 123
        %v2522 = vpop.permute.xlu0 %2521
        %vm2523 = vcmask 1006592
        %v2524 = vsel %vm2523, %v2500, %v2502
        %v2525 = vsel %vm2523, %v2502, %v2504
        %v2526 = vsel %vm2523, %v2504, %v2506
        %v2527 = vsel %vm2523, %v2506, %v2508
        %v2528 = vsel %vm2523, %v2508, %v2510
        %v2529 = vsel %vm2523, %v2512, %v2514
        %v2530 = vsel %vm2523, %v2514, %v2516
        %v2531 = vsel %vm2523, %v2516, %v2518
        %v2532 = vsel %vm2523, %v2518, %v2520
        %v2533 = vsel %vm2523, %v2520, %v2522
        %v2544 = vadd.f32 %v2477, %v2524
        %v2545 = vadd.f32 %v2478, %v2525
        %v2546 = vadd.f32 %v2479, %v2526
        %v2547 = vadd.f32 %v2480, %v2527
        %v2548 = vadd.f32 %v2481, %v2528
        %v2549 = vadd.f32 %v2482, %v2529
        %v2550 = vadd.f32 %v2483, %v2530
        %v2551 = vadd.f32 %v2484, %v2531
        %v2552 = vadd.f32 %v2485, %v2532
        %v2553 = vadd.f32 %v2486, %v2533
        %2566 = vrot.lane.b32.xlu0 %v1274, 122
        %v2567 = vpop.permute.xlu0 %2566
        %2568 = vrot.lane.b32.xlu0 %v1452, 122
        %v2569 = vpop.permute.xlu0 %2568
        %2570 = vrot.lane.b32.xlu0 %v1630, 122
        %v2571 = vpop.permute.xlu0 %2570
        %2572 = vrot.lane.b32.xlu0 %v1808, 122
        %v2573 = vpop.permute.xlu0 %2572
        %2574 = vrot.lane.b32.xlu0 %v1986, 122
        %v2575 = vpop.permute.xlu0 %2574
        %2576 = vrot.lane.b32.xlu0 %v2160, 122
        %v2577 = vpop.permute.xlu0 %2576
        %2578 = vrot.lane.b32.xlu0 %v1276, 122
        %v2579 = vpop.permute.xlu0 %2578
        %2580 = vrot.lane.b32.xlu0 %v1454, 122
        %v2581 = vpop.permute.xlu0 %2580
        %2582 = vrot.lane.b32.xlu0 %v1632, 122
        %v2583 = vpop.permute.xlu0 %2582
        %2584 = vrot.lane.b32.xlu0 %v1810, 122
        %v2585 = vpop.permute.xlu0 %2584
        %2586 = vrot.lane.b32.xlu0 %v1988, 122
        %v2587 = vpop.permute.xlu0 %2586
        %2588 = vrot.lane.b32.xlu0 %v2162, 122
        %v2589 = vpop.permute.xlu0 %2588
        %vm2590 = vcmask 998400
        %v2591 = vsel %vm2590, %v2567, %v2569
        %v2592 = vsel %vm2590, %v2569, %v2571
        %v2593 = vsel %vm2590, %v2571, %v2573
        %v2594 = vsel %vm2590, %v2573, %v2575
        %v2595 = vsel %vm2590, %v2575, %v2577
        %v2596 = vsel %vm2590, %v2579, %v2581
        %v2597 = vsel %vm2590, %v2581, %v2583
        %v2598 = vsel %vm2590, %v2583, %v2585
        %v2599 = vsel %vm2590, %v2585, %v2587
        %v2600 = vsel %vm2590, %v2587, %v2589
        %v2611 = vadd.f32 %v2544, %v2591
        %v2612 = vadd.f32 %v2545, %v2592
        %v2613 = vadd.f32 %v2546, %v2593
        %v2614 = vadd.f32 %v2547, %v2594
        %v2615 = vadd.f32 %v2548, %v2595
        %v2616 = vadd.f32 %v2549, %v2596
        %v2617 = vadd.f32 %v2550, %v2597
        %v2618 = vadd.f32 %v2551, %v2598
        %v2619 = vadd.f32 %v2552, %v2599
        %v2620 = vadd.f32 %v2553, %v2600
        %2633 = vrot.lane.b32.xlu0 %v1279, 121
        %v2634 = vpop.permute.xlu0 %2633
        %2635 = vrot.lane.b32.xlu0 %v1457, 121
        %v2636 = vpop.permute.xlu0 %2635
        %2637 = vrot.lane.b32.xlu0 %v1635, 121
        %v2638 = vpop.permute.xlu0 %2637
        %2639 = vrot.lane.b32.xlu0 %v1813, 121
        %v2640 = vpop.permute.xlu0 %2639
        %2641 = vrot.lane.b32.xlu0 %v1991, 121
        %v2642 = vpop.permute.xlu0 %2641
        %2643 = vrot.lane.b32.xlu0 %v2165, 121
        %v2644 = vpop.permute.xlu0 %2643
        %2645 = vrot.lane.b32.xlu0 %v1281, 121
        %v2646 = vpop.permute.xlu0 %2645
        %2647 = vrot.lane.b32.xlu0 %v1459, 121
        %v2648 = vpop.permute.xlu0 %2647
        %2649 = vrot.lane.b32.xlu0 %v1637, 121
        %v2650 = vpop.permute.xlu0 %2649
        %2651 = vrot.lane.b32.xlu0 %v1815, 121
        %v2652 = vpop.permute.xlu0 %2651
        %2653 = vrot.lane.b32.xlu0 %v1993, 121
        %v2654 = vpop.permute.xlu0 %2653
        %2655 = vrot.lane.b32.xlu0 %v2167, 121
        %v2656 = vpop.permute.xlu0 %2655
        %vm2657 = vcmask 990208
        %v2658 = vsel %vm2657, %v2634, %v2636
        %v2659 = vsel %vm2657, %v2636, %v2638
        %v2660 = vsel %vm2657, %v2638, %v2640
        %v2661 = vsel %vm2657, %v2640, %v2642
        %v2662 = vsel %vm2657, %v2642, %v2644
        %v2663 = vsel %vm2657, %v2646, %v2648
        %v2664 = vsel %vm2657, %v2648, %v2650
        %v2665 = vsel %vm2657, %v2650, %v2652
        %v2666 = vsel %vm2657, %v2652, %v2654
        %v2667 = vsel %vm2657, %v2654, %v2656
        %v2678 = vadd.f32 %v2611, %v2658
        %v2679 = vadd.f32 %v2612, %v2659
        %v2680 = vadd.f32 %v2613, %v2660
        %v2681 = vadd.f32 %v2614, %v2661
        %v2682 = vadd.f32 %v2615, %v2662
        %v2683 = vadd.f32 %v2616, %v2663
        %v2684 = vadd.f32 %v2617, %v2664
        %v2685 = vadd.f32 %v2618, %v2665
        %v2686 = vadd.f32 %v2619, %v2666
        %v2687 = vadd.f32 %v2620, %v2667
        %2700 = vrot.lane.b32.xlu0 %v1284, 120
        %v2701 = vpop.permute.xlu0 %2700
        %2702 = vrot.lane.b32.xlu0 %v1462, 120
        %v2703 = vpop.permute.xlu0 %2702
        %2704 = vrot.lane.b32.xlu0 %v1640, 120
        %v2705 = vpop.permute.xlu0 %2704
        %2706 = vrot.lane.b32.xlu0 %v1818, 120
        %v2707 = vpop.permute.xlu0 %2706
        %2708 = vrot.lane.b32.xlu0 %v1996, 120
        %v2709 = vpop.permute.xlu0 %2708
        %2710 = vrot.lane.b32.xlu0 %v2170, 120
        %v2711 = vpop.permute.xlu0 %2710
        %2712 = vrot.lane.b32.xlu0 %v1286, 120
        %v2713 = vpop.permute.xlu0 %2712
        %2714 = vrot.lane.b32.xlu0 %v1464, 120
        %v2715 = vpop.permute.xlu0 %2714
        %2716 = vrot.lane.b32.xlu0 %v1642, 120
        %v2717 = vpop.permute.xlu0 %2716
        %2718 = vrot.lane.b32.xlu0 %v1820, 120
        %v2719 = vpop.permute.xlu0 %2718
        %2720 = vrot.lane.b32.xlu0 %v1998, 120
        %v2721 = vpop.permute.xlu0 %2720
        %2722 = vrot.lane.b32.xlu0 %v2172, 120
        %v2723 = vpop.permute.xlu0 %2722
        %vm2724 = vcmask 982016
        %v2725 = vsel %vm2724, %v2701, %v2703
        %v2726 = vsel %vm2724, %v2703, %v2705
        %v2727 = vsel %vm2724, %v2705, %v2707
        %v2728 = vsel %vm2724, %v2707, %v2709
        %v2729 = vsel %vm2724, %v2709, %v2711
        %v2730 = vsel %vm2724, %v2713, %v2715
        %v2731 = vsel %vm2724, %v2715, %v2717
        %v2732 = vsel %vm2724, %v2717, %v2719
        %v2733 = vsel %vm2724, %v2719, %v2721
        %v2734 = vsel %vm2724, %v2721, %v2723
        %v2745 = vadd.f32 %v2678, %v2725
        %v2746 = vadd.f32 %v2679, %v2726
        %v2747 = vadd.f32 %v2680, %v2727
        %v2748 = vadd.f32 %v2681, %v2728
        %v2749 = vadd.f32 %v2682, %v2729
        %v2750 = vadd.f32 %v2683, %v2730
        %v2751 = vadd.f32 %v2684, %v2731
        %v2752 = vadd.f32 %v2685, %v2732
        %v2753 = vadd.f32 %v2686, %v2733
        %v2754 = vadd.f32 %v2687, %v2734
        %2767 = vrot.lane.b32.xlu0 %v1289, 119
        %v2768 = vpop.permute.xlu0 %2767
        %2769 = vrot.lane.b32.xlu0 %v1467, 119
        %v2770 = vpop.permute.xlu0 %2769
        %2771 = vrot.lane.b32.xlu0 %v1645, 119
        %v2772 = vpop.permute.xlu0 %2771
        %2773 = vrot.lane.b32.xlu0 %v1823, 119
        %v2774 = vpop.permute.xlu0 %2773
        %2775 = vrot.lane.b32.xlu0 %v2001, 119
        %v2776 = vpop.permute.xlu0 %2775
        %2777 = vrot.lane.b32.xlu0 %v2175, 119
        %v2778 = vpop.permute.xlu0 %2777
        %2779 = vrot.lane.b32.xlu0 %v1291, 119
        %v2780 = vpop.permute.xlu0 %2779
        %2781 = vrot.lane.b32.xlu0 %v1469, 119
        %v2782 = vpop.permute.xlu0 %2781
        %2783 = vrot.lane.b32.xlu0 %v1647, 119
        %v2784 = vpop.permute.xlu0 %2783
        %2785 = vrot.lane.b32.xlu0 %v1825, 119
        %v2786 = vpop.permute.xlu0 %2785
        %2787 = vrot.lane.b32.xlu0 %v2003, 119
        %v2788 = vpop.permute.xlu0 %2787
        %2789 = vrot.lane.b32.xlu0 %v2177, 119
        %v2790 = vpop.permute.xlu0 %2789
        %vm2791 = vcmask 973824
        %v2792 = vsel %vm2791, %v2768, %v2770
        %v2793 = vsel %vm2791, %v2770, %v2772
        %v2794 = vsel %vm2791, %v2772, %v2774
        %v2795 = vsel %vm2791, %v2774, %v2776
        %v2796 = vsel %vm2791, %v2776, %v2778
        %v2797 = vsel %vm2791, %v2780, %v2782
        %v2798 = vsel %vm2791, %v2782, %v2784
        %v2799 = vsel %vm2791, %v2784, %v2786
        %v2800 = vsel %vm2791, %v2786, %v2788
        %v2801 = vsel %vm2791, %v2788, %v2790
        %v2812 = vadd.f32 %v2745, %v2792
        %v2813 = vadd.f32 %v2746, %v2793
        %v2814 = vadd.f32 %v2747, %v2794
        %v2815 = vadd.f32 %v2748, %v2795
        %v2816 = vadd.f32 %v2749, %v2796
        %v2817 = vadd.f32 %v2750, %v2797
        %v2818 = vadd.f32 %v2751, %v2798
        %v2819 = vadd.f32 %v2752, %v2799
        %v2820 = vadd.f32 %v2753, %v2800
        %v2821 = vadd.f32 %v2754, %v2801
        %2834 = vrot.lane.b32.xlu0 %v1294, 118
        %v2835 = vpop.permute.xlu0 %2834
        %2836 = vrot.lane.b32.xlu0 %v1472, 118
        %v2837 = vpop.permute.xlu0 %2836
        %2838 = vrot.lane.b32.xlu0 %v1650, 118
        %v2839 = vpop.permute.xlu0 %2838
        %2840 = vrot.lane.b32.xlu0 %v1828, 118
        %v2841 = vpop.permute.xlu0 %2840
        %2842 = vrot.lane.b32.xlu0 %v2006, 118
        %v2843 = vpop.permute.xlu0 %2842
        %2844 = vrot.lane.b32.xlu0 %v2180, 118
        %v2845 = vpop.permute.xlu0 %2844
        %2846 = vrot.lane.b32.xlu0 %v1296, 118
        %v2847 = vpop.permute.xlu0 %2846
        %2848 = vrot.lane.b32.xlu0 %v1474, 118
        %v2849 = vpop.permute.xlu0 %2848
        %2850 = vrot.lane.b32.xlu0 %v1652, 118
        %v2851 = vpop.permute.xlu0 %2850
        %2852 = vrot.lane.b32.xlu0 %v1830, 118
        %v2853 = vpop.permute.xlu0 %2852
        %2854 = vrot.lane.b32.xlu0 %v2008, 118
        %v2855 = vpop.permute.xlu0 %2854
        %2856 = vrot.lane.b32.xlu0 %v2182, 118
        %v2857 = vpop.permute.xlu0 %2856
        %vm2858 = vcmask 965632
        %v2859 = vsel %vm2858, %v2835, %v2837
        %v2860 = vsel %vm2858, %v2837, %v2839
        %v2861 = vsel %vm2858, %v2839, %v2841
        %v2862 = vsel %vm2858, %v2841, %v2843
        %v2863 = vsel %vm2858, %v2843, %v2845
        %v2864 = vsel %vm2858, %v2847, %v2849
        %v2865 = vsel %vm2858, %v2849, %v2851
        %v2866 = vsel %vm2858, %v2851, %v2853
        %v2867 = vsel %vm2858, %v2853, %v2855
        %v2868 = vsel %vm2858, %v2855, %v2857
        %v2879 = vadd.f32 %v2812, %v2859
        %v2880 = vadd.f32 %v2813, %v2860
        %v2881 = vadd.f32 %v2814, %v2861
        %v2882 = vadd.f32 %v2815, %v2862
        %v2883 = vadd.f32 %v2816, %v2863
        %v2884 = vadd.f32 %v2817, %v2864
        %v2885 = vadd.f32 %v2818, %v2865
        %v2886 = vadd.f32 %v2819, %v2866
        %v2887 = vadd.f32 %v2820, %v2867
        %v2888 = vadd.f32 %v2821, %v2868
        %2901 = vrot.lane.b32.xlu0 %v1299, 117
        %v2902 = vpop.permute.xlu0 %2901
        %2903 = vrot.lane.b32.xlu0 %v1477, 117
        %v2904 = vpop.permute.xlu0 %2903
        %2905 = vrot.lane.b32.xlu0 %v1655, 117
        %v2906 = vpop.permute.xlu0 %2905
        %2907 = vrot.lane.b32.xlu0 %v1833, 117
        %v2908 = vpop.permute.xlu0 %2907
        %2909 = vrot.lane.b32.xlu0 %v2011, 117
        %v2910 = vpop.permute.xlu0 %2909
        %2911 = vrot.lane.b32.xlu0 %v2185, 117
        %v2912 = vpop.permute.xlu0 %2911
        %2913 = vrot.lane.b32.xlu0 %v1301, 117
        %v2914 = vpop.permute.xlu0 %2913
        %2915 = vrot.lane.b32.xlu0 %v1479, 117
        %v2916 = vpop.permute.xlu0 %2915
        %2917 = vrot.lane.b32.xlu0 %v1657, 117
        %v2918 = vpop.permute.xlu0 %2917
        %2919 = vrot.lane.b32.xlu0 %v1835, 117
        %v2920 = vpop.permute.xlu0 %2919
        %2921 = vrot.lane.b32.xlu0 %v2013, 117
        %v2922 = vpop.permute.xlu0 %2921
        %2923 = vrot.lane.b32.xlu0 %v2187, 117
        %v2924 = vpop.permute.xlu0 %2923
        %vm2925 = vcmask 957440
        %v2926 = vsel %vm2925, %v2902, %v2904
        %v2927 = vsel %vm2925, %v2904, %v2906
        %v2928 = vsel %vm2925, %v2906, %v2908
        %v2929 = vsel %vm2925, %v2908, %v2910
        %v2930 = vsel %vm2925, %v2910, %v2912
        %v2931 = vsel %vm2925, %v2914, %v2916
        %v2932 = vsel %vm2925, %v2916, %v2918
        %v2933 = vsel %vm2925, %v2918, %v2920
        %v2934 = vsel %vm2925, %v2920, %v2922
        %v2935 = vsel %vm2925, %v2922, %v2924
        %v2946 = vadd.f32 %v2879, %v2926
        %v2947 = vadd.f32 %v2880, %v2927
        %v2948 = vadd.f32 %v2881, %v2928
        %v2949 = vadd.f32 %v2882, %v2929
        %v2950 = vadd.f32 %v2883, %v2930
        %v2951 = vadd.f32 %v2884, %v2931
        %v2952 = vadd.f32 %v2885, %v2932
        %v2953 = vadd.f32 %v2886, %v2933
        %v2954 = vadd.f32 %v2887, %v2934
        %v2955 = vadd.f32 %v2888, %v2935
        %2968 = vrot.lane.b32.xlu0 %v1304, 116
        %v2969 = vpop.permute.xlu0 %2968
        %2970 = vrot.lane.b32.xlu0 %v1482, 116
        %v2971 = vpop.permute.xlu0 %2970
        %2972 = vrot.lane.b32.xlu0 %v1660, 116
        %v2973 = vpop.permute.xlu0 %2972
        %2974 = vrot.lane.b32.xlu0 %v1838, 116
        %v2975 = vpop.permute.xlu0 %2974
        %2976 = vrot.lane.b32.xlu0 %v2016, 116
        %v2977 = vpop.permute.xlu0 %2976
        %2978 = vrot.lane.b32.xlu0 %v2190, 116
        %v2979 = vpop.permute.xlu0 %2978
        %2980 = vrot.lane.b32.xlu0 %v1306, 116
        %v2981 = vpop.permute.xlu0 %2980
        %2982 = vrot.lane.b32.xlu0 %v1484, 116
        %v2983 = vpop.permute.xlu0 %2982
        %2984 = vrot.lane.b32.xlu0 %v1662, 116
        %v2985 = vpop.permute.xlu0 %2984
        %2986 = vrot.lane.b32.xlu0 %v1840, 116
        %v2987 = vpop.permute.xlu0 %2986
        %2988 = vrot.lane.b32.xlu0 %v2018, 116
        %v2989 = vpop.permute.xlu0 %2988
        %2990 = vrot.lane.b32.xlu0 %v2192, 116
        %v2991 = vpop.permute.xlu0 %2990
        %vm2992 = vcmask 949248
        %v2993 = vsel %vm2992, %v2969, %v2971
        %v2994 = vsel %vm2992, %v2971, %v2973
        %v2995 = vsel %vm2992, %v2973, %v2975
        %v2996 = vsel %vm2992, %v2975, %v2977
        %v2997 = vsel %vm2992, %v2977, %v2979
        %v2998 = vsel %vm2992, %v2981, %v2983
        %v2999 = vsel %vm2992, %v2983, %v2985
        %v3000 = vsel %vm2992, %v2985, %v2987
        %v3001 = vsel %vm2992, %v2987, %v2989
        %v3002 = vsel %vm2992, %v2989, %v2991
        %v3013 = vadd.f32 %v2946, %v2993
        %v3014 = vadd.f32 %v2947, %v2994
        %v3015 = vadd.f32 %v2948, %v2995
        %v3016 = vadd.f32 %v2949, %v2996
        %v3017 = vadd.f32 %v2950, %v2997
        %v3018 = vadd.f32 %v2951, %v2998
        %v3019 = vadd.f32 %v2952, %v2999
        %v3020 = vadd.f32 %v2953, %v3000
        %v3021 = vadd.f32 %v2954, %v3001
        %v3022 = vadd.f32 %v2955, %v3002
        %3035 = vrot.lane.b32.xlu0 %v1309, 115
        %v3036 = vpop.permute.xlu0 %3035
        %3037 = vrot.lane.b32.xlu0 %v1487, 115
        %v3038 = vpop.permute.xlu0 %3037
        %3039 = vrot.lane.b32.xlu0 %v1665, 115
        %v3040 = vpop.permute.xlu0 %3039
        %3041 = vrot.lane.b32.xlu0 %v1843, 115
        %v3042 = vpop.permute.xlu0 %3041
        %3043 = vrot.lane.b32.xlu0 %v2021, 115
        %v3044 = vpop.permute.xlu0 %3043
        %3045 = vrot.lane.b32.xlu0 %v2195, 115
        %v3046 = vpop.permute.xlu0 %3045
        %3047 = vrot.lane.b32.xlu0 %v1311, 115
        %v3048 = vpop.permute.xlu0 %3047
        %3049 = vrot.lane.b32.xlu0 %v1489, 115
        %v3050 = vpop.permute.xlu0 %3049
        %3051 = vrot.lane.b32.xlu0 %v1667, 115
        %v3052 = vpop.permute.xlu0 %3051
        %3053 = vrot.lane.b32.xlu0 %v1845, 115
        %v3054 = vpop.permute.xlu0 %3053
        %3055 = vrot.lane.b32.xlu0 %v2023, 115
        %v3056 = vpop.permute.xlu0 %3055
        %3057 = vrot.lane.b32.xlu0 %v2197, 115
        %v3058 = vpop.permute.xlu0 %3057
        %vm3059 = vcmask 941056
        %v3060 = vsel %vm3059, %v3036, %v3038
        %v3061 = vsel %vm3059, %v3038, %v3040
        %v3062 = vsel %vm3059, %v3040, %v3042
        %v3063 = vsel %vm3059, %v3042, %v3044
        %v3064 = vsel %vm3059, %v3044, %v3046
        %v3065 = vsel %vm3059, %v3048, %v3050
        %v3066 = vsel %vm3059, %v3050, %v3052
        %v3067 = vsel %vm3059, %v3052, %v3054
        %v3068 = vsel %vm3059, %v3054, %v3056
        %v3069 = vsel %vm3059, %v3056, %v3058
        %v3080 = vadd.f32 %v3013, %v3060
        %v3081 = vadd.f32 %v3014, %v3061
        %v3082 = vadd.f32 %v3015, %v3062
        %v3083 = vadd.f32 %v3016, %v3063
        %v3084 = vadd.f32 %v3017, %v3064
        %v3085 = vadd.f32 %v3018, %v3065
        %v3086 = vadd.f32 %v3019, %v3066
        %v3087 = vadd.f32 %v3020, %v3067
        %v3088 = vadd.f32 %v3021, %v3068
        %v3089 = vadd.f32 %v3022, %v3069
        %3102 = vrot.lane.b32.xlu0 %v1314, 114
        %v3103 = vpop.permute.xlu0 %3102
        %3104 = vrot.lane.b32.xlu0 %v1492, 114
        %v3105 = vpop.permute.xlu0 %3104
        %3106 = vrot.lane.b32.xlu0 %v1670, 114
        %v3107 = vpop.permute.xlu0 %3106
        %3108 = vrot.lane.b32.xlu0 %v1848, 114
        %v3109 = vpop.permute.xlu0 %3108
        %3110 = vrot.lane.b32.xlu0 %v2026, 114
        %v3111 = vpop.permute.xlu0 %3110
        %3112 = vrot.lane.b32.xlu0 %v2200, 114
        %v3113 = vpop.permute.xlu0 %3112
        %3114 = vrot.lane.b32.xlu0 %v1316, 114
        %v3115 = vpop.permute.xlu0 %3114
        %3116 = vrot.lane.b32.xlu0 %v1494, 114
        %v3117 = vpop.permute.xlu0 %3116
        %3118 = vrot.lane.b32.xlu0 %v1672, 114
        %v3119 = vpop.permute.xlu0 %3118
        %3120 = vrot.lane.b32.xlu0 %v1850, 114
        %v3121 = vpop.permute.xlu0 %3120
        %3122 = vrot.lane.b32.xlu0 %v2028, 114
        %v3123 = vpop.permute.xlu0 %3122
        %3124 = vrot.lane.b32.xlu0 %v2202, 114
        %v3125 = vpop.permute.xlu0 %3124
        %vm3126 = vcmask 932864
        %v3127 = vsel %vm3126, %v3103, %v3105
        %v3128 = vsel %vm3126, %v3105, %v3107
        %v3129 = vsel %vm3126, %v3107, %v3109
        %v3130 = vsel %vm3126, %v3109, %v3111
        %v3131 = vsel %vm3126, %v3111, %v3113
        %v3132 = vsel %vm3126, %v3115, %v3117
        %v3133 = vsel %vm3126, %v3117, %v3119
        %v3134 = vsel %vm3126, %v3119, %v3121
        %v3135 = vsel %vm3126, %v3121, %v3123
        %v3136 = vsel %vm3126, %v3123, %v3125
        %v3147 = vadd.f32 %v3080, %v3127
        %v3148 = vadd.f32 %v3081, %v3128
        %v3149 = vadd.f32 %v3082, %v3129
        %v3150 = vadd.f32 %v3083, %v3130
        %v3151 = vadd.f32 %v3084, %v3131
        %v3152 = vadd.f32 %v3085, %v3132
        %v3153 = vadd.f32 %v3086, %v3133
        %v3154 = vadd.f32 %v3087, %v3134
        %v3155 = vadd.f32 %v3088, %v3135
        %v3156 = vadd.f32 %v3089, %v3136
        %3169 = vrot.lane.b32.xlu0 %v1319, 113
        %v3170 = vpop.permute.xlu0 %3169
        %3171 = vrot.lane.b32.xlu0 %v1497, 113
        %v3172 = vpop.permute.xlu0 %3171
        %3173 = vrot.lane.b32.xlu0 %v1675, 113
        %v3174 = vpop.permute.xlu0 %3173
        %3175 = vrot.lane.b32.xlu0 %v1853, 113
        %v3176 = vpop.permute.xlu0 %3175
        %3177 = vrot.lane.b32.xlu0 %v2031, 113
        %v3178 = vpop.permute.xlu0 %3177
        %3179 = vrot.lane.b32.xlu0 %v2205, 113
        %v3180 = vpop.permute.xlu0 %3179
        %3181 = vrot.lane.b32.xlu0 %v1321, 113
        %v3182 = vpop.permute.xlu0 %3181
        %3183 = vrot.lane.b32.xlu0 %v1499, 113
        %v3184 = vpop.permute.xlu0 %3183
        %3185 = vrot.lane.b32.xlu0 %v1677, 113
        %v3186 = vpop.permute.xlu0 %3185
        %3187 = vrot.lane.b32.xlu0 %v1855, 113
        %v3188 = vpop.permute.xlu0 %3187
        %3189 = vrot.lane.b32.xlu0 %v2033, 113
        %v3190 = vpop.permute.xlu0 %3189
        %3191 = vrot.lane.b32.xlu0 %v2207, 113
        %v3192 = vpop.permute.xlu0 %3191
        %vm3193 = vcmask 924672
        %v3194 = vsel %vm3193, %v3170, %v3172
        %v3195 = vsel %vm3193, %v3172, %v3174
        %v3196 = vsel %vm3193, %v3174, %v3176
        %v3197 = vsel %vm3193, %v3176, %v3178
        %v3198 = vsel %vm3193, %v3178, %v3180
        %v3199 = vsel %vm3193, %v3182, %v3184
        %v3200 = vsel %vm3193, %v3184, %v3186
        %v3201 = vsel %vm3193, %v3186, %v3188
        %v3202 = vsel %vm3193, %v3188, %v3190
        %v3203 = vsel %vm3193, %v3190, %v3192
        %v3214 = vadd.f32 %v3147, %v3194
        %v3215 = vadd.f32 %v3148, %v3195
        %v3216 = vadd.f32 %v3149, %v3196
        %v3217 = vadd.f32 %v3150, %v3197
        %v3218 = vadd.f32 %v3151, %v3198
        %v3219 = vadd.f32 %v3152, %v3199
        %v3220 = vadd.f32 %v3153, %v3200
        %v3221 = vadd.f32 %v3154, %v3201
        %v3222 = vadd.f32 %v3155, %v3202
        %v3223 = vadd.f32 %v3156, %v3203
        %v3224 = vld [vmem:[%s2] sm:$0xff]
        %v3225 = vld [vmem:[%s2 + $0x8] sm:$0xff]
        %3227 = vset.pattern.permute.xlu0 0
        %3228 = vperm.xlu0 %3227, %v3224
        %v3229 = vpop.permute.xlu0 %3228
        %3232 = vset.pattern.permute.xlu0 0
        %3233 = vperm.xlu0 %3232, %v3225
        %v3234 = vpop.permute.xlu0 %3233
        %v3236 = vadd.f32 %v3214, %v3229
        %v3237 = vadd.f32 %v3215, %v3229
        %v3238 = vadd.f32 %v3216, %v3229
        %v3239 = vadd.f32 %v3217, %v3229
        %v3240 = vadd.f32 %v3218, %v3229
        %v3241 = vadd.f32 %v3219, %v3234
        %v3242 = vadd.f32 %v3220, %v3234
        %v3243 = vadd.f32 %v3221, %v3234
        %v3244 = vadd.f32 %v3222, %v3234
        %v3245 = vadd.f32 %v3223, %v3234
        %v3246 = vtanh.pop %v3236
        %v3247 = vtanh.pop %v3237
        %v3248 = vtanh.pop %v3238
        %v3249 = vtanh.pop %v3239
        %v3250 = vtanh.pop %v3240
        %v3251 = vtanh.pop %v3241
        %v3252 = vtanh.pop %v3242
        %v3253 = vtanh.pop %v3243
        %v3254 = vtanh.pop %v3244
        %v3255 = vtanh.pop %v3245
        %v3256 = vpack.c.bf16 %v3247, %v3246
        %v3257 = vpack.c.bf16 %v3249, %v3248
        %v3258 = vpack.c.bf16 %v3250, %v3250
        %v3259 = vpack.c.bf16 %v3252, %v3251
        %v3260 = vpack.c.bf16 %v3254, %v3253
        %v3261 = vpack.c.bf16 %v3255, %v3255
        %3262 = vst [vmem:[%s374] sm:$0xff] %v3256
        %3263 = vst [vmem:[%s374 + $0x8] sm:$0xff] %v3257
        %3264 = vst [vmem:[%s374 + $0x10] sm:$0xf] %v3258
        %3265 = vst [vmem:[%s374 + $0x14] sm:$0xff] %v3259
        %3266 = vst [vmem:[%s374 + $0x1c] sm:$0xff] %v3260
        %3267 = vst [vmem:[%s374 + $0x24] sm:$0xf] %v3261
        %s3268 = sand.u32 %s90, 1
        %s3269 = sand.u32 %s90, 1
        %s3270 = smul.addr %s3269, 40
        %s3271 = scalar_lea.vmem [#allocation3], %s3270
        // Predicated region
        $region56: #{model_tanh_forward.2} parent=50 // pred_check
          %p3272 = pneg %p100
        $region57: #{model_tanh_forward.2} parent=50 // pred_check_branch
          %3274 = sbr.rel (%p3272) target = $region59
        $region58: #{model_tanh_forward.2} parent=50 // pred_region
          %s3275 = smul.u32 5, %s14
          %s3276 = smul.addr %s3275, 4
          %s3277 = scalar_lea.vmem %s3, %s3276
          // Predicated region
          $region60: #{model_tanh_forward.2} parent=58 // pred_check
            _
          $region61: #{model_tanh_forward.2} parent=58 // pred_check_branch
            %3279 = sbr.rel (0) target = $region63
          $region62: #{model_tanh_forward.2} parent=58 // pred_region
            // Predicated region
            $region64: #{model_tanh_forward.2} parent=62 // pred_check
              _
            $region65: #{model_tanh_forward.2} parent=62 // pred_check_branch
              %3281 = sbr.rel (0) target = $region67
            $region66: #{model_tanh_forward.2} parent=62 // pred_region
              %s3282 = scalar_lea.vmem %s3271, 16 [#allocation3]
              %s3283 = scalar_lea.vmem %s3277, 16
              loop: start=0, step=1, limit=1
              $region68: #{model_tanh_forward.2} parent=66 // loop_pre_header
                _
              $region69: #{model_tanh_forward.2} parent=66 // loop_header
                %s3285 = sphi 0, %s3289
                %p3286 = scmp.ge.s32.totalorder %s3285, 1
                %s3290 = sphi %s3271, %s3271
                %s3291 = sphi %s3277, %s3277
              $region70: #{model_tanh_forward.2} parent=66 // loop_header_branch
                %3288 = sbr.rel (%p3286) target = $region74
              $region71: #{model_tanh_forward.2} parent=66 // loop_body
                %v3292 = vld [vmem:[%s3290] sm:$0xff]
                %3293 = vst [vmem:[%s3291] sm:$0xff] %v3292
                %v3294 = vld [vmem:[%s3290 + $0x8] sm:$0xff]
                %3295 = vst [vmem:[%s3291 + $0x8] sm:$0xff] %v3294
                %v3296 = vld [vmem:[%s3290 + $0x14] sm:$0xff]
                %3297 = vst [vmem:[%s3291 + $0x28] sm:$0xff] %v3296
                %v3298 = vld [vmem:[%s3290 + $0x1c] sm:$0xff]
                %3299 = vst [vmem:[%s3291 + $0x30] sm:$0xff] %v3298
              $region72: #{model_tanh_forward.2} parent=66 // loop_footer
                %s3289 = sadd.s32 1, %s3285
              $region73: #{model_tanh_forward.2} parent=66 // loop_footer_branch
                %3284 = sbr.rel target = $region69
              $region74: #{model_tanh_forward.2} parent=66 // loop_exit
                _
              %s3301 = ssub.s32 16, 1
              loop: start=0, step=1, limit=1
              $region75: #{model_tanh_forward.2} parent=66 // loop_pre_header
                _
              $region76: #{model_tanh_forward.2} parent=66 // loop_header
                %s3303 = sphi 0, %s3307
                %p3304 = scmp.ge.s32.totalorder %s3303, 1
                %s3308 = sphi %s3282, %s3282
                %s3309 = sphi %s3283, %s3283
              $region77: #{model_tanh_forward.2} parent=66 // loop_header_branch
                %3306 = sbr.rel (%p3304) target = $region81
              $region78: #{model_tanh_forward.2} parent=66 // loop_body
                %v3310 = vld [vmem:[%s3308] sm:%s3301]
                %3311 = vst [vmem:[%s3309] sm:%s3301] %v3310
                %v3312 = vld [vmem:[%s3308 + $0x14] sm:%s3301]
                %3313 = vst [vmem:[%s3309 + $0x28] sm:%s3301] %v3312
              $region79: #{model_tanh_forward.2} parent=66 // loop_footer
                %s3307 = sadd.s32 1, %s3303
              $region80: #{model_tanh_forward.2} parent=66 // loop_footer_branch
                %3302 = sbr.rel target = $region76
              $region81: #{model_tanh_forward.2} parent=66 // loop_exit
                _
            $region67: #{model_tanh_forward.2} parent=62 // pred_fallthru
              _
          $region63: #{model_tanh_forward.2} parent=58 // pred_fallthru
            _
          %3314 = vnop
        $region59: #{model_tanh_forward.2} parent=50 // pred_fallthru
          _
      $region51: #{model_tanh_forward.2} parent=5 // pred_fallthru
        _
      %p3315 = scmp.le.s32.totalorder 2, %s9
      // Predicated region
      $region82: #{model_tanh_forward.2} parent=5 // pred_check
        %p3316 = pneg %p3315
      $region83: #{model_tanh_forward.2} parent=5 // pred_check_branch
        %3318 = sbr.rel (%p3316) target = $region85
      $region84: #{model_tanh_forward.2} parent=5 // pred_region
        %s3319 = ssub.s32 %s9, 2
        // Predicated region
        $region86: #{model_tanh_forward.2} parent=84 // pred_check
          %p3320 = pneg %p106
        $region87: #{model_tanh_forward.2} parent=84 // pred_check_branch
          %3322 = sbr.rel (%p3320) target = $region89
        $region88: #{model_tanh_forward.2} parent=84 // pred_region
          %s3323 = sand.u32 %s91, 1
          %s3324 = sand.u32 %s91, 1
          %s3325 = smul.addr %s3324, 40
          %s3326 = scalar_lea.vmem [#allocation3], %s3325
        $region89: #{model_tanh_forward.2} parent=84 // pred_fallthru
          _
      $region85: #{model_tanh_forward.2} parent=5 // pred_fallthru
        _
    $region6: #{model_tanh_forward.2} parent=1 // loop_footer
      %s13 = sadd.s32 1, %s9
    $region7: #{model_tanh_forward.2} parent=1 // loop_footer_branch
      %8 = sbr.rel target = $region3
    $region8: #{model_tanh_forward.2} parent=1 // loop_exit
      _

// kernel: model_tanh_forward.3
$region0: #{model_tanh_forward.3}
  #allocation0 [shape = 'u32[]', space=smem, size = 0x4, offset = 0x4, fixed_abs, tag = 'smem constant byte address 0x4 - core index']
  #allocation1 [shape = 'u32[72,128]{1,0:T(1,128)}', space=vmem, size = 0x9000, scoped, tag = 'internal scratch']
  %s0 = inlined_call_operand.vmem [shape: bf16[16,4096], index: 0, kind: input, shape index: {}]
  %s1 = inlined_call_operand.vmem [shape: bf16[4096,8], index: 1, kind: input, shape index: {}]
  %s2 = inlined_call_operand.vmem [shape: f32[16,1], index: 2, kind: input, shape index: {}]
  %s3 = inlined_call_operand.vmem [shape: f32[16,8], index: 3, kind: output, shape index: {}]
  %s4 = sld [smem:[#allocation0]]
  $region22: #{model_tanh_forward.3} parent=0
    _
  %s6 = ssub.s32 1, %s4
  %s7 = scalar_select 0, %s6, %s4
  // Predicated region
  $region2: #{model_tanh_forward.3} parent=0 // pred_check
    _
  $region3: #{model_tanh_forward.3} parent=0 // pred_check_branch
    %9 = sbr.rel (0) target = $region5
  $region4: #{model_tanh_forward.3} parent=0 // pred_region
    _
  $region5: #{model_tanh_forward.3} parent=0 // pred_fallthru
    _
  // Predicated region
  $region6: #{model_tanh_forward.3} parent=0 // pred_check
    _
  $region7: #{model_tanh_forward.3} parent=0 // pred_check_branch
    %11 = sbr.rel (0) target = $region9
  $region8: #{model_tanh_forward.3} parent=0 // pred_region
    _
  $region9: #{model_tanh_forward.3} parent=0 // pred_fallthru
    _
  // Predicated region
  $region10: #{model_tanh_forward.3} parent=0 // pred_check
    _
  $region11: #{model_tanh_forward.3} parent=0 // pred_check_branch
    %13 = sbr.rel (0) target = $region13
  $region12: #{model_tanh_forward.3} parent=0 // pred_region
    _
  $region13: #{model_tanh_forward.3} parent=0 // pred_fallthru
    _
  %v14 = vld [vmem:[%s0] sm:$0xff]
  %v15 = vld [vmem:[%s0 + $0x8] sm:$0xff]
  %v16 = vld [vmem:[%s0 + $0x10] sm:$0xff]
  %v17 = vld [vmem:[%s0 + $0x18] sm:$0xff]
  %v18 = vld [vmem:[%s0 + $0x20] sm:$0xff]
  %v19 = vld [vmem:[%s0 + $0x28] sm:$0xff]
  %v20 = vld [vmem:[%s0 + $0x30] sm:$0xff]
  %v21 = vld [vmem:[%s0 + $0x38] sm:$0xff]
  %v22 = vld [vmem:[%s0 + $0x40] sm:$0xff]
  %v23 = vld [vmem:[%s0 + $0x48] sm:$0xff]
  %v24 = vld [vmem:[%s0 + $0x50] sm:$0xff]
  %v25 = vld [vmem:[%s0 + $0x58] sm:$0xff]
  %v26 = vld [vmem:[%s0 + $0x60] sm:$0xff]
  %v27 = vld [vmem:[%s0 + $0x68] sm:$0xff]
  %v28 = vld [vmem:[%s0 + $0x70] sm:$0xff]
  %v29 = vld [vmem:[%s0 + $0x78] sm:$0xff]
  %v30 = vld [vmem:[%s0 + $0x80] sm:$0xff]
  %v31 = vld [vmem:[%s0 + $0x88] sm:$0xff]
  %v32 = vld [vmem:[%s0 + $0x90] sm:$0xff]
  %v33 = vld [vmem:[%s0 + $0x98] sm:$0xff]
  %v34 = vld [vmem:[%s0 + $0xa0] sm:$0xff]
  %v35 = vld [vmem:[%s0 + $0xa8] sm:$0xff]
  %v36 = vld [vmem:[%s0 + $0xb0] sm:$0xff]
  %v37 = vld [vmem:[%s0 + $0xb8] sm:$0xff]
  %v38 = vld [vmem:[%s0 + $0xc0] sm:$0xff]
  %v39 = vld [vmem:[%s0 + $0xc8] sm:$0xff]
  %v40 = vld [vmem:[%s0 + $0xd0] sm:$0xff]
  %v41 = vld [vmem:[%s0 + $0xd8] sm:$0xff]
  %v42 = vld [vmem:[%s0 + $0xe0] sm:$0xff]
  %v43 = vld [vmem:[%s0 + $0xe8] sm:$0xff]
  %v44 = vld [vmem:[%s0 + $0xf0] sm:$0xff]
  %v45 = vld [vmem:[%s0 + $0xf8] sm:$0xff]
  %v46 = vld [vmem:[%s1] sm:$0xf]
  %v47 = vld [vmem:[%s1 + $0x4] sm:$0xf]
  %v48 = vld [vmem:[%s1 + $0x8] sm:$0xf]
  %v49 = vld [vmem:[%s1 + $0xc] sm:$0xf]
  %v50 = vld [vmem:[%s1 + $0x10] sm:$0xf]
  %v51 = vld [vmem:[%s1 + $0x14] sm:$0xf]
  %v52 = vld [vmem:[%s1 + $0x18] sm:$0xf]
  %v53 = vld [vmem:[%s1 + $0x1c] sm:$0xf]
  %v54 = vld [vmem:[%s1 + $0x20] sm:$0xf]
  %v55 = vld [vmem:[%s1 + $0x24] sm:$0xf]
  %v56 = vld [vmem:[%s1 + $0x28] sm:$0xf]
  %v57 = vld [vmem:[%s1 + $0x2c] sm:$0xf]
  %v58 = vld [vmem:[%s1 + $0x30] sm:$0xf]
  %v59 = vld [vmem:[%s1 + $0x34] sm:$0xf]
  %v60 = vld [vmem:[%s1 + $0x38] sm:$0xf]
  %v61 = vld [vmem:[%s1 + $0x3c] sm:$0xf]
  %v62 = vld [vmem:[%s1 + $0x40] sm:$0xf]
  %v63 = vld [vmem:[%s1 + $0x44] sm:$0xf]
  %v64 = vld [vmem:[%s1 + $0x48] sm:$0xf]
  %v65 = vld [vmem:[%s1 + $0x4c] sm:$0xf]
  %v66 = vld [vmem:[%s1 + $0x50] sm:$0xf]
  %v67 = vld [vmem:[%s1 + $0x54] sm:$0xf]
  %v68 = vld [vmem:[%s1 + $0x58] sm:$0xf]
  %v69 = vld [vmem:[%s1 + $0x5c] sm:$0xf]
  %v70 = vld [vmem:[%s1 + $0x60] sm:$0xf]
  %v71 = vld [vmem:[%s1 + $0x64] sm:$0xf]
  %v72 = vld [vmem:[%s1 + $0x68] sm:$0xf]
  %v73 = vld [vmem:[%s1 + $0x6c] sm:$0xf]
  %v74 = vld [vmem:[%s1 + $0x70] sm:$0xf]
  %v75 = vld [vmem:[%s1 + $0x74] sm:$0xf]
  %v76 = vld [vmem:[%s1 + $0x78] sm:$0xf]
  %v77 = vld [vmem:[%s1 + $0x7c] sm:$0xf]
  %v78 = vld [vmem:[%s1 + $0x80] sm:$0xf]
  %v79 = vld [vmem:[%s1 + $0x84] sm:$0xf]
  %v80 = vld [vmem:[%s1 + $0x88] sm:$0xf]
  %v81 = vld [vmem:[%s1 + $0x8c] sm:$0xf]
  %v82 = vld [vmem:[%s1 + $0x90] sm:$0xf]
  %v83 = vld [vmem:[%s1 + $0x94] sm:$0xf]
  %v84 = vld [vmem:[%s1 + $0x98] sm:$0xf]
  %v85 = vld [vmem:[%s1 + $0x9c] sm:$0xf]
  %v86 = vld [vmem:[%s1 + $0xa0] sm:$0xf]
  %v87 = vld [vmem:[%s1 + $0xa4] sm:$0xf]
  %v88 = vld [vmem:[%s1 + $0xa8] sm:$0xf]
  %v89 = vld [vmem:[%s1 + $0xac] sm:$0xf]
  %v90 = vld [vmem:[%s1 + $0xb0] sm:$0xf]
  %v91 = vld [vmem:[%s1 + $0xb4] sm:$0xf]
  %v92 = vld [vmem:[%s1 + $0xb8] sm:$0xf]
  %v93 = vld [vmem:[%s1 + $0xbc] sm:$0xf]
  %v94 = vld [vmem:[%s1 + $0xc0] sm:$0xf]
  %v95 = vld [vmem:[%s1 + $0xc4] sm:$0xf]
  %v96 = vld [vmem:[%s1 + $0xc8] sm:$0xf]
  %v97 = vld [vmem:[%s1 + $0xcc] sm:$0xf]
  %v98 = vld [vmem:[%s1 + $0xd0] sm:$0xf]
  %v99 = vld [vmem:[%s1 + $0xd4] sm:$0xf]
  %v100 = vld [vmem:[%s1 + $0xd8] sm:$0xf]
  %v101 = vld [vmem:[%s1 + $0xdc] sm:$0xf]
  %v102 = vld [vmem:[%s1 + $0xe0] sm:$0xf]
  %v103 = vld [vmem:[%s1 + $0xe4] sm:$0xf]
  %v104 = vld [vmem:[%s1 + $0xe8] sm:$0xf]
  %v105 = vld [vmem:[%s1 + $0xec] sm:$0xf]
  %v106 = vld [vmem:[%s1 + $0xf0] sm:$0xf]
  %v107 = vld [vmem:[%s1 + $0xf4] sm:$0xf]
  %v108 = vld [vmem:[%s1 + $0xf8] sm:$0xf]
  %v109 = vld [vmem:[%s1 + $0xfc] sm:$0xf]
  %v110 = vld [vmem:[%s1 + $0x100] sm:$0xf]
  %v111 = vld [vmem:[%s1 + $0x104] sm:$0xf]
  %v112 = vld [vmem:[%s1 + $0x108] sm:$0xf]
  %v113 = vld [vmem:[%s1 + $0x10c] sm:$0xf]
  %v114 = vld [vmem:[%s1 + $0x110] sm:$0xf]
  %v115 = vld [vmem:[%s1 + $0x114] sm:$0xf]
  %v116 = vld [vmem:[%s1 + $0x118] sm:$0xf]
  %v117 = vld [vmem:[%s1 + $0x11c] sm:$0xf]
  %v118 = vld [vmem:[%s1 + $0x120] sm:$0xf]
  %v119 = vld [vmem:[%s1 + $0x124] sm:$0xf]
  %v120 = vld [vmem:[%s1 + $0x128] sm:$0xf]
  %v121 = vld [vmem:[%s1 + $0x12c] sm:$0xf]
  %v122 = vld [vmem:[%s1 + $0x130] sm:$0xf]
  %v123 = vld [vmem:[%s1 + $0x134] sm:$0xf]
  %v124 = vld [vmem:[%s1 + $0x138] sm:$0xf]
  %v125 = vld [vmem:[%s1 + $0x13c] sm:$0xf]
  %v126 = vld [vmem:[%s1 + $0x140] sm:$0xf]
  %v127 = vld [vmem:[%s1 + $0x144] sm:$0xf]
  %v128 = vld [vmem:[%s1 + $0x148] sm:$0xf]
  %v129 = vld [vmem:[%s1 + $0x14c] sm:$0xf]
  %v130 = vld [vmem:[%s1 + $0x150] sm:$0xf]
  %v131 = vld [vmem:[%s1 + $0x154] sm:$0xf]
  %v132 = vld [vmem:[%s1 + $0x158] sm:$0xf]
  %v133 = vld [vmem:[%s1 + $0x15c] sm:$0xf]
  %v134 = vld [vmem:[%s1 + $0x160] sm:$0xf]
  %v135 = vld [vmem:[%s1 + $0x164] sm:$0xf]
  %v136 = vld [vmem:[%s1 + $0x168] sm:$0xf]
  %v137 = vld [vmem:[%s1 + $0x16c] sm:$0xf]
  %v138 = vld [vmem:[%s1 + $0x170] sm:$0xf]
  %v139 = vld [vmem:[%s1 + $0x174] sm:$0xf]
  %v140 = vld [vmem:[%s1 + $0x178] sm:$0xf]
  %v141 = vld [vmem:[%s1 + $0x17c] sm:$0xf]
  %v142 = vld [vmem:[%s1 + $0x180] sm:$0xf]
  %v143 = vld [vmem:[%s1 + $0x184] sm:$0xf]
  %v144 = vld [vmem:[%s1 + $0x188] sm:$0xf]
  %v145 = vld [vmem:[%s1 + $0x18c] sm:$0xf]
  %v146 = vld [vmem:[%s1 + $0x190] sm:$0xf]
  %v147 = vld [vmem:[%s1 + $0x194] sm:$0xf]
  %v148 = vld [vmem:[%s1 + $0x198] sm:$0xf]
  %v149 = vld [vmem:[%s1 + $0x19c] sm:$0xf]
  %v150 = vld [vmem:[%s1 + $0x1a0] sm:$0xf]
  %v151 = vld [vmem:[%s1 + $0x1a4] sm:$0xf]
  %v152 = vld [vmem:[%s1 + $0x1a8] sm:$0xf]
  %v153 = vld [vmem:[%s1 + $0x1ac] sm:$0xf]
  %v154 = vld [vmem:[%s1 + $0x1b0] sm:$0xf]
  %v155 = vld [vmem:[%s1 + $0x1b4] sm:$0xf]
  %v156 = vld [vmem:[%s1 + $0x1b8] sm:$0xf]
  %v157 = vld [vmem:[%s1 + $0x1bc] sm:$0xf]
  %v158 = vld [vmem:[%s1 + $0x1c0] sm:$0xf]
  %v159 = vld [vmem:[%s1 + $0x1c4] sm:$0xf]
  %v160 = vld [vmem:[%s1 + $0x1c8] sm:$0xf]
  %v161 = vld [vmem:[%s1 + $0x1cc] sm:$0xf]
  %v162 = vld [vmem:[%s1 + $0x1d0] sm:$0xf]
  %v163 = vld [vmem:[%s1 + $0x1d4] sm:$0xf]
  %v164 = vld [vmem:[%s1 + $0x1d8] sm:$0xf]
  %v165 = vld [vmem:[%s1 + $0x1dc] sm:$0xf]
  %v166 = vld [vmem:[%s1 + $0x1e0] sm:$0xf]
  %v167 = vld [vmem:[%s1 + $0x1e4] sm:$0xf]
  %v168 = vld [vmem:[%s1 + $0x1e8] sm:$0xf]
  %v169 = vld [vmem:[%s1 + $0x1ec] sm:$0xf]
  %v170 = vld [vmem:[%s1 + $0x1f0] sm:$0xf]
  %v171 = vld [vmem:[%s1 + $0x1f4] sm:$0xf]
  %v172 = vld [vmem:[%s1 + $0x1f8] sm:$0xf]
  %v173 = vld [vmem:[%s1 + $0x1fc] sm:$0xf]
  %v174 = vld [vmem:[%s1 + $0x200] sm:$0xf]
  %v175 = vld [vmem:[%s1 + $0x204] sm:$0xf]
  %v176 = vld [vmem:[%s1 + $0x208] sm:$0xf]
  %v177 = vld [vmem:[%s1 + $0x20c] sm:$0xf]
  %v178 = vld [vmem:[%s1 + $0x210] sm:$0xf]
  %v179 = vld [vmem:[%s1 + $0x214] sm:$0xf]
  %v180 = vld [vmem:[%s1 + $0x218] sm:$0xf]
  %v181 = vld [vmem:[%s1 + $0x21c] sm:$0xf]
  %v182 = vld [vmem:[%s1 + $0x220] sm:$0xf]
  %v183 = vld [vmem:[%s1 + $0x224] sm:$0xf]
  %v184 = vld [vmem:[%s1 + $0x228] sm:$0xf]
  %v185 = vld [vmem:[%s1 + $0x22c] sm:$0xf]
  %v186 = vld [vmem:[%s1 + $0x230] sm:$0xf]
  %v187 = vld [vmem:[%s1 + $0x234] sm:$0xf]
  %v188 = vld [vmem:[%s1 + $0x238] sm:$0xf]
  %v189 = vld [vmem:[%s1 + $0x23c] sm:$0xf]
  %v190 = vld [vmem:[%s1 + $0x240] sm:$0xf]
  %v191 = vld [vmem:[%s1 + $0x244] sm:$0xf]
  %v192 = vld [vmem:[%s1 + $0x248] sm:$0xf]
  %v193 = vld [vmem:[%s1 + $0x24c] sm:$0xf]
  %v194 = vld [vmem:[%s1 + $0x250] sm:$0xf]
  %v195 = vld [vmem:[%s1 + $0x254] sm:$0xf]
  %v196 = vld [vmem:[%s1 + $0x258] sm:$0xf]
  %v197 = vld [vmem:[%s1 + $0x25c] sm:$0xf]
  %v198 = vld [vmem:[%s1 + $0x260] sm:$0xf]
  %v199 = vld [vmem:[%s1 + $0x264] sm:$0xf]
  %v200 = vld [vmem:[%s1 + $0x268] sm:$0xf]
  %v201 = vld [vmem:[%s1 + $0x26c] sm:$0xf]
  %v202 = vld [vmem:[%s1 + $0x270] sm:$0xf]
  %v203 = vld [vmem:[%s1 + $0x274] sm:$0xf]
  %v204 = vld [vmem:[%s1 + $0x278] sm:$0xf]
  %v205 = vld [vmem:[%s1 + $0x27c] sm:$0xf]
  %v206 = vld [vmem:[%s1 + $0x280] sm:$0xf]
  %v207 = vld [vmem:[%s1 + $0x284] sm:$0xf]
  %v208 = vld [vmem:[%s1 + $0x288] sm:$0xf]
  %v209 = vld [vmem:[%s1 + $0x28c] sm:$0xf]
  %v210 = vld [vmem:[%s1 + $0x290] sm:$0xf]
  %v211 = vld [vmem:[%s1 + $0x294] sm:$0xf]
  %v212 = vld [vmem:[%s1 + $0x298] sm:$0xf]
  %v213 = vld [vmem:[%s1 + $0x29c] sm:$0xf]
  %v214 = vld [vmem:[%s1 + $0x2a0] sm:$0xf]
  %v215 = vld [vmem:[%s1 + $0x2a4] sm:$0xf]
  %v216 = vld [vmem:[%s1 + $0x2a8] sm:$0xf]
  %v217 = vld [vmem:[%s1 + $0x2ac] sm:$0xf]
  %v218 = vld [vmem:[%s1 + $0x2b0] sm:$0xf]
  %v219 = vld [vmem:[%s1 + $0x2b4] sm:$0xf]
  %v220 = vld [vmem:[%s1 + $0x2b8] sm:$0xf]
  %v221 = vld [vmem:[%s1 + $0x2bc] sm:$0xf]
  %v222 = vld [vmem:[%s1 + $0x2c0] sm:$0xf]
  %v223 = vld [vmem:[%s1 + $0x2c4] sm:$0xf]
  %v224 = vld [vmem:[%s1 + $0x2c8] sm:$0xf]
  %v225 = vld [vmem:[%s1 + $0x2cc] sm:$0xf]
  %v226 = vld [vmem:[%s1 + $0x2d0] sm:$0xf]
  %v227 = vld [vmem:[%s1 + $0x2d4] sm:$0xf]
  %v228 = vld [vmem:[%s1 + $0x2d8] sm:$0xf]
  %v229 = vld [vmem:[%s1 + $0x2dc] sm:$0xf]
  %v230 = vld [vmem:[%s1 + $0x2e0] sm:$0xf]
  %v231 = vld [vmem:[%s1 + $0x2e4] sm:$0xf]
  %v232 = vld [vmem:[%s1 + $0x2e8] sm:$0xf]
  %v233 = vld [vmem:[%s1 + $0x2ec] sm:$0xf]
  %v234 = vld [vmem:[%s1 + $0x2f0] sm:$0xf]
  %v235 = vld [vmem:[%s1 + $0x2f4] sm:$0xf]
  %v236 = vld [vmem:[%s1 + $0x2f8] sm:$0xf]
  %v237 = vld [vmem:[%s1 + $0x2fc] sm:$0xf]
  %v238 = vld [vmem:[%s1 + $0x300] sm:$0xf]
  %v239 = vld [vmem:[%s1 + $0x304] sm:$0xf]
  %v240 = vld [vmem:[%s1 + $0x308] sm:$0xf]
  %v241 = vld [vmem:[%s1 + $0x30c] sm:$0xf]
  %v242 = vld [vmem:[%s1 + $0x310] sm:$0xf]
  %v243 = vld [vmem:[%s1 + $0x314] sm:$0xf]
  %v244 = vld [vmem:[%s1 + $0x318] sm:$0xf]
  %v245 = vld [vmem:[%s1 + $0x31c] sm:$0xf]
  %v246 = vld [vmem:[%s1 + $0x320] sm:$0xf]
  %v247 = vld [vmem:[%s1 + $0x324] sm:$0xf]
  %v248 = vld [vmem:[%s1 + $0x328] sm:$0xf]
  %v249 = vld [vmem:[%s1 + $0x32c] sm:$0xf]
  %v250 = vld [vmem:[%s1 + $0x330] sm:$0xf]
  %v251 = vld [vmem:[%s1 + $0x334] sm:$0xf]
  %v252 = vld [vmem:[%s1 + $0x338] sm:$0xf]
  %v253 = vld [vmem:[%s1 + $0x33c] sm:$0xf]
  %v254 = vld [vmem:[%s1 + $0x340] sm:$0xf]
  %v255 = vld [vmem:[%s1 + $0x344] sm:$0xf]
  %v256 = vld [vmem:[%s1 + $0x348] sm:$0xf]
  %v257 = vld [vmem:[%s1 + $0x34c] sm:$0xf]
  %v258 = vld [vmem:[%s1 + $0x350] sm:$0xf]
  %v259 = vld [vmem:[%s1 + $0x354] sm:$0xf]
  %v260 = vld [vmem:[%s1 + $0x358] sm:$0xf]
  %v261 = vld [vmem:[%s1 + $0x35c] sm:$0xf]
  %v262 = vld [vmem:[%s1 + $0x360] sm:$0xf]
  %v263 = vld [vmem:[%s1 + $0x364] sm:$0xf]
  %v264 = vld [vmem:[%s1 + $0x368] sm:$0xf]
  %v265 = vld [vmem:[%s1 + $0x36c] sm:$0xf]
  %v266 = vld [vmem:[%s1 + $0x370] sm:$0xf]
  %v267 = vld [vmem:[%s1 + $0x374] sm:$0xf]
  %v268 = vld [vmem:[%s1 + $0x378] sm:$0xf]
  %v269 = vld [vmem:[%s1 + $0x37c] sm:$0xf]
  %v270 = vld [vmem:[%s1 + $0x380] sm:$0xf]
  %v271 = vld [vmem:[%s1 + $0x384] sm:$0xf]
  %v272 = vld [vmem:[%s1 + $0x388] sm:$0xf]
  %v273 = vld [vmem:[%s1 + $0x38c] sm:$0xf]
  %v274 = vld [vmem:[%s1 + $0x390] sm:$0xf]
  %v275 = vld [vmem:[%s1 + $0x394] sm:$0xf]
  %v276 = vld [vmem:[%s1 + $0x398] sm:$0xf]
  %v277 = vld [vmem:[%s1 + $0x39c] sm:$0xf]
  %v278 = vld [vmem:[%s1 + $0x3a0] sm:$0xf]
  %v279 = vld [vmem:[%s1 + $0x3a4] sm:$0xf]
  %v280 = vld [vmem:[%s1 + $0x3a8] sm:$0xf]
  %v281 = vld [vmem:[%s1 + $0x3ac] sm:$0xf]
  %v282 = vld [vmem:[%s1 + $0x3b0] sm:$0xf]
  %v283 = vld [vmem:[%s1 + $0x3b4] sm:$0xf]
  %v284 = vld [vmem:[%s1 + $0x3b8] sm:$0xf]
  %v285 = vld [vmem:[%s1 + $0x3bc] sm:$0xf]
  %v286 = vld [vmem:[%s1 + $0x3c0] sm:$0xf]
  %v287 = vld [vmem:[%s1 + $0x3c4] sm:$0xf]
  %v288 = vld [vmem:[%s1 + $0x3c8] sm:$0xf]
  %v289 = vld [vmem:[%s1 + $0x3cc] sm:$0xf]
  %v290 = vld [vmem:[%s1 + $0x3d0] sm:$0xf]
  %v291 = vld [vmem:[%s1 + $0x3d4] sm:$0xf]
  %v292 = vld [vmem:[%s1 + $0x3d8] sm:$0xf]
  %v293 = vld [vmem:[%s1 + $0x3dc] sm:$0xf]
  %v294 = vld [vmem:[%s1 + $0x3e0] sm:$0xf]
  %v295 = vld [vmem:[%s1 + $0x3e4] sm:$0xf]
  %v296 = vld [vmem:[%s1 + $0x3e8] sm:$0xf]
  %v297 = vld [vmem:[%s1 + $0x3ec] sm:$0xf]
  %v298 = vld [vmem:[%s1 + $0x3f0] sm:$0xf]
  %v299 = vld [vmem:[%s1 + $0x3f4] sm:$0xf]
  %v300 = vld [vmem:[%s1 + $0x3f8] sm:$0xf]
  %v301 = vld [vmem:[%s1 + $0x3fc] sm:$0xf]
  %v302 = vld [vmem:[%s1 + $0x400] sm:$0xf]
  %v303 = vld [vmem:[%s1 + $0x404] sm:$0xf]
  %v304 = vld [vmem:[%s1 + $0x408] sm:$0xf]
  %v305 = vld [vmem:[%s1 + $0x40c] sm:$0xf]
  %v306 = vld [vmem:[%s1 + $0x410] sm:$0xf]
  %v307 = vld [vmem:[%s1 + $0x414] sm:$0xf]
  %v308 = vld [vmem:[%s1 + $0x418] sm:$0xf]
  %v309 = vld [vmem:[%s1 + $0x41c] sm:$0xf]
  %v310 = vld [vmem:[%s1 + $0x420] sm:$0xf]
  %v311 = vld [vmem:[%s1 + $0x424] sm:$0xf]
  %v312 = vld [vmem:[%s1 + $0x428] sm:$0xf]
  %v313 = vld [vmem:[%s1 + $0x42c] sm:$0xf]
  %v314 = vld [vmem:[%s1 + $0x430] sm:$0xf]
  %v315 = vld [vmem:[%s1 + $0x434] sm:$0xf]
  %v316 = vld [vmem:[%s1 + $0x438] sm:$0xf]
  %v317 = vld [vmem:[%s1 + $0x43c] sm:$0xf]
  %v318 = vld [vmem:[%s1 + $0x440] sm:$0xf]
  %v319 = vld [vmem:[%s1 + $0x444] sm:$0xf]
  %v320 = vld [vmem:[%s1 + $0x448] sm:$0xf]
  %v321 = vld [vmem:[%s1 + $0x44c] sm:$0xf]
  %v322 = vld [vmem:[%s1 + $0x450] sm:$0xf]
  %v323 = vld [vmem:[%s1 + $0x454] sm:$0xf]
  %v324 = vld [vmem:[%s1 + $0x458] sm:$0xf]
  %v325 = vld [vmem:[%s1 + $0x45c] sm:$0xf]
  %v326 = vld [vmem:[%s1 + $0x460] sm:$0xf]
  %v327 = vld [vmem:[%s1 + $0x464] sm:$0xf]
  %v328 = vld [vmem:[%s1 + $0x468] sm:$0xf]
  %v329 = vld [vmem:[%s1 + $0x46c] sm:$0xf]
  %v330 = vld [vmem:[%s1 + $0x470] sm:$0xf]
  %v331 = vld [vmem:[%s1 + $0x474] sm:$0xf]
  %v332 = vld [vmem:[%s1 + $0x478] sm:$0xf]
  %v333 = vld [vmem:[%s1 + $0x47c] sm:$0xf]
  %v334 = vld [vmem:[%s1 + $0x480] sm:$0xf]
  %v335 = vld [vmem:[%s1 + $0x484] sm:$0xf]
  %v336 = vld [vmem:[%s1 + $0x488] sm:$0xf]
  %v337 = vld [vmem:[%s1 + $0x48c] sm:$0xf]
  %v338 = vld [vmem:[%s1 + $0x490] sm:$0xf]
  %v339 = vld [vmem:[%s1 + $0x494] sm:$0xf]
  %v340 = vld [vmem:[%s1 + $0x498] sm:$0xf]
  %v341 = vld [vmem:[%s1 + $0x49c] sm:$0xf]
  %v342 = vld [vmem:[%s1 + $0x4a0] sm:$0xf]
  %v343 = vld [vmem:[%s1 + $0x4a4] sm:$0xf]
  %v344 = vld [vmem:[%s1 + $0x4a8] sm:$0xf]
  %v345 = vld [vmem:[%s1 + $0x4ac] sm:$0xf]
  %v346 = vld [vmem:[%s1 + $0x4b0] sm:$0xf]
  %v347 = vld [vmem:[%s1 + $0x4b4] sm:$0xf]
  %v348 = vld [vmem:[%s1 + $0x4b8] sm:$0xf]
  %v349 = vld [vmem:[%s1 + $0x4bc] sm:$0xf]
  %v350 = vld [vmem:[%s1 + $0x4c0] sm:$0xf]
  %v351 = vld [vmem:[%s1 + $0x4c4] sm:$0xf]
  %v352 = vld [vmem:[%s1 + $0x4c8] sm:$0xf]
  %v353 = vld [vmem:[%s1 + $0x4cc] sm:$0xf]
  %v354 = vld [vmem:[%s1 + $0x4d0] sm:$0xf]
  %v355 = vld [vmem:[%s1 + $0x4d4] sm:$0xf]
  %v356 = vld [vmem:[%s1 + $0x4d8] sm:$0xf]
  %v357 = vld [vmem:[%s1 + $0x4dc] sm:$0xf]
  %v358 = vld [vmem:[%s1 + $0x4e0] sm:$0xf]
  %v359 = vld [vmem:[%s1 + $0x4e4] sm:$0xf]
  %v360 = vld [vmem:[%s1 + $0x4e8] sm:$0xf]
  %v361 = vld [vmem:[%s1 + $0x4ec] sm:$0xf]
  %v362 = vld [vmem:[%s1 + $0x4f0] sm:$0xf]
  %v363 = vld [vmem:[%s1 + $0x4f4] sm:$0xf]
  %v364 = vld [vmem:[%s1 + $0x4f8] sm:$0xf]
  %v365 = vld [vmem:[%s1 + $0x4fc] sm:$0xf]
  %v366 = vld [vmem:[%s1 + $0x500] sm:$0xf]
  %v367 = vld [vmem:[%s1 + $0x504] sm:$0xf]
  %v368 = vld [vmem:[%s1 + $0x508] sm:$0xf]
  %v369 = vld [vmem:[%s1 + $0x50c] sm:$0xf]
  %v370 = vld [vmem:[%s1 + $0x510] sm:$0xf]
  %v371 = vld [vmem:[%s1 + $0x514] sm:$0xf]
  %v372 = vld [vmem:[%s1 + $0x518] sm:$0xf]
  %v373 = vld [vmem:[%s1 + $0x51c] sm:$0xf]
  %v374 = vld [vmem:[%s1 + $0x520] sm:$0xf]
  %v375 = vld [vmem:[%s1 + $0x524] sm:$0xf]
  %v376 = vld [vmem:[%s1 + $0x528] sm:$0xf]
  %v377 = vld [vmem:[%s1 + $0x52c] sm:$0xf]
  %v378 = vld [vmem:[%s1 + $0x530] sm:$0xf]
  %v379 = vld [vmem:[%s1 + $0x534] sm:$0xf]
  %v380 = vld [vmem:[%s1 + $0x538] sm:$0xf]
  %v381 = vld [vmem:[%s1 + $0x53c] sm:$0xf]
  %v382 = vld [vmem:[%s1 + $0x540] sm:$0xf]
  %v383 = vld [vmem:[%s1 + $0x544] sm:$0xf]
  %v384 = vld [vmem:[%s1 + $0x548] sm:$0xf]
  %v385 = vld [vmem:[%s1 + $0x54c] sm:$0xf]
  %v386 = vld [vmem:[%s1 + $0x550] sm:$0xf]
  %v387 = vld [vmem:[%s1 + $0x554] sm:$0xf]
  %v388 = vld [vmem:[%s1 + $0x558] sm:$0xf]
  %v389 = vld [vmem:[%s1 + $0x55c] sm:$0xf]
  %v390 = vld [vmem:[%s1 + $0x560] sm:$0xf]
  %v391 = vld [vmem:[%s1 + $0x564] sm:$0xf]
  %v392 = vld [vmem:[%s1 + $0x568] sm:$0xf]
  %v393 = vld [vmem:[%s1 + $0x56c] sm:$0xf]
  %v394 = vld [vmem:[%s1 + $0x570] sm:$0xf]
  %v395 = vld [vmem:[%s1 + $0x574] sm:$0xf]
  %v396 = vld [vmem:[%s1 + $0x578] sm:$0xf]
  %v397 = vld [vmem:[%s1 + $0x57c] sm:$0xf]
  %v398 = vld [vmem:[%s1 + $0x580] sm:$0xf]
  %v399 = vld [vmem:[%s1 + $0x584] sm:$0xf]
  %v400 = vld [vmem:[%s1 + $0x588] sm:$0xf]
  %v401 = vld [vmem:[%s1 + $0x58c] sm:$0xf]
  %v402 = vld [vmem:[%s1 + $0x590] sm:$0xf]
  %v403 = vld [vmem:[%s1 + $0x594] sm:$0xf]
  %v404 = vld [vmem:[%s1 + $0x598] sm:$0xf]
  %v405 = vld [vmem:[%s1 + $0x59c] sm:$0xf]
  %v406 = vld [vmem:[%s1 + $0x5a0] sm:$0xf]
  %v407 = vld [vmem:[%s1 + $0x5a4] sm:$0xf]
  %v408 = vld [vmem:[%s1 + $0x5a8] sm:$0xf]
  %v409 = vld [vmem:[%s1 + $0x5ac] sm:$0xf]
  %v410 = vld [vmem:[%s1 + $0x5b0] sm:$0xf]
  %v411 = vld [vmem:[%s1 + $0x5b4] sm:$0xf]
  %v412 = vld [vmem:[%s1 + $0x5b8] sm:$0xf]
  %v413 = vld [vmem:[%s1 + $0x5bc] sm:$0xf]
  %v414 = vld [vmem:[%s1 + $0x5c0] sm:$0xf]
  %v415 = vld [vmem:[%s1 + $0x5c4] sm:$0xf]
  %v416 = vld [vmem:[%s1 + $0x5c8] sm:$0xf]
  %v417 = vld [vmem:[%s1 + $0x5cc] sm:$0xf]
  %v418 = vld [vmem:[%s1 + $0x5d0] sm:$0xf]
  %v419 = vld [vmem:[%s1 + $0x5d4] sm:$0xf]
  %v420 = vld [vmem:[%s1 + $0x5d8] sm:$0xf]
  %v421 = vld [vmem:[%s1 + $0x5dc] sm:$0xf]
  %v422 = vld [vmem:[%s1 + $0x5e0] sm:$0xf]
  %v423 = vld [vmem:[%s1 + $0x5e4] sm:$0xf]
  %v424 = vld [vmem:[%s1 + $0x5e8] sm:$0xf]
  %v425 = vld [vmem:[%s1 + $0x5ec] sm:$0xf]
  %v426 = vld [vmem:[%s1 + $0x5f0] sm:$0xf]
  %v427 = vld [vmem:[%s1 + $0x5f4] sm:$0xf]
  %v428 = vld [vmem:[%s1 + $0x5f8] sm:$0xf]
  %v429 = vld [vmem:[%s1 + $0x5fc] sm:$0xf]
  %v430 = vld [vmem:[%s1 + $0x600] sm:$0xf]
  %v431 = vld [vmem:[%s1 + $0x604] sm:$0xf]
  %v432 = vld [vmem:[%s1 + $0x608] sm:$0xf]
  %v433 = vld [vmem:[%s1 + $0x60c] sm:$0xf]
  %v434 = vld [vmem:[%s1 + $0x610] sm:$0xf]
  %v435 = vld [vmem:[%s1 + $0x614] sm:$0xf]
  %v436 = vld [vmem:[%s1 + $0x618] sm:$0xf]
  %v437 = vld [vmem:[%s1 + $0x61c] sm:$0xf]
  %v438 = vld [vmem:[%s1 + $0x620] sm:$0xf]
  %v439 = vld [vmem:[%s1 + $0x624] sm:$0xf]
  %v440 = vld [vmem:[%s1 + $0x628] sm:$0xf]
  %v441 = vld [vmem:[%s1 + $0x62c] sm:$0xf]
  %v442 = vld [vmem:[%s1 + $0x630] sm:$0xf]
  %v443 = vld [vmem:[%s1 + $0x634] sm:$0xf]
  %v444 = vld [vmem:[%s1 + $0x638] sm:$0xf]
  %v445 = vld [vmem:[%s1 + $0x63c] sm:$0xf]
  %v446 = vld [vmem:[%s1 + $0x640] sm:$0xf]
  %v447 = vld [vmem:[%s1 + $0x644] sm:$0xf]
  %v448 = vld [vmem:[%s1 + $0x648] sm:$0xf]
  %v449 = vld [vmem:[%s1 + $0x64c] sm:$0xf]
  %v450 = vld [vmem:[%s1 + $0x650] sm:$0xf]
  %v451 = vld [vmem:[%s1 + $0x654] sm:$0xf]
  %v452 = vld [vmem:[%s1 + $0x658] sm:$0xf]
  %v453 = vld [vmem:[%s1 + $0x65c] sm:$0xf]
  %v454 = vld [vmem:[%s1 + $0x660] sm:$0xf]
  %v455 = vld [vmem:[%s1 + $0x664] sm:$0xf]
  %v456 = vld [vmem:[%s1 + $0x668] sm:$0xf]
  %v457 = vld [vmem:[%s1 + $0x66c] sm:$0xf]
  %v458 = vld [vmem:[%s1 + $0x670] sm:$0xf]
  %v459 = vld [vmem:[%s1 + $0x674] sm:$0xf]
  %v460 = vld [vmem:[%s1 + $0x678] sm:$0xf]
  %v461 = vld [vmem:[%s1 + $0x67c] sm:$0xf]
  %v462 = vld [vmem:[%s1 + $0x680] sm:$0xf]
  %v463 = vld [vmem:[%s1 + $0x684] sm:$0xf]
  %v464 = vld [vmem:[%s1 + $0x688] sm:$0xf]
  %v465 = vld [vmem:[%s1 + $0x68c] sm:$0xf]
  %v466 = vld [vmem:[%s1 + $0x690] sm:$0xf]
  %v467 = vld [vmem:[%s1 + $0x694] sm:$0xf]
  %v468 = vld [vmem:[%s1 + $0x698] sm:$0xf]
  %v469 = vld [vmem:[%s1 + $0x69c] sm:$0xf]
  %v470 = vld [vmem:[%s1 + $0x6a0] sm:$0xf]
  %v471 = vld [vmem:[%s1 + $0x6a4] sm:$0xf]
  %v472 = vld [vmem:[%s1 + $0x6a8] sm:$0xf]
  %v473 = vld [vmem:[%s1 + $0x6ac] sm:$0xf]
  %v474 = vld [vmem:[%s1 + $0x6b0] sm:$0xf]
  %v475 = vld [vmem:[%s1 + $0x6b4] sm:$0xf]
  %v476 = vld [vmem:[%s1 + $0x6b8] sm:$0xf]
  %v477 = vld [vmem:[%s1 + $0x6bc] sm:$0xf]
  %v478 = vld [vmem:[%s1 + $0x6c0] sm:$0xf]
  %v479 = vld [vmem:[%s1 + $0x6c4] sm:$0xf]
  %v480 = vld [vmem:[%s1 + $0x6c8] sm:$0xf]
  %v481 = vld [vmem:[%s1 + $0x6cc] sm:$0xf]
  %v482 = vld [vmem:[%s1 + $0x6d0] sm:$0xf]
  %v483 = vld [vmem:[%s1 + $0x6d4] sm:$0xf]
  %v484 = vld [vmem:[%s1 + $0x6d8] sm:$0xf]
  %v485 = vld [vmem:[%s1 + $0x6dc] sm:$0xf]
  %v486 = vld [vmem:[%s1 + $0x6e0] sm:$0xf]
  %v487 = vld [vmem:[%s1 + $0x6e4] sm:$0xf]
  %v488 = vld [vmem:[%s1 + $0x6e8] sm:$0xf]
  %v489 = vld [vmem:[%s1 + $0x6ec] sm:$0xf]
  %v490 = vld [vmem:[%s1 + $0x6f0] sm:$0xf]
  %v491 = vld [vmem:[%s1 + $0x6f4] sm:$0xf]
  %v492 = vld [vmem:[%s1 + $0x6f8] sm:$0xf]
  %v493 = vld [vmem:[%s1 + $0x6fc] sm:$0xf]
  %v494 = vld [vmem:[%s1 + $0x700] sm:$0xf]
  %v495 = vld [vmem:[%s1 + $0x704] sm:$0xf]
  %v496 = vld [vmem:[%s1 + $0x708] sm:$0xf]
  %v497 = vld [vmem:[%s1 + $0x70c] sm:$0xf]
  %v498 = vld [vmem:[%s1 + $0x710] sm:$0xf]
  %v499 = vld [vmem:[%s1 + $0x714] sm:$0xf]
  %v500 = vld [vmem:[%s1 + $0x718] sm:$0xf]
  %v501 = vld [vmem:[%s1 + $0x71c] sm:$0xf]
  %v502 = vld [vmem:[%s1 + $0x720] sm:$0xf]
  %v503 = vld [vmem:[%s1 + $0x724] sm:$0xf]
  %v504 = vld [vmem:[%s1 + $0x728] sm:$0xf]
  %v505 = vld [vmem:[%s1 + $0x72c] sm:$0xf]
  %v506 = vld [vmem:[%s1 + $0x730] sm:$0xf]
  %v507 = vld [vmem:[%s1 + $0x734] sm:$0xf]
  %v508 = vld [vmem:[%s1 + $0x738] sm:$0xf]
  %v509 = vld [vmem:[%s1 + $0x73c] sm:$0xf]
  %v510 = vld [vmem:[%s1 + $0x740] sm:$0xf]
  %v511 = vld [vmem:[%s1 + $0x744] sm:$0xf]
  %v512 = vld [vmem:[%s1 + $0x748] sm:$0xf]
  %v513 = vld [vmem:[%s1 + $0x74c] sm:$0xf]
  %v514 = vld [vmem:[%s1 + $0x750] sm:$0xf]
  %v515 = vld [vmem:[%s1 + $0x754] sm:$0xf]
  %v516 = vld [vmem:[%s1 + $0x758] sm:$0xf]
  %v517 = vld [vmem:[%s1 + $0x75c] sm:$0xf]
  %v518 = vld [vmem:[%s1 + $0x760] sm:$0xf]
  %v519 = vld [vmem:[%s1 + $0x764] sm:$0xf]
  %v520 = vld [vmem:[%s1 + $0x768] sm:$0xf]
  %v521 = vld [vmem:[%s1 + $0x76c] sm:$0xf]
  %v522 = vld [vmem:[%s1 + $0x770] sm:$0xf]
  %v523 = vld [vmem:[%s1 + $0x774] sm:$0xf]
  %v524 = vld [vmem:[%s1 + $0x778] sm:$0xf]
  %v525 = vld [vmem:[%s1 + $0x77c] sm:$0xf]
  %v526 = vld [vmem:[%s1 + $0x780] sm:$0xf]
  %v527 = vld [vmem:[%s1 + $0x784] sm:$0xf]
  %v528 = vld [vmem:[%s1 + $0x788] sm:$0xf]
  %v529 = vld [vmem:[%s1 + $0x78c] sm:$0xf]
  %v530 = vld [vmem:[%s1 + $0x790] sm:$0xf]
  %v531 = vld [vmem:[%s1 + $0x794] sm:$0xf]
  %v532 = vld [vmem:[%s1 + $0x798] sm:$0xf]
  %v533 = vld [vmem:[%s1 + $0x79c] sm:$0xf]
  %v534 = vld [vmem:[%s1 + $0x7a0] sm:$0xf]
  %v535 = vld [vmem:[%s1 + $0x7a4] sm:$0xf]
  %v536 = vld [vmem:[%s1 + $0x7a8] sm:$0xf]
  %v537 = vld [vmem:[%s1 + $0x7ac] sm:$0xf]
  %v538 = vld [vmem:[%s1 + $0x7b0] sm:$0xf]
  %v539 = vld [vmem:[%s1 + $0x7b4] sm:$0xf]
  %v540 = vld [vmem:[%s1 + $0x7b8] sm:$0xf]
  %v541 = vld [vmem:[%s1 + $0x7bc] sm:$0xf]
  %v542 = vld [vmem:[%s1 + $0x7c0] sm:$0xf]
  %v543 = vld [vmem:[%s1 + $0x7c4] sm:$0xf]
  %v544 = vld [vmem:[%s1 + $0x7c8] sm:$0xf]
  %v545 = vld [vmem:[%s1 + $0x7cc] sm:$0xf]
  %v546 = vld [vmem:[%s1 + $0x7d0] sm:$0xf]
  %v547 = vld [vmem:[%s1 + $0x7d4] sm:$0xf]
  %v548 = vld [vmem:[%s1 + $0x7d8] sm:$0xf]
  %v549 = vld [vmem:[%s1 + $0x7dc] sm:$0xf]
  %v550 = vld [vmem:[%s1 + $0x7e0] sm:$0xf]
  %v551 = vld [vmem:[%s1 + $0x7e4] sm:$0xf]
  %v552 = vld [vmem:[%s1 + $0x7e8] sm:$0xf]
  %v553 = vld [vmem:[%s1 + $0x7ec] sm:$0xf]
  %v554 = vld [vmem:[%s1 + $0x7f0] sm:$0xf]
  %v555 = vld [vmem:[%s1 + $0x7f4] sm:$0xf]
  %v556 = vld [vmem:[%s1 + $0x7f8] sm:$0xf]
  %v557 = vld [vmem:[%s1 + $0x7fc] sm:$0xf]
  %v558 = vld [vmem:[%s2] sm:$0xff]
  %v559 = vld [vmem:[%s2 + $0x8] sm:$0xff]
  %561 = vset.pattern.permute.xlu0 0
  %562 = vperm.xlu0 %561, %v558
  %v563 = vpop.permute.xlu0 %562
  %566 = vset.pattern.permute.xlu0 0
  %567 = vperm.xlu0 %566, %v559
  %v568 = vpop.permute.xlu0 %567
  %v602 = vunpack.c.l.b16 %v14
  %v603 = vunpack.c.h.b16 %v14
  %v604 = vunpack.c.l.b16 %v15
  %v605 = vunpack.c.h.b16 %v15
  %v606 = vunpack.c.l.b16 %v16
  %v607 = vunpack.c.h.b16 %v16
  %v608 = vunpack.c.l.b16 %v17
  %v609 = vunpack.c.h.b16 %v17
  %v610 = vunpack.c.l.b16 %v18
  %v611 = vunpack.c.h.b16 %v18
  %v612 = vunpack.c.l.b16 %v19
  %v613 = vunpack.c.h.b16 %v19
  %v614 = vunpack.c.l.b16 %v20
  %v615 = vunpack.c.h.b16 %v20
  %v616 = vunpack.c.l.b16 %v21
  %v617 = vunpack.c.h.b16 %v21
  %v618 = vunpack.c.l.b16 %v22
  %v619 = vunpack.c.h.b16 %v22
  %v620 = vunpack.c.l.b16 %v23
  %v621 = vunpack.c.h.b16 %v23
  %v622 = vunpack.c.l.b16 %v24
  %v623 = vunpack.c.h.b16 %v24
  %v624 = vunpack.c.l.b16 %v25
  %v625 = vunpack.c.h.b16 %v25
  %v626 = vunpack.c.l.b16 %v26
  %v627 = vunpack.c.h.b16 %v26
  %v628 = vunpack.c.l.b16 %v27
  %v629 = vunpack.c.h.b16 %v27
  %v630 = vunpack.c.l.b16 %v28
  %v631 = vunpack.c.h.b16 %v28
  %v632 = vunpack.c.l.b16 %v29
  %v633 = vunpack.c.h.b16 %v29
  %v634 = vunpack.c.l.b16 %v30
  %v635 = vunpack.c.h.b16 %v30
  %v636 = vunpack.c.l.b16 %v31
  %v637 = vunpack.c.h.b16 %v31
  %v638 = vunpack.c.l.b16 %v32
  %v639 = vunpack.c.h.b16 %v32
  %v640 = vunpack.c.l.b16 %v33
  %v641 = vunpack.c.h.b16 %v33
  %v642 = vunpack.c.l.b16 %v34
  %v643 = vunpack.c.h.b16 %v34
  %v644 = vunpack.c.l.b16 %v35
  %v645 = vunpack.c.h.b16 %v35
  %v646 = vunpack.c.l.b16 %v36
  %v647 = vunpack.c.h.b16 %v36
  %v648 = vunpack.c.l.b16 %v37
  %v649 = vunpack.c.h.b16 %v37
  %v650 = vunpack.c.l.b16 %v38
  %v651 = vunpack.c.h.b16 %v38
  %v652 = vunpack.c.l.b16 %v39
  %v653 = vunpack.c.h.b16 %v39
  %v654 = vunpack.c.l.b16 %v40
  %v655 = vunpack.c.h.b16 %v40
  %v656 = vunpack.c.l.b16 %v41
  %v657 = vunpack.c.h.b16 %v41
  %v658 = vunpack.c.l.b16 %v42
  %v659 = vunpack.c.h.b16 %v42
  %v660 = vunpack.c.l.b16 %v43
  %v661 = vunpack.c.h.b16 %v43
  %v662 = vunpack.c.l.b16 %v44
  %v663 = vunpack.c.h.b16 %v44
  %v664 = vunpack.c.l.b16 %v45
  %v665 = vunpack.c.h.b16 %v45
  %v666 = vpack.c.b16 %v634, %v602
  %v667 = vpack.c.b16 %v635, %v603
  %v668 = vpack.c.b16 %v636, %v604
  %v669 = vpack.c.b16 %v637, %v605
  %v670 = vpack.c.b16 %v638, %v606
  %v671 = vpack.c.b16 %v639, %v607
  %v672 = vpack.c.b16 %v640, %v608
  %v673 = vpack.c.b16 %v641, %v609
  %v674 = vpack.c.b16 %v642, %v610
  %v675 = vpack.c.b16 %v643, %v611
  %v676 = vpack.c.b16 %v644, %v612
  %v677 = vpack.c.b16 %v645, %v613
  %v678 = vpack.c.b16 %v646, %v614
  %v679 = vpack.c.b16 %v647, %v615
  %v680 = vpack.c.b16 %v648, %v616
  %v681 = vpack.c.b16 %v649, %v617
  %v682 = vpack.c.b16 %v650, %v618
  %v683 = vpack.c.b16 %v651, %v619
  %v684 = vpack.c.b16 %v652, %v620
  %v685 = vpack.c.b16 %v653, %v621
  %v686 = vpack.c.b16 %v654, %v622
  %v687 = vpack.c.b16 %v655, %v623
  %v688 = vpack.c.b16 %v656, %v624
  %v689 = vpack.c.b16 %v657, %v625
  %v690 = vpack.c.b16 %v658, %v626
  %v691 = vpack.c.b16 %v659, %v627
  %v692 = vpack.c.b16 %v660, %v628
  %v693 = vpack.c.b16 %v661, %v629
  %v694 = vpack.c.b16 %v662, %v630
  %v695 = vpack.c.b16 %v663, %v631
  %v696 = vpack.c.b16 %v664, %v632
  %v697 = vpack.c.b16 %v665, %v633
  %v1242 = vunpack.c.l.b16 %v46
  %v1243 = vunpack.c.l.b16 %v47
  %v1244 = vunpack.c.l.b16 %v48
  %v1245 = vunpack.c.l.b16 %v49
  %v1246 = vunpack.c.l.b16 %v50
  %v1247 = vunpack.c.l.b16 %v51
  %v1248 = vunpack.c.l.b16 %v52
  %v1249 = vunpack.c.l.b16 %v53
  %v1250 = vunpack.c.l.b16 %v54
  %v1251 = vunpack.c.l.b16 %v55
  %v1252 = vunpack.c.l.b16 %v56
  %v1253 = vunpack.c.l.b16 %v57
  %v1254 = vunpack.c.l.b16 %v58
  %v1255 = vunpack.c.l.b16 %v59
  %v1256 = vunpack.c.l.b16 %v60
  %v1257 = vunpack.c.l.b16 %v61
  %v1258 = vunpack.c.l.b16 %v62
  %v1259 = vunpack.c.l.b16 %v63
  %v1260 = vunpack.c.l.b16 %v64
  %v1261 = vunpack.c.l.b16 %v65
  %v1262 = vunpack.c.l.b16 %v66
  %v1263 = vunpack.c.l.b16 %v67
  %v1264 = vunpack.c.l.b16 %v68
  %v1265 = vunpack.c.l.b16 %v69
  %v1266 = vunpack.c.l.b16 %v70
  %v1267 = vunpack.c.l.b16 %v71
  %v1268 = vunpack.c.l.b16 %v72
  %v1269 = vunpack.c.l.b16 %v73
  %v1270 = vunpack.c.l.b16 %v74
  %v1271 = vunpack.c.l.b16 %v75
  %v1272 = vunpack.c.l.b16 %v76
  %v1273 = vunpack.c.l.b16 %v77
  %v1274 = vunpack.c.l.b16 %v78
  %v1275 = vunpack.c.l.b16 %v79
  %v1276 = vunpack.c.l.b16 %v80
  %v1277 = vunpack.c.l.b16 %v81
  %v1278 = vunpack.c.l.b16 %v82
  %v1279 = vunpack.c.l.b16 %v83
  %v1280 = vunpack.c.l.b16 %v84
  %v1281 = vunpack.c.l.b16 %v85
  %v1282 = vunpack.c.l.b16 %v86
  %v1283 = vunpack.c.l.b16 %v87
  %v1284 = vunpack.c.l.b16 %v88
  %v1285 = vunpack.c.l.b16 %v89
  %v1286 = vunpack.c.l.b16 %v90
  %v1287 = vunpack.c.l.b16 %v91
  %v1288 = vunpack.c.l.b16 %v92
  %v1289 = vunpack.c.l.b16 %v93
  %v1290 = vunpack.c.l.b16 %v94
  %v1291 = vunpack.c.l.b16 %v95
  %v1292 = vunpack.c.l.b16 %v96
  %v1293 = vunpack.c.l.b16 %v97
  %v1294 = vunpack.c.l.b16 %v98
  %v1295 = vunpack.c.l.b16 %v99
  %v1296 = vunpack.c.l.b16 %v100
  %v1297 = vunpack.c.l.b16 %v101
  %v1298 = vunpack.c.l.b16 %v102
  %v1299 = vunpack.c.l.b16 %v103
  %v1300 = vunpack.c.l.b16 %v104
  %v1301 = vunpack.c.l.b16 %v105
  %v1302 = vunpack.c.l.b16 %v106
  %v1303 = vunpack.c.l.b16 %v107
  %v1304 = vunpack.c.l.b16 %v108
  %v1305 = vunpack.c.l.b16 %v109
  %v1306 = vunpack.c.l.b16 %v110
  %v1307 = vunpack.c.l.b16 %v111
  %v1308 = vunpack.c.l.b16 %v112
  %v1309 = vunpack.c.l.b16 %v113
  %v1310 = vunpack.c.l.b16 %v114
  %v1311 = vunpack.c.l.b16 %v115
  %v1312 = vunpack.c.l.b16 %v116
  %v1313 = vunpack.c.l.b16 %v117
  %v1314 = vunpack.c.l.b16 %v118
  %v1315 = vunpack.c.l.b16 %v119
  %v1316 = vunpack.c.l.b16 %v120
  %v1317 = vunpack.c.l.b16 %v121
  %v1318 = vunpack.c.l.b16 %v122
  %v1319 = vunpack.c.l.b16 %v123
  %v1320 = vunpack.c.l.b16 %v124
  %v1321 = vunpack.c.l.b16 %v125
  %v1322 = vunpack.c.l.b16 %v126
  %v1323 = vunpack.c.l.b16 %v127
  %v1324 = vunpack.c.l.b16 %v128
  %v1325 = vunpack.c.l.b16 %v129
  %v1326 = vunpack.c.l.b16 %v130
  %v1327 = vunpack.c.l.b16 %v131
  %v1328 = vunpack.c.l.b16 %v132
  %v1329 = vunpack.c.l.b16 %v133
  %v1330 = vunpack.c.l.b16 %v134
  %v1331 = vunpack.c.l.b16 %v135
  %v1332 = vunpack.c.l.b16 %v136
  %v1333 = vunpack.c.l.b16 %v137
  %v1334 = vunpack.c.l.b16 %v138
  %v1335 = vunpack.c.l.b16 %v139
  %v1336 = vunpack.c.l.b16 %v140
  %v1337 = vunpack.c.l.b16 %v141
  %v1338 = vunpack.c.l.b16 %v142
  %v1339 = vunpack.c.l.b16 %v143
  %v1340 = vunpack.c.l.b16 %v144
  %v1341 = vunpack.c.l.b16 %v145
  %v1342 = vunpack.c.l.b16 %v146
  %v1343 = vunpack.c.l.b16 %v147
  %v1344 = vunpack.c.l.b16 %v148
  %v1345 = vunpack.c.l.b16 %v149
  %v1346 = vunpack.c.l.b16 %v150
  %v1347 = vunpack.c.l.b16 %v151
  %v1348 = vunpack.c.l.b16 %v152
  %v1349 = vunpack.c.l.b16 %v153
  %v1350 = vunpack.c.l.b16 %v154
  %v1351 = vunpack.c.l.b16 %v155
  %v1352 = vunpack.c.l.b16 %v156
  %v1353 = vunpack.c.l.b16 %v157
  %v1354 = vunpack.c.l.b16 %v158
  %v1355 = vunpack.c.l.b16 %v159
  %v1356 = vunpack.c.l.b16 %v160
  %v1357 = vunpack.c.l.b16 %v161
  %v1358 = vunpack.c.l.b16 %v162
  %v1359 = vunpack.c.l.b16 %v163
  %v1360 = vunpack.c.l.b16 %v164
  %v1361 = vunpack.c.l.b16 %v165
  %v1362 = vunpack.c.l.b16 %v166
  %v1363 = vunpack.c.l.b16 %v167
  %v1364 = vunpack.c.l.b16 %v168
  %v1365 = vunpack.c.l.b16 %v169
  %v1366 = vunpack.c.l.b16 %v170
  %v1367 = vunpack.c.l.b16 %v171
  %v1368 = vunpack.c.l.b16 %v172
  %v1369 = vunpack.c.l.b16 %v173
  %v1370 = vunpack.c.l.b16 %v174
  %v1371 = vunpack.c.l.b16 %v175
  %v1372 = vunpack.c.l.b16 %v176
  %v1373 = vunpack.c.l.b16 %v177
  %v1374 = vunpack.c.l.b16 %v178
  %v1375 = vunpack.c.l.b16 %v179
  %v1376 = vunpack.c.l.b16 %v180
  %v1377 = vunpack.c.l.b16 %v181
  %v1378 = vunpack.c.l.b16 %v182
  %v1379 = vunpack.c.l.b16 %v183
  %v1380 = vunpack.c.l.b16 %v184
  %v1381 = vunpack.c.l.b16 %v185
  %v1382 = vunpack.c.l.b16 %v186
  %v1383 = vunpack.c.l.b16 %v187
  %v1384 = vunpack.c.l.b16 %v188
  %v1385 = vunpack.c.l.b16 %v189
  %v1386 = vunpack.c.l.b16 %v190
  %v1387 = vunpack.c.l.b16 %v191
  %v1388 = vunpack.c.l.b16 %v192
  %v1389 = vunpack.c.l.b16 %v193
  %v1390 = vunpack.c.l.b16 %v194
  %v1391 = vunpack.c.l.b16 %v195
  %v1392 = vunpack.c.l.b16 %v196
  %v1393 = vunpack.c.l.b16 %v197
  %v1394 = vunpack.c.l.b16 %v198
  %v1395 = vunpack.c.l.b16 %v199
  %v1396 = vunpack.c.l.b16 %v200
  %v1397 = vunpack.c.l.b16 %v201
  %v1398 = vunpack.c.l.b16 %v202
  %v1399 = vunpack.c.l.b16 %v203
  %v1400 = vunpack.c.l.b16 %v204
  %v1401 = vunpack.c.l.b16 %v205
  %v1402 = vunpack.c.l.b16 %v206
  %v1403 = vunpack.c.l.b16 %v207
  %v1404 = vunpack.c.l.b16 %v208
  %v1405 = vunpack.c.l.b16 %v209
  %v1406 = vunpack.c.l.b16 %v210
  %v1407 = vunpack.c.l.b16 %v211
  %v1408 = vunpack.c.l.b16 %v212
  %v1409 = vunpack.c.l.b16 %v213
  %v1410 = vunpack.c.l.b16 %v214
  %v1411 = vunpack.c.l.b16 %v215
  %v1412 = vunpack.c.l.b16 %v216
  %v1413 = vunpack.c.l.b16 %v217
  %v1414 = vunpack.c.l.b16 %v218
  %v1415 = vunpack.c.l.b16 %v219
  %v1416 = vunpack.c.l.b16 %v220
  %v1417 = vunpack.c.l.b16 %v221
  %v1418 = vunpack.c.l.b16 %v222
  %v1419 = vunpack.c.l.b16 %v223
  %v1420 = vunpack.c.l.b16 %v224
  %v1421 = vunpack.c.l.b16 %v225
  %v1422 = vunpack.c.l.b16 %v226
  %v1423 = vunpack.c.l.b16 %v227
  %v1424 = vunpack.c.l.b16 %v228
  %v1425 = vunpack.c.l.b16 %v229
  %v1426 = vunpack.c.l.b16 %v230
  %v1427 = vunpack.c.l.b16 %v231
  %v1428 = vunpack.c.l.b16 %v232
  %v1429 = vunpack.c.l.b16 %v233
  %v1430 = vunpack.c.l.b16 %v234
  %v1431 = vunpack.c.l.b16 %v235
  %v1432 = vunpack.c.l.b16 %v236
  %v1433 = vunpack.c.l.b16 %v237
  %v1434 = vunpack.c.l.b16 %v238
  %v1435 = vunpack.c.l.b16 %v239
  %v1436 = vunpack.c.l.b16 %v240
  %v1437 = vunpack.c.l.b16 %v241
  %v1438 = vunpack.c.l.b16 %v242
  %v1439 = vunpack.c.l.b16 %v243
  %v1440 = vunpack.c.l.b16 %v244
  %v1441 = vunpack.c.l.b16 %v245
  %v1442 = vunpack.c.l.b16 %v246
  %v1443 = vunpack.c.l.b16 %v247
  %v1444 = vunpack.c.l.b16 %v248
  %v1445 = vunpack.c.l.b16 %v249
  %v1446 = vunpack.c.l.b16 %v250
  %v1447 = vunpack.c.l.b16 %v251
  %v1448 = vunpack.c.l.b16 %v252
  %v1449 = vunpack.c.l.b16 %v253
  %v1450 = vunpack.c.l.b16 %v254
  %v1451 = vunpack.c.l.b16 %v255
  %v1452 = vunpack.c.l.b16 %v256
  %v1453 = vunpack.c.l.b16 %v257
  %v1454 = vunpack.c.l.b16 %v258
  %v1455 = vunpack.c.l.b16 %v259
  %v1456 = vunpack.c.l.b16 %v260
  %v1457 = vunpack.c.l.b16 %v261
  %v1458 = vunpack.c.l.b16 %v262
  %v1459 = vunpack.c.l.b16 %v263
  %v1460 = vunpack.c.l.b16 %v264
  %v1461 = vunpack.c.l.b16 %v265
  %v1462 = vunpack.c.l.b16 %v266
  %v1463 = vunpack.c.l.b16 %v267
  %v1464 = vunpack.c.l.b16 %v268
  %v1465 = vunpack.c.l.b16 %v269
  %v1466 = vunpack.c.l.b16 %v270
  %v1467 = vunpack.c.l.b16 %v271
  %v1468 = vunpack.c.l.b16 %v272
  %v1469 = vunpack.c.l.b16 %v273
  %v1470 = vunpack.c.l.b16 %v274
  %v1471 = vunpack.c.l.b16 %v275
  %v1472 = vunpack.c.l.b16 %v276
  %v1473 = vunpack.c.l.b16 %v277
  %v1474 = vunpack.c.l.b16 %v278
  %v1475 = vunpack.c.l.b16 %v279
  %v1476 = vunpack.c.l.b16 %v280
  %v1477 = vunpack.c.l.b16 %v281
  %v1478 = vunpack.c.l.b16 %v282
  %v1479 = vunpack.c.l.b16 %v283
  %v1480 = vunpack.c.l.b16 %v284
  %v1481 = vunpack.c.l.b16 %v285
  %v1482 = vunpack.c.l.b16 %v286
  %v1483 = vunpack.c.l.b16 %v287
  %v1484 = vunpack.c.l.b16 %v288
  %v1485 = vunpack.c.l.b16 %v289
  %v1486 = vunpack.c.l.b16 %v290
  %v1487 = vunpack.c.l.b16 %v291
  %v1488 = vunpack.c.l.b16 %v292
  %v1489 = vunpack.c.l.b16 %v293
  %v1490 = vunpack.c.l.b16 %v294
  %v1491 = vunpack.c.l.b16 %v295
  %v1492 = vunpack.c.l.b16 %v296
  %v1493 = vunpack.c.l.b16 %v297
  %v1494 = vunpack.c.l.b16 %v298
  %v1495 = vunpack.c.l.b16 %v299
  %v1496 = vunpack.c.l.b16 %v300
  %v1497 = vunpack.c.l.b16 %v301
  %v1498 = vunpack.c.l.b16 %v302
  %v1499 = vunpack.c.l.b16 %v303
  %v1500 = vunpack.c.l.b16 %v304
  %v1501 = vunpack.c.l.b16 %v305
  %v1502 = vunpack.c.l.b16 %v306
  %v1503 = vunpack.c.l.b16 %v307
  %v1504 = vunpack.c.l.b16 %v308
  %v1505 = vunpack.c.l.b16 %v309
  %v1506 = vunpack.c.l.b16 %v310
  %v1507 = vunpack.c.l.b16 %v311
  %v1508 = vunpack.c.l.b16 %v312
  %v1509 = vunpack.c.l.b16 %v313
  %v1510 = vunpack.c.l.b16 %v314
  %v1511 = vunpack.c.l.b16 %v315
  %v1512 = vunpack.c.l.b16 %v316
  %v1513 = vunpack.c.l.b16 %v317
  %v1514 = vunpack.c.l.b16 %v318
  %v1515 = vunpack.c.l.b16 %v319
  %v1516 = vunpack.c.l.b16 %v320
  %v1517 = vunpack.c.l.b16 %v321
  %v1518 = vunpack.c.l.b16 %v322
  %v1519 = vunpack.c.l.b16 %v323
  %v1520 = vunpack.c.l.b16 %v324
  %v1521 = vunpack.c.l.b16 %v325
  %v1522 = vunpack.c.l.b16 %v326
  %v1523 = vunpack.c.l.b16 %v327
  %v1524 = vunpack.c.l.b16 %v328
  %v1525 = vunpack.c.l.b16 %v329
  %v1526 = vunpack.c.l.b16 %v330
  %v1527 = vunpack.c.l.b16 %v331
  %v1528 = vunpack.c.l.b16 %v332
  %v1529 = vunpack.c.l.b16 %v333
  %v1530 = vunpack.c.l.b16 %v334
  %v1531 = vunpack.c.l.b16 %v335
  %v1532 = vunpack.c.l.b16 %v336
  %v1533 = vunpack.c.l.b16 %v337
  %v1534 = vunpack.c.l.b16 %v338
  %v1535 = vunpack.c.l.b16 %v339
  %v1536 = vunpack.c.l.b16 %v340
  %v1537 = vunpack.c.l.b16 %v341
  %v1538 = vunpack.c.l.b16 %v342
  %v1539 = vunpack.c.l.b16 %v343
  %v1540 = vunpack.c.l.b16 %v344
  %v1541 = vunpack.c.l.b16 %v345
  %v1542 = vunpack.c.l.b16 %v346
  %v1543 = vunpack.c.l.b16 %v347
  %v1544 = vunpack.c.l.b16 %v348
  %v1545 = vunpack.c.l.b16 %v349
  %v1546 = vunpack.c.l.b16 %v350
  %v1547 = vunpack.c.l.b16 %v351
  %v1548 = vunpack.c.l.b16 %v352
  %v1549 = vunpack.c.l.b16 %v353
  %v1550 = vunpack.c.l.b16 %v354
  %v1551 = vunpack.c.l.b16 %v355
  %v1552 = vunpack.c.l.b16 %v356
  %v1553 = vunpack.c.l.b16 %v357
  %v1554 = vunpack.c.l.b16 %v358
  %v1555 = vunpack.c.l.b16 %v359
  %v1556 = vunpack.c.l.b16 %v360
  %v1557 = vunpack.c.l.b16 %v361
  %v1558 = vunpack.c.l.b16 %v362
  %v1559 = vunpack.c.l.b16 %v363
  %v1560 = vunpack.c.l.b16 %v364
  %v1561 = vunpack.c.l.b16 %v365
  %v1562 = vunpack.c.l.b16 %v366
  %v1563 = vunpack.c.l.b16 %v367
  %v1564 = vunpack.c.l.b16 %v368
  %v1565 = vunpack.c.l.b16 %v369
  %v1566 = vunpack.c.l.b16 %v370
  %v1567 = vunpack.c.l.b16 %v371
  %v1568 = vunpack.c.l.b16 %v372
  %v1569 = vunpack.c.l.b16 %v373
  %v1570 = vunpack.c.l.b16 %v374
  %v1571 = vunpack.c.l.b16 %v375
  %v1572 = vunpack.c.l.b16 %v376
  %v1573 = vunpack.c.l.b16 %v377
  %v1574 = vunpack.c.l.b16 %v378
  %v1575 = vunpack.c.l.b16 %v379
  %v1576 = vunpack.c.l.b16 %v380
  %v1577 = vunpack.c.l.b16 %v381
  %v1578 = vunpack.c.l.b16 %v382
  %v1579 = vunpack.c.l.b16 %v383
  %v1580 = vunpack.c.l.b16 %v384
  %v1581 = vunpack.c.l.b16 %v385
  %v1582 = vunpack.c.l.b16 %v386
  %v1583 = vunpack.c.l.b16 %v387
  %v1584 = vunpack.c.l.b16 %v388
  %v1585 = vunpack.c.l.b16 %v389
  %v1586 = vunpack.c.l.b16 %v390
  %v1587 = vunpack.c.l.b16 %v391
  %v1588 = vunpack.c.l.b16 %v392
  %v1589 = vunpack.c.l.b16 %v393
  %v1590 = vunpack.c.l.b16 %v394
  %v1591 = vunpack.c.l.b16 %v395
  %v1592 = vunpack.c.l.b16 %v396
  %v1593 = vunpack.c.l.b16 %v397
  %v1594 = vunpack.c.l.b16 %v398
  %v1595 = vunpack.c.l.b16 %v399
  %v1596 = vunpack.c.l.b16 %v400
  %v1597 = vunpack.c.l.b16 %v401
  %v1598 = vunpack.c.l.b16 %v402
  %v1599 = vunpack.c.l.b16 %v403
  %v1600 = vunpack.c.l.b16 %v404
  %v1601 = vunpack.c.l.b16 %v405
  %v1602 = vunpack.c.l.b16 %v406
  %v1603 = vunpack.c.l.b16 %v407
  %v1604 = vunpack.c.l.b16 %v408
  %v1605 = vunpack.c.l.b16 %v409
  %v1606 = vunpack.c.l.b16 %v410
  %v1607 = vunpack.c.l.b16 %v411
  %v1608 = vunpack.c.l.b16 %v412
  %v1609 = vunpack.c.l.b16 %v413
  %v1610 = vunpack.c.l.b16 %v414
  %v1611 = vunpack.c.l.b16 %v415
  %v1612 = vunpack.c.l.b16 %v416
  %v1613 = vunpack.c.l.b16 %v417
  %v1614 = vunpack.c.l.b16 %v418
  %v1615 = vunpack.c.l.b16 %v419
  %v1616 = vunpack.c.l.b16 %v420
  %v1617 = vunpack.c.l.b16 %v421
  %v1618 = vunpack.c.l.b16 %v422
  %v1619 = vunpack.c.l.b16 %v423
  %v1620 = vunpack.c.l.b16 %v424
  %v1621 = vunpack.c.l.b16 %v425
  %v1622 = vunpack.c.l.b16 %v426
  %v1623 = vunpack.c.l.b16 %v427
  %v1624 = vunpack.c.l.b16 %v428
  %v1625 = vunpack.c.l.b16 %v429
  %v1626 = vunpack.c.l.b16 %v430
  %v1627 = vunpack.c.l.b16 %v431
  %v1628 = vunpack.c.l.b16 %v432
  %v1629 = vunpack.c.l.b16 %v433
  %v1630 = vunpack.c.l.b16 %v434
  %v1631 = vunpack.c.l.b16 %v435
  %v1632 = vunpack.c.l.b16 %v436
  %v1633 = vunpack.c.l.b16 %v437
  %v1634 = vunpack.c.l.b16 %v438
  %v1635 = vunpack.c.l.b16 %v439
  %v1636 = vunpack.c.l.b16 %v440
  %v1637 = vunpack.c.l.b16 %v441
  %v1638 = vunpack.c.l.b16 %v442
  %v1639 = vunpack.c.l.b16 %v443
  %v1640 = vunpack.c.l.b16 %v444
  %v1641 = vunpack.c.l.b16 %v445
  %v1642 = vunpack.c.l.b16 %v446
  %v1643 = vunpack.c.l.b16 %v447
  %v1644 = vunpack.c.l.b16 %v448
  %v1645 = vunpack.c.l.b16 %v449
  %v1646 = vunpack.c.l.b16 %v450
  %v1647 = vunpack.c.l.b16 %v451
  %v1648 = vunpack.c.l.b16 %v452
  %v1649 = vunpack.c.l.b16 %v453
  %v1650 = vunpack.c.l.b16 %v454
  %v1651 = vunpack.c.l.b16 %v455
  %v1652 = vunpack.c.l.b16 %v456
  %v1653 = vunpack.c.l.b16 %v457
  %v1654 = vunpack.c.l.b16 %v458
  %v1655 = vunpack.c.l.b16 %v459
  %v1656 = vunpack.c.l.b16 %v460
  %v1657 = vunpack.c.l.b16 %v461
  %v1658 = vunpack.c.l.b16 %v462
  %v1659 = vunpack.c.l.b16 %v463
  %v1660 = vunpack.c.l.b16 %v464
  %v1661 = vunpack.c.l.b16 %v465
  %v1662 = vunpack.c.l.b16 %v466
  %v1663 = vunpack.c.l.b16 %v467
  %v1664 = vunpack.c.l.b16 %v468
  %v1665 = vunpack.c.l.b16 %v469
  %v1666 = vunpack.c.l.b16 %v470
  %v1667 = vunpack.c.l.b16 %v471
  %v1668 = vunpack.c.l.b16 %v472
  %v1669 = vunpack.c.l.b16 %v473
  %v1670 = vunpack.c.l.b16 %v474
  %v1671 = vunpack.c.l.b16 %v475
  %v1672 = vunpack.c.l.b16 %v476
  %v1673 = vunpack.c.l.b16 %v477
  %v1674 = vunpack.c.l.b16 %v478
  %v1675 = vunpack.c.l.b16 %v479
  %v1676 = vunpack.c.l.b16 %v480
  %v1677 = vunpack.c.l.b16 %v481
  %v1678 = vunpack.c.l.b16 %v482
  %v1679 = vunpack.c.l.b16 %v483
  %v1680 = vunpack.c.l.b16 %v484
  %v1681 = vunpack.c.l.b16 %v485
  %v1682 = vunpack.c.l.b16 %v486
  %v1683 = vunpack.c.l.b16 %v487
  %v1684 = vunpack.c.l.b16 %v488
  %v1685 = vunpack.c.l.b16 %v489
  %v1686 = vunpack.c.l.b16 %v490
  %v1687 = vunpack.c.l.b16 %v491
  %v1688 = vunpack.c.l.b16 %v492
  %v1689 = vunpack.c.l.b16 %v493
  %v1690 = vunpack.c.l.b16 %v494
  %v1691 = vunpack.c.l.b16 %v495
  %v1692 = vunpack.c.l.b16 %v496
  %v1693 = vunpack.c.l.b16 %v497
  %v1694 = vunpack.c.l.b16 %v498
  %v1695 = vunpack.c.l.b16 %v499
  %v1696 = vunpack.c.l.b16 %v500
  %v1697 = vunpack.c.l.b16 %v501
  %v1698 = vunpack.c.l.b16 %v502
  %v1699 = vunpack.c.l.b16 %v503
  %v1700 = vunpack.c.l.b16 %v504
  %v1701 = vunpack.c.l.b16 %v505
  %v1702 = vunpack.c.l.b16 %v506
  %v1703 = vunpack.c.l.b16 %v507
  %v1704 = vunpack.c.l.b16 %v508
  %v1705 = vunpack.c.l.b16 %v509
  %v1706 = vunpack.c.l.b16 %v510
  %v1707 = vunpack.c.l.b16 %v511
  %v1708 = vunpack.c.l.b16 %v512
  %v1709 = vunpack.c.l.b16 %v513
  %v1710 = vunpack.c.l.b16 %v514
  %v1711 = vunpack.c.l.b16 %v515
  %v1712 = vunpack.c.l.b16 %v516
  %v1713 = vunpack.c.l.b16 %v517
  %v1714 = vunpack.c.l.b16 %v518
  %v1715 = vunpack.c.l.b16 %v519
  %v1716 = vunpack.c.l.b16 %v520
  %v1717 = vunpack.c.l.b16 %v521
  %v1718 = vunpack.c.l.b16 %v522
  %v1719 = vunpack.c.l.b16 %v523
  %v1720 = vunpack.c.l.b16 %v524
  %v1721 = vunpack.c.l.b16 %v525
  %v1722 = vunpack.c.l.b16 %v526
  %v1723 = vunpack.c.l.b16 %v527
  %v1724 = vunpack.c.l.b16 %v528
  %v1725 = vunpack.c.l.b16 %v529
  %v1726 = vunpack.c.l.b16 %v530
  %v1727 = vunpack.c.l.b16 %v531
  %v1728 = vunpack.c.l.b16 %v532
  %v1729 = vunpack.c.l.b16 %v533
  %v1730 = vunpack.c.l.b16 %v534
  %v1731 = vunpack.c.l.b16 %v535
  %v1732 = vunpack.c.l.b16 %v536
  %v1733 = vunpack.c.l.b16 %v537
  %v1734 = vunpack.c.l.b16 %v538
  %v1735 = vunpack.c.l.b16 %v539
  %v1736 = vunpack.c.l.b16 %v540
  %v1737 = vunpack.c.l.b16 %v541
  %v1738 = vunpack.c.l.b16 %v542
  %v1739 = vunpack.c.l.b16 %v543
  %v1740 = vunpack.c.l.b16 %v544
  %v1741 = vunpack.c.l.b16 %v545
  %v1742 = vunpack.c.l.b16 %v546
  %v1743 = vunpack.c.l.b16 %v547
  %v1744 = vunpack.c.l.b16 %v548
  %v1745 = vunpack.c.l.b16 %v549
  %v1746 = vunpack.c.l.b16 %v550
  %v1747 = vunpack.c.l.b16 %v551
  %v1748 = vunpack.c.l.b16 %v552
  %v1749 = vunpack.c.l.b16 %v553
  %v1750 = vunpack.c.l.b16 %v554
  %v1751 = vunpack.c.l.b16 %v555
  %v1752 = vunpack.c.l.b16 %v556
  %v1753 = vunpack.c.l.b16 %v557
  %v1754 = vpack.c.b16 %v1243, %v1242
  %v1755 = vpack.c.b16 %v1245, %v1244
  %v1756 = vpack.c.b16 %v1247, %v1246
  %v1757 = vpack.c.b16 %v1249, %v1248
  %v1758 = vpack.c.b16 %v1251, %v1250
  %v1759 = vpack.c.b16 %v1253, %v1252
  %v1760 = vpack.c.b16 %v1255, %v1254
  %v1761 = vpack.c.b16 %v1257, %v1256
  %v1762 = vpack.c.b16 %v1259, %v1258
  %v1763 = vpack.c.b16 %v1261, %v1260
  %v1764 = vpack.c.b16 %v1263, %v1262
  %v1765 = vpack.c.b16 %v1265, %v1264
  %v1766 = vpack.c.b16 %v1267, %v1266
  %v1767 = vpack.c.b16 %v1269, %v1268
  %v1768 = vpack.c.b16 %v1271, %v1270
  %v1769 = vpack.c.b16 %v1273, %v1272
  %v1770 = vpack.c.b16 %v1275, %v1274
  %v1771 = vpack.c.b16 %v1277, %v1276
  %v1772 = vpack.c.b16 %v1279, %v1278
  %v1773 = vpack.c.b16 %v1281, %v1280
  %v1774 = vpack.c.b16 %v1283, %v1282
  %v1775 = vpack.c.b16 %v1285, %v1284
  %v1776 = vpack.c.b16 %v1287, %v1286
  %v1777 = vpack.c.b16 %v1289, %v1288
  %v1778 = vpack.c.b16 %v1291, %v1290
  %v1779 = vpack.c.b16 %v1293, %v1292
  %v1780 = vpack.c.b16 %v1295, %v1294
  %v1781 = vpack.c.b16 %v1297, %v1296
  %v1782 = vpack.c.b16 %v1299, %v1298
  %v1783 = vpack.c.b16 %v1301, %v1300
  %v1784 = vpack.c.b16 %v1303, %v1302
  %v1785 = vpack.c.b16 %v1305, %v1304
  %v1786 = vpack.c.b16 %v1307, %v1306
  %v1787 = vpack.c.b16 %v1309, %v1308
  %v1788 = vpack.c.b16 %v1311, %v1310
  %v1789 = vpack.c.b16 %v1313, %v1312
  %v1790 = vpack.c.b16 %v1315, %v1314
  %v1791 = vpack.c.b16 %v1317, %v1316
  %v1792 = vpack.c.b16 %v1319, %v1318
  %v1793 = vpack.c.b16 %v1321, %v1320
  %v1794 = vpack.c.b16 %v1323, %v1322
  %v1795 = vpack.c.b16 %v1325, %v1324
  %v1796 = vpack.c.b16 %v1327, %v1326
  %v1797 = vpack.c.b16 %v1329, %v1328
  %v1798 = vpack.c.b16 %v1331, %v1330
  %v1799 = vpack.c.b16 %v1333, %v1332
  %v1800 = vpack.c.b16 %v1335, %v1334
  %v1801 = vpack.c.b16 %v1337, %v1336
  %v1802 = vpack.c.b16 %v1339, %v1338
  %v1803 = vpack.c.b16 %v1341, %v1340
  %v1804 = vpack.c.b16 %v1343, %v1342
  %v1805 = vpack.c.b16 %v1345, %v1344
  %v1806 = vpack.c.b16 %v1347, %v1346
  %v1807 = vpack.c.b16 %v1349, %v1348
  %v1808 = vpack.c.b16 %v1351, %v1350
  %v1809 = vpack.c.b16 %v1353, %v1352
  %v1810 = vpack.c.b16 %v1355, %v1354
  %v1811 = vpack.c.b16 %v1357, %v1356
  %v1812 = vpack.c.b16 %v1359, %v1358
  %v1813 = vpack.c.b16 %v1361, %v1360
  %v1814 = vpack.c.b16 %v1363, %v1362
  %v1815 = vpack.c.b16 %v1365, %v1364
  %v1816 = vpack.c.b16 %v1367, %v1366
  %v1817 = vpack.c.b16 %v1369, %v1368
  %v1818 = vpack.c.b16 %v1371, %v1370
  %v1819 = vpack.c.b16 %v1373, %v1372
  %v1820 = vpack.c.b16 %v1375, %v1374
  %v1821 = vpack.c.b16 %v1377, %v1376
  %v1822 = vpack.c.b16 %v1379, %v1378
  %v1823 = vpack.c.b16 %v1381, %v1380
  %v1824 = vpack.c.b16 %v1383, %v1382
  %v1825 = vpack.c.b16 %v1385, %v1384
  %v1826 = vpack.c.b16 %v1387, %v1386
  %v1827 = vpack.c.b16 %v1389, %v1388
  %v1828 = vpack.c.b16 %v1391, %v1390
  %v1829 = vpack.c.b16 %v1393, %v1392
  %v1830 = vpack.c.b16 %v1395, %v1394
  %v1831 = vpack.c.b16 %v1397, %v1396
  %v1832 = vpack.c.b16 %v1399, %v1398
  %v1833 = vpack.c.b16 %v1401, %v1400
  %v1834 = vpack.c.b16 %v1403, %v1402
  %v1835 = vpack.c.b16 %v1405, %v1404
  %v1836 = vpack.c.b16 %v1407, %v1406
  %v1837 = vpack.c.b16 %v1409, %v1408
  %v1838 = vpack.c.b16 %v1411, %v1410
  %v1839 = vpack.c.b16 %v1413, %v1412
  %v1840 = vpack.c.b16 %v1415, %v1414
  %v1841 = vpack.c.b16 %v1417, %v1416
  %v1842 = vpack.c.b16 %v1419, %v1418
  %v1843 = vpack.c.b16 %v1421, %v1420
  %v1844 = vpack.c.b16 %v1423, %v1422
  %v1845 = vpack.c.b16 %v1425, %v1424
  %v1846 = vpack.c.b16 %v1427, %v1426
  %v1847 = vpack.c.b16 %v1429, %v1428
  %v1848 = vpack.c.b16 %v1431, %v1430
  %v1849 = vpack.c.b16 %v1433, %v1432
  %v1850 = vpack.c.b16 %v1435, %v1434
  %v1851 = vpack.c.b16 %v1437, %v1436
  %v1852 = vpack.c.b16 %v1439, %v1438
  %v1853 = vpack.c.b16 %v1441, %v1440
  %v1854 = vpack.c.b16 %v1443, %v1442
  %v1855 = vpack.c.b16 %v1445, %v1444
  %v1856 = vpack.c.b16 %v1447, %v1446
  %v1857 = vpack.c.b16 %v1449, %v1448
  %v1858 = vpack.c.b16 %v1451, %v1450
  %v1859 = vpack.c.b16 %v1453, %v1452
  %v1860 = vpack.c.b16 %v1455, %v1454
  %v1861 = vpack.c.b16 %v1457, %v1456
  %v1862 = vpack.c.b16 %v1459, %v1458
  %v1863 = vpack.c.b16 %v1461, %v1460
  %v1864 = vpack.c.b16 %v1463, %v1462
  %v1865 = vpack.c.b16 %v1465, %v1464
  %v1866 = vpack.c.b16 %v1467, %v1466
  %v1867 = vpack.c.b16 %v1469, %v1468
  %v1868 = vpack.c.b16 %v1471, %v1470
  %v1869 = vpack.c.b16 %v1473, %v1472
  %v1870 = vpack.c.b16 %v1475, %v1474
  %v1871 = vpack.c.b16 %v1477, %v1476
  %v1872 = vpack.c.b16 %v1479, %v1478
  %v1873 = vpack.c.b16 %v1481, %v1480
  %v1874 = vpack.c.b16 %v1483, %v1482
  %v1875 = vpack.c.b16 %v1485, %v1484
  %v1876 = vpack.c.b16 %v1487, %v1486
  %v1877 = vpack.c.b16 %v1489, %v1488
  %v1878 = vpack.c.b16 %v1491, %v1490
  %v1879 = vpack.c.b16 %v1493, %v1492
  %v1880 = vpack.c.b16 %v1495, %v1494
  %v1881 = vpack.c.b16 %v1497, %v1496
  %v1882 = vpack.c.b16 %v1499, %v1498
  %v1883 = vpack.c.b16 %v1501, %v1500
  %v1884 = vpack.c.b16 %v1503, %v1502
  %v1885 = vpack.c.b16 %v1505, %v1504
  %v1886 = vpack.c.b16 %v1507, %v1506
  %v1887 = vpack.c.b16 %v1509, %v1508
  %v1888 = vpack.c.b16 %v1511, %v1510
  %v1889 = vpack.c.b16 %v1513, %v1512
  %v1890 = vpack.c.b16 %v1515, %v1514
  %v1891 = vpack.c.b16 %v1517, %v1516
  %v1892 = vpack.c.b16 %v1519, %v1518
  %v1893 = vpack.c.b16 %v1521, %v1520
  %v1894 = vpack.c.b16 %v1523, %v1522
  %v1895 = vpack.c.b16 %v1525, %v1524
  %v1896 = vpack.c.b16 %v1527, %v1526
  %v1897 = vpack.c.b16 %v1529, %v1528
  %v1898 = vpack.c.b16 %v1531, %v1530
  %v1899 = vpack.c.b16 %v1533, %v1532
  %v1900 = vpack.c.b16 %v1535, %v1534
  %v1901 = vpack.c.b16 %v1537, %v1536
  %v1902 = vpack.c.b16 %v1539, %v1538
  %v1903 = vpack.c.b16 %v1541, %v1540
  %v1904 = vpack.c.b16 %v1543, %v1542
  %v1905 = vpack.c.b16 %v1545, %v1544
  %v1906 = vpack.c.b16 %v1547, %v1546
  %v1907 = vpack.c.b16 %v1549, %v1548
  %v1908 = vpack.c.b16 %v1551, %v1550
  %v1909 = vpack.c.b16 %v1553, %v1552
  %v1910 = vpack.c.b16 %v1555, %v1554
  %v1911 = vpack.c.b16 %v1557, %v1556
  %v1912 = vpack.c.b16 %v1559, %v1558
  %v1913 = vpack.c.b16 %v1561, %v1560
  %v1914 = vpack.c.b16 %v1563, %v1562
  %v1915 = vpack.c.b16 %v1565, %v1564
  %v1916 = vpack.c.b16 %v1567, %v1566
  %v1917 = vpack.c.b16 %v1569, %v1568
  %v1918 = vpack.c.b16 %v1571, %v1570
  %v1919 = vpack.c.b16 %v1573, %v1572
  %v1920 = vpack.c.b16 %v1575, %v1574
  %v1921 = vpack.c.b16 %v1577, %v1576
  %v1922 = vpack.c.b16 %v1579, %v1578
  %v1923 = vpack.c.b16 %v1581, %v1580
  %v1924 = vpack.c.b16 %v1583, %v1582
  %v1925 = vpack.c.b16 %v1585, %v1584
  %v1926 = vpack.c.b16 %v1587, %v1586
  %v1927 = vpack.c.b16 %v1589, %v1588
  %v1928 = vpack.c.b16 %v1591, %v1590
  %v1929 = vpack.c.b16 %v1593, %v1592
  %v1930 = vpack.c.b16 %v1595, %v1594
  %v1931 = vpack.c.b16 %v1597, %v1596
  %v1932 = vpack.c.b16 %v1599, %v1598
  %v1933 = vpack.c.b16 %v1601, %v1600
  %v1934 = vpack.c.b16 %v1603, %v1602
  %v1935 = vpack.c.b16 %v1605, %v1604
  %v1936 = vpack.c.b16 %v1607, %v1606
  %v1937 = vpack.c.b16 %v1609, %v1608
  %v1938 = vpack.c.b16 %v1611, %v1610
  %v1939 = vpack.c.b16 %v1613, %v1612
  %v1940 = vpack.c.b16 %v1615, %v1614
  %v1941 = vpack.c.b16 %v1617, %v1616
  %v1942 = vpack.c.b16 %v1619, %v1618
  %v1943 = vpack.c.b16 %v1621, %v1620
  %v1944 = vpack.c.b16 %v1623, %v1622
  %v1945 = vpack.c.b16 %v1625, %v1624
  %v1946 = vpack.c.b16 %v1627, %v1626
  %v1947 = vpack.c.b16 %v1629, %v1628
  %v1948 = vpack.c.b16 %v1631, %v1630
  %v1949 = vpack.c.b16 %v1633, %v1632
  %v1950 = vpack.c.b16 %v1635, %v1634
  %v1951 = vpack.c.b16 %v1637, %v1636
  %v1952 = vpack.c.b16 %v1639, %v1638
  %v1953 = vpack.c.b16 %v1641, %v1640
  %v1954 = vpack.c.b16 %v1643, %v1642
  %v1955 = vpack.c.b16 %v1645, %v1644
  %v1956 = vpack.c.b16 %v1647, %v1646
  %v1957 = vpack.c.b16 %v1649, %v1648
  %v1958 = vpack.c.b16 %v1651, %v1650
  %v1959 = vpack.c.b16 %v1653, %v1652
  %v1960 = vpack.c.b16 %v1655, %v1654
  %v1961 = vpack.c.b16 %v1657, %v1656
  %v1962 = vpack.c.b16 %v1659, %v1658
  %v1963 = vpack.c.b16 %v1661, %v1660
  %v1964 = vpack.c.b16 %v1663, %v1662
  %v1965 = vpack.c.b16 %v1665, %v1664
  %v1966 = vpack.c.b16 %v1667, %v1666
  %v1967 = vpack.c.b16 %v1669, %v1668
  %v1968 = vpack.c.b16 %v1671, %v1670
  %v1969 = vpack.c.b16 %v1673, %v1672
  %v1970 = vpack.c.b16 %v1675, %v1674
  %v1971 = vpack.c.b16 %v1677, %v1676
  %v1972 = vpack.c.b16 %v1679, %v1678
  %v1973 = vpack.c.b16 %v1681, %v1680
  %v1974 = vpack.c.b16 %v1683, %v1682
  %v1975 = vpack.c.b16 %v1685, %v1684
  %v1976 = vpack.c.b16 %v1687, %v1686
  %v1977 = vpack.c.b16 %v1689, %v1688
  %v1978 = vpack.c.b16 %v1691, %v1690
  %v1979 = vpack.c.b16 %v1693, %v1692
  %v1980 = vpack.c.b16 %v1695, %v1694
  %v1981 = vpack.c.b16 %v1697, %v1696
  %v1982 = vpack.c.b16 %v1699, %v1698
  %v1983 = vpack.c.b16 %v1701, %v1700
  %v1984 = vpack.c.b16 %v1703, %v1702
  %v1985 = vpack.c.b16 %v1705, %v1704
  %v1986 = vpack.c.b16 %v1707, %v1706
  %v1987 = vpack.c.b16 %v1709, %v1708
  %v1988 = vpack.c.b16 %v1711, %v1710
  %v1989 = vpack.c.b16 %v1713, %v1712
  %v1990 = vpack.c.b16 %v1715, %v1714
  %v1991 = vpack.c.b16 %v1717, %v1716
  %v1992 = vpack.c.b16 %v1719, %v1718
  %v1993 = vpack.c.b16 %v1721, %v1720
  %v1994 = vpack.c.b16 %v1723, %v1722
  %v1995 = vpack.c.b16 %v1725, %v1724
  %v1996 = vpack.c.b16 %v1727, %v1726
  %v1997 = vpack.c.b16 %v1729, %v1728
  %v1998 = vpack.c.b16 %v1731, %v1730
  %v1999 = vpack.c.b16 %v1733, %v1732
  %v2000 = vpack.c.b16 %v1735, %v1734
  %v2001 = vpack.c.b16 %v1737, %v1736
  %v2002 = vpack.c.b16 %v1739, %v1738
  %v2003 = vpack.c.b16 %v1741, %v1740
  %v2004 = vpack.c.b16 %v1743, %v1742
  %v2005 = vpack.c.b16 %v1745, %v1744
  %v2006 = vpack.c.b16 %v1747, %v1746
  %v2007 = vpack.c.b16 %v1749, %v1748
  %v2008 = vpack.c.b16 %v1751, %v1750
  %v2009 = vpack.c.b16 %v1753, %v1752
  %2266 = vmatpush.bf16.msra.mxu0 %v1761
  %2267 = vmatpush.bf16.msra.mxu0 %v1760
  %2268 = vmatpush.bf16.msra.mxu0 %v1759
  %2269 = vmatpush.bf16.msra.mxu0 %v1758
  %2270 = vmatpush.bf16.msra.mxu0 %v1757
  %2271 = vmatpush.bf16.msra.mxu0 %v1756
  %2272 = vmatpush.bf16.msra.mxu0 %v1755
  %2273 = vmatpush.bf16.msra.mxu0 %v1754
  %2274 = vmatmul.bf16.gmra.mxu0 %v666
  %v2275 = vpop.f32.mrf.mxu0
  %v2276 = vadd.f32 %v563, %v2275
  %v2277 = vpop.f32.mrf.mxu0
  %v2278 = vadd.f32 %v568, %v2277
  %2279 = vdwg.mxu0
  %2280 = vmatpush.bf16.msra.mxu0 %v1769
  %2281 = vmatpush.bf16.msra.mxu0 %v1768
  %2282 = vmatpush.bf16.msra.mxu0 %v1767
  %2283 = vmatpush.bf16.msra.mxu0 %v1766
  %2284 = vmatpush.bf16.msra.mxu0 %v1765
  %2285 = vmatpush.bf16.msra.mxu0 %v1764
  %2286 = vmatpush.bf16.msra.mxu0 %v1763
  %2287 = vmatpush.bf16.msra.mxu0 %v1762
  %2288 = vmatmul.bf16.gmra.mxu0 %v667
  %v2289 = vpop.f32.mrf.mxu0
  %v2290 = vadd.f32 %v2276, %v2289
  %v2291 = vpop.f32.mrf.mxu0
  %v2292 = vadd.f32 %v2278, %v2291
  %2293 = vdwg.mxu0
  %2294 = vmatpush.bf16.msra.mxu0 %v1777
  %2295 = vmatpush.bf16.msra.mxu0 %v1776
  %2296 = vmatpush.bf16.msra.mxu0 %v1775
  %2297 = vmatpush.bf16.msra.mxu0 %v1774
  %2298 = vmatpush.bf16.msra.mxu0 %v1773
  %2299 = vmatpush.bf16.msra.mxu0 %v1772
  %2300 = vmatpush.bf16.msra.mxu0 %v1771
  %2301 = vmatpush.bf16.msra.mxu0 %v1770
  %2302 = vmatmul.bf16.gmra.mxu0 %v668
  %v2303 = vpop.f32.mrf.mxu0
  %v2304 = vadd.f32 %v2290, %v2303
  %v2305 = vpop.f32.mrf.mxu0
  %v2306 = vadd.f32 %v2292, %v2305
  %2307 = vdwg.mxu0
  %2308 = vmatpush.bf16.msra.mxu0 %v1785
  %2309 = vmatpush.bf16.msra.mxu0 %v1784
  %2310 = vmatpush.bf16.msra.mxu0 %v1783
  %2311 = vmatpush.bf16.msra.mxu0 %v1782
  %2312 = vmatpush.bf16.msra.mxu0 %v1781
  %2313 = vmatpush.bf16.msra.mxu0 %v1780
  %2314 = vmatpush.bf16.msra.mxu0 %v1779
  %2315 = vmatpush.bf16.msra.mxu0 %v1778
  %2316 = vmatmul.bf16.gmra.mxu0 %v669
  %v2317 = vpop.f32.mrf.mxu0
  %v2318 = vadd.f32 %v2304, %v2317
  %v2319 = vpop.f32.mrf.mxu0
  %v2320 = vadd.f32 %v2306, %v2319
  %2321 = vdwg.mxu0
  %2322 = vmatpush.bf16.msra.mxu0 %v1793
  %2323 = vmatpush.bf16.msra.mxu0 %v1792
  %2324 = vmatpush.bf16.msra.mxu0 %v1791
  %2325 = vmatpush.bf16.msra.mxu0 %v1790
  %2326 = vmatpush.bf16.msra.mxu0 %v1789
  %2327 = vmatpush.bf16.msra.mxu0 %v1788
  %2328 = vmatpush.bf16.msra.mxu0 %v1787
  %2329 = vmatpush.bf16.msra.mxu0 %v1786
  %2330 = vmatmul.bf16.gmra.mxu0 %v670
  %v2331 = vpop.f32.mrf.mxu0
  %v2332 = vadd.f32 %v2318, %v2331
  %v2333 = vpop.f32.mrf.mxu0
  %v2334 = vadd.f32 %v2320, %v2333
  %2335 = vdwg.mxu0
  %2336 = vmatpush.bf16.msra.mxu0 %v1801
  %2337 = vmatpush.bf16.msra.mxu0 %v1800
  %2338 = vmatpush.bf16.msra.mxu0 %v1799
  %2339 = vmatpush.bf16.msra.mxu0 %v1798
  %2340 = vmatpush.bf16.msra.mxu0 %v1797
  %2341 = vmatpush.bf16.msra.mxu0 %v1796
  %2342 = vmatpush.bf16.msra.mxu0 %v1795
  %2343 = vmatpush.bf16.msra.mxu0 %v1794
  %2344 = vmatmul.bf16.gmra.mxu0 %v671
  %v2345 = vpop.f32.mrf.mxu0
  %v2346 = vadd.f32 %v2332, %v2345
  %v2347 = vpop.f32.mrf.mxu0
  %v2348 = vadd.f32 %v2334, %v2347
  %2349 = vdwg.mxu0
  %2350 = vmatpush.bf16.msra.mxu0 %v1809
  %2351 = vmatpush.bf16.msra.mxu0 %v1808
  %2352 = vmatpush.bf16.msra.mxu0 %v1807
  %2353 = vmatpush.bf16.msra.mxu0 %v1806
  %2354 = vmatpush.bf16.msra.mxu0 %v1805
  %2355 = vmatpush.bf16.msra.mxu0 %v1804
  %2356 = vmatpush.bf16.msra.mxu0 %v1803
  %2357 = vmatpush.bf16.msra.mxu0 %v1802
  %2358 = vmatmul.bf16.gmra.mxu0 %v672
  %v2359 = vpop.f32.mrf.mxu0
  %v2360 = vadd.f32 %v2346, %v2359
  %v2361 = vpop.f32.mrf.mxu0
  %v2362 = vadd.f32 %v2348, %v2361
  %2363 = vdwg.mxu0
  %2364 = vmatpush.bf16.msra.mxu0 %v1817
  %2365 = vmatpush.bf16.msra.mxu0 %v1816
  %2366 = vmatpush.bf16.msra.mxu0 %v1815
  %2367 = vmatpush.bf16.msra.mxu0 %v1814
  %2368 = vmatpush.bf16.msra.mxu0 %v1813
  %2369 = vmatpush.bf16.msra.mxu0 %v1812
  %2370 = vmatpush.bf16.msra.mxu0 %v1811
  %2371 = vmatpush.bf16.msra.mxu0 %v1810
  %2372 = vmatmul.bf16.gmra.mxu0 %v673
  %v2373 = vpop.f32.mrf.mxu0
  %v2374 = vadd.f32 %v2360, %v2373
  %v2375 = vpop.f32.mrf.mxu0
  %v2376 = vadd.f32 %v2362, %v2375
  %2377 = vdwg.mxu0
  %2378 = vmatpush.bf16.msra.mxu0 %v1825
  %2379 = vmatpush.bf16.msra.mxu0 %v1824
  %2380 = vmatpush.bf16.msra.mxu0 %v1823
  %2381 = vmatpush.bf16.msra.mxu0 %v1822
  %2382 = vmatpush.bf16.msra.mxu0 %v1821
  %2383 = vmatpush.bf16.msra.mxu0 %v1820
  %2384 = vmatpush.bf16.msra.mxu0 %v1819
  %2385 = vmatpush.bf16.msra.mxu0 %v1818
  %2386 = vmatmul.bf16.gmra.mxu0 %v674
  %v2387 = vpop.f32.mrf.mxu0
  %v2388 = vadd.f32 %v2374, %v2387
  %v2389 = vpop.f32.mrf.mxu0
  %v2390 = vadd.f32 %v2376, %v2389
  %2391 = vdwg.mxu0
  %2392 = vmatpush.bf16.msra.mxu0 %v1833
  %2393 = vmatpush.bf16.msra.mxu0 %v1832
  %2394 = vmatpush.bf16.msra.mxu0 %v1831
  %2395 = vmatpush.bf16.msra.mxu0 %v1830
  %2396 = vmatpush.bf16.msra.mxu0 %v1829
  %2397 = vmatpush.bf16.msra.mxu0 %v1828
  %2398 = vmatpush.bf16.msra.mxu0 %v1827
  %2399 = vmatpush.bf16.msra.mxu0 %v1826
  %2400 = vmatmul.bf16.gmra.mxu0 %v675
  %v2401 = vpop.f32.mrf.mxu0
  %v2402 = vadd.f32 %v2388, %v2401
  %v2403 = vpop.f32.mrf.mxu0
  %v2404 = vadd.f32 %v2390, %v2403
  %2405 = vdwg.mxu0
  %2406 = vmatpush.bf16.msra.mxu0 %v1841
  %2407 = vmatpush.bf16.msra.mxu0 %v1840
  %2408 = vmatpush.bf16.msra.mxu0 %v1839
  %2409 = vmatpush.bf16.msra.mxu0 %v1838
  %2410 = vmatpush.bf16.msra.mxu0 %v1837
  %2411 = vmatpush.bf16.msra.mxu0 %v1836
  %2412 = vmatpush.bf16.msra.mxu0 %v1835
  %2413 = vmatpush.bf16.msra.mxu0 %v1834
  %2414 = vmatmul.bf16.gmra.mxu0 %v676
  %v2415 = vpop.f32.mrf.mxu0
  %v2416 = vadd.f32 %v2402, %v2415
  %v2417 = vpop.f32.mrf.mxu0
  %v2418 = vadd.f32 %v2404, %v2417
  %2419 = vdwg.mxu0
  %2420 = vmatpush.bf16.msra.mxu0 %v1849
  %2421 = vmatpush.bf16.msra.mxu0 %v1848
  %2422 = vmatpush.bf16.msra.mxu0 %v1847
  %2423 = vmatpush.bf16.msra.mxu0 %v1846
  %2424 = vmatpush.bf16.msra.mxu0 %v1845
  %2425 = vmatpush.bf16.msra.mxu0 %v1844
  %2426 = vmatpush.bf16.msra.mxu0 %v1843
  %2427 = vmatpush.bf16.msra.mxu0 %v1842
  %2428 = vmatmul.bf16.gmra.mxu0 %v677
  %v2429 = vpop.f32.mrf.mxu0
  %v2430 = vadd.f32 %v2416, %v2429
  %v2431 = vpop.f32.mrf.mxu0
  %v2432 = vadd.f32 %v2418, %v2431
  %2433 = vdwg.mxu0
  %2434 = vmatpush.bf16.msra.mxu0 %v1857
  %2435 = vmatpush.bf16.msra.mxu0 %v1856
  %2436 = vmatpush.bf16.msra.mxu0 %v1855
  %2437 = vmatpush.bf16.msra.mxu0 %v1854
  %2438 = vmatpush.bf16.msra.mxu0 %v1853
  %2439 = vmatpush.bf16.msra.mxu0 %v1852
  %2440 = vmatpush.bf16.msra.mxu0 %v1851
  %2441 = vmatpush.bf16.msra.mxu0 %v1850
  %2442 = vmatmul.bf16.gmra.mxu0 %v678
  %v2443 = vpop.f32.mrf.mxu0
  %v2444 = vadd.f32 %v2430, %v2443
  %v2445 = vpop.f32.mrf.mxu0
  %v2446 = vadd.f32 %v2432, %v2445
  %2447 = vdwg.mxu0
  %2448 = vmatpush.bf16.msra.mxu0 %v1865
  %2449 = vmatpush.bf16.msra.mxu0 %v1864
  %2450 = vmatpush.bf16.msra.mxu0 %v1863
  %2451 = vmatpush.bf16.msra.mxu0 %v1862
  %2452 = vmatpush.bf16.msra.mxu0 %v1861
  %2453 = vmatpush.bf16.msra.mxu0 %v1860
  %2454 = vmatpush.bf16.msra.mxu0 %v1859
  %2455 = vmatpush.bf16.msra.mxu0 %v1858
  %2456 = vmatmul.bf16.gmra.mxu0 %v679
  %v2457 = vpop.f32.mrf.mxu0
  %v2458 = vadd.f32 %v2444, %v2457
  %v2459 = vpop.f32.mrf.mxu0
  %v2460 = vadd.f32 %v2446, %v2459
  %2461 = vdwg.mxu0
  %2462 = vmatpush.bf16.msra.mxu0 %v1873
  %2463 = vmatpush.bf16.msra.mxu0 %v1872
  %2464 = vmatpush.bf16.msra.mxu0 %v1871
  %2465 = vmatpush.bf16.msra.mxu0 %v1870
  %2466 = vmatpush.bf16.msra.mxu0 %v1869
  %2467 = vmatpush.bf16.msra.mxu0 %v1868
  %2468 = vmatpush.bf16.msra.mxu0 %v1867
  %2469 = vmatpush.bf16.msra.mxu0 %v1866
  %2470 = vmatmul.bf16.gmra.mxu0 %v680
  %v2471 = vpop.f32.mrf.mxu0
  %v2472 = vadd.f32 %v2458, %v2471
  %v2473 = vpop.f32.mrf.mxu0
  %v2474 = vadd.f32 %v2460, %v2473
  %2475 = vdwg.mxu0
  %2476 = vmatpush.bf16.msra.mxu0 %v1881
  %2477 = vmatpush.bf16.msra.mxu0 %v1880
  %2478 = vmatpush.bf16.msra.mxu0 %v1879
  %2479 = vmatpush.bf16.msra.mxu0 %v1878
  %2480 = vmatpush.bf16.msra.mxu0 %v1877
  %2481 = vmatpush.bf16.msra.mxu0 %v1876
  %2482 = vmatpush.bf16.msra.mxu0 %v1875
  %2483 = vmatpush.bf16.msra.mxu0 %v1874
  %2484 = vmatmul.bf16.gmra.mxu0 %v681
  %v2485 = vpop.f32.mrf.mxu0
  %v2486 = vadd.f32 %v2472, %v2485
  %v2487 = vpop.f32.mrf.mxu0
  %v2488 = vadd.f32 %v2474, %v2487
  %2489 = vdwg.mxu0
  %2490 = vmatpush.bf16.msra.mxu0 %v1889
  %2491 = vmatpush.bf16.msra.mxu0 %v1888
  %2492 = vmatpush.bf16.msra.mxu0 %v1887
  %2493 = vmatpush.bf16.msra.mxu0 %v1886
  %2494 = vmatpush.bf16.msra.mxu0 %v1885
  %2495 = vmatpush.bf16.msra.mxu0 %v1884
  %2496 = vmatpush.bf16.msra.mxu0 %v1883
  %2497 = vmatpush.bf16.msra.mxu0 %v1882
  %2498 = vmatmul.bf16.gmra.mxu0 %v682
  %v2499 = vpop.f32.mrf.mxu0
  %v2500 = vadd.f32 %v2486, %v2499
  %v2501 = vpop.f32.mrf.mxu0
  %v2502 = vadd.f32 %v2488, %v2501
  %2503 = vdwg.mxu0
  %2504 = vmatpush.bf16.msra.mxu0 %v1897
  %2505 = vmatpush.bf16.msra.mxu0 %v1896
  %2506 = vmatpush.bf16.msra.mxu0 %v1895
  %2507 = vmatpush.bf16.msra.mxu0 %v1894
  %2508 = vmatpush.bf16.msra.mxu0 %v1893
  %2509 = vmatpush.bf16.msra.mxu0 %v1892
  %2510 = vmatpush.bf16.msra.mxu0 %v1891
  %2511 = vmatpush.bf16.msra.mxu0 %v1890
  %2512 = vmatmul.bf16.gmra.mxu0 %v683
  %v2513 = vpop.f32.mrf.mxu0
  %v2514 = vadd.f32 %v2500, %v2513
  %v2515 = vpop.f32.mrf.mxu0
  %v2516 = vadd.f32 %v2502, %v2515
  %2517 = vdwg.mxu0
  %2518 = vmatpush.bf16.msra.mxu0 %v1905
  %2519 = vmatpush.bf16.msra.mxu0 %v1904
  %2520 = vmatpush.bf16.msra.mxu0 %v1903
  %2521 = vmatpush.bf16.msra.mxu0 %v1902
  %2522 = vmatpush.bf16.msra.mxu0 %v1901
  %2523 = vmatpush.bf16.msra.mxu0 %v1900
  %2524 = vmatpush.bf16.msra.mxu0 %v1899
  %2525 = vmatpush.bf16.msra.mxu0 %v1898
  %2526 = vmatmul.bf16.gmra.mxu0 %v684
  %v2527 = vpop.f32.mrf.mxu0
  %v2528 = vadd.f32 %v2514, %v2527
  %v2529 = vpop.f32.mrf.mxu0
  %v2530 = vadd.f32 %v2516, %v2529
  %2531 = vdwg.mxu0
  %2532 = vmatpush.bf16.msra.mxu0 %v1913
  %2533 = vmatpush.bf16.msra.mxu0 %v1912
  %2534 = vmatpush.bf16.msra.mxu0 %v1911
  %2535 = vmatpush.bf16.msra.mxu0 %v1910
  %2536 = vmatpush.bf16.msra.mxu0 %v1909
  %2537 = vmatpush.bf16.msra.mxu0 %v1908
  %2538 = vmatpush.bf16.msra.mxu0 %v1907
  %2539 = vmatpush.bf16.msra.mxu0 %v1906
  %2540 = vmatmul.bf16.gmra.mxu0 %v685
  %v2541 = vpop.f32.mrf.mxu0
  %v2542 = vadd.f32 %v2528, %v2541
  %v2543 = vpop.f32.mrf.mxu0
  %v2544 = vadd.f32 %v2530, %v2543
  %2545 = vdwg.mxu0
  %2546 = vmatpush.bf16.msra.mxu0 %v1921
  %2547 = vmatpush.bf16.msra.mxu0 %v1920
  %2548 = vmatpush.bf16.msra.mxu0 %v1919
  %2549 = vmatpush.bf16.msra.mxu0 %v1918
  %2550 = vmatpush.bf16.msra.mxu0 %v1917
  %2551 = vmatpush.bf16.msra.mxu0 %v1916
  %2552 = vmatpush.bf16.msra.mxu0 %v1915
  %2553 = vmatpush.bf16.msra.mxu0 %v1914
  %2554 = vmatmul.bf16.gmra.mxu0 %v686
  %v2555 = vpop.f32.mrf.mxu0
  %v2556 = vadd.f32 %v2542, %v2555
  %v2557 = vpop.f32.mrf.mxu0
  %v2558 = vadd.f32 %v2544, %v2557
  %2559 = vdwg.mxu0
  %2560 = vmatpush.bf16.msra.mxu0 %v1929
  %2561 = vmatpush.bf16.msra.mxu0 %v1928
  %2562 = vmatpush.bf16.msra.mxu0 %v1927
  %2563 = vmatpush.bf16.msra.mxu0 %v1926
  %2564 = vmatpush.bf16.msra.mxu0 %v1925
  %2565 = vmatpush.bf16.msra.mxu0 %v1924
  %2566 = vmatpush.bf16.msra.mxu0 %v1923
  %2567 = vmatpush.bf16.msra.mxu0 %v1922
  %2568 = vmatmul.bf16.gmra.mxu0 %v687
  %v2569 = vpop.f32.mrf.mxu0
  %v2570 = vadd.f32 %v2556, %v2569
  %v2571 = vpop.f32.mrf.mxu0
  %v2572 = vadd.f32 %v2558, %v2571
  %2573 = vdwg.mxu0
  %2574 = vmatpush.bf16.msra.mxu0 %v1937
  %2575 = vmatpush.bf16.msra.mxu0 %v1936
  %2576 = vmatpush.bf16.msra.mxu0 %v1935
  %2577 = vmatpush.bf16.msra.mxu0 %v1934
  %2578 = vmatpush.bf16.msra.mxu0 %v1933
  %2579 = vmatpush.bf16.msra.mxu0 %v1932
  %2580 = vmatpush.bf16.msra.mxu0 %v1931
  %2581 = vmatpush.bf16.msra.mxu0 %v1930
  %2582 = vmatmul.bf16.gmra.mxu0 %v688
  %v2583 = vpop.f32.mrf.mxu0
  %v2584 = vadd.f32 %v2570, %v2583
  %v2585 = vpop.f32.mrf.mxu0
  %v2586 = vadd.f32 %v2572, %v2585
  %2587 = vdwg.mxu0
  %2588 = vmatpush.bf16.msra.mxu0 %v1945
  %2589 = vmatpush.bf16.msra.mxu0 %v1944
  %2590 = vmatpush.bf16.msra.mxu0 %v1943
  %2591 = vmatpush.bf16.msra.mxu0 %v1942
  %2592 = vmatpush.bf16.msra.mxu0 %v1941
  %2593 = vmatpush.bf16.msra.mxu0 %v1940
  %2594 = vmatpush.bf16.msra.mxu0 %v1939
  %2595 = vmatpush.bf16.msra.mxu0 %v1938
  %2596 = vmatmul.bf16.gmra.mxu0 %v689
  %v2597 = vpop.f32.mrf.mxu0
  %v2598 = vadd.f32 %v2584, %v2597
  %v2599 = vpop.f32.mrf.mxu0
  %v2600 = vadd.f32 %v2586, %v2599
  %2601 = vdwg.mxu0
  %2602 = vmatpush.bf16.msra.mxu0 %v1953
  %2603 = vmatpush.bf16.msra.mxu0 %v1952
  %2604 = vmatpush.bf16.msra.mxu0 %v1951
  %2605 = vmatpush.bf16.msra.mxu0 %v1950
  %2606 = vmatpush.bf16.msra.mxu0 %v1949
  %2607 = vmatpush.bf16.msra.mxu0 %v1948
  %2608 = vmatpush.bf16.msra.mxu0 %v1947
  %2609 = vmatpush.bf16.msra.mxu0 %v1946
  %2610 = vmatmul.bf16.gmra.mxu0 %v690
  %v2611 = vpop.f32.mrf.mxu0
  %v2612 = vadd.f32 %v2598, %v2611
  %v2613 = vpop.f32.mrf.mxu0
  %v2614 = vadd.f32 %v2600, %v2613
  %2615 = vdwg.mxu0
  %2616 = vmatpush.bf16.msra.mxu0 %v1961
  %2617 = vmatpush.bf16.msra.mxu0 %v1960
  %2618 = vmatpush.bf16.msra.mxu0 %v1959
  %2619 = vmatpush.bf16.msra.mxu0 %v1958
  %2620 = vmatpush.bf16.msra.mxu0 %v1957
  %2621 = vmatpush.bf16.msra.mxu0 %v1956
  %2622 = vmatpush.bf16.msra.mxu0 %v1955
  %2623 = vmatpush.bf16.msra.mxu0 %v1954
  %2624 = vmatmul.bf16.gmra.mxu0 %v691
  %v2625 = vpop.f32.mrf.mxu0
  %v2626 = vadd.f32 %v2612, %v2625
  %v2627 = vpop.f32.mrf.mxu0
  %v2628 = vadd.f32 %v2614, %v2627
  %2629 = vdwg.mxu0
  %2630 = vmatpush.bf16.msra.mxu0 %v1969
  %2631 = vmatpush.bf16.msra.mxu0 %v1968
  %2632 = vmatpush.bf16.msra.mxu0 %v1967
  %2633 = vmatpush.bf16.msra.mxu0 %v1966
  %2634 = vmatpush.bf16.msra.mxu0 %v1965
  %2635 = vmatpush.bf16.msra.mxu0 %v1964
  %2636 = vmatpush.bf16.msra.mxu0 %v1963
  %2637 = vmatpush.bf16.msra.mxu0 %v1962
  %2638 = vmatmul.bf16.gmra.mxu0 %v692
  %v2639 = vpop.f32.mrf.mxu0
  %v2640 = vadd.f32 %v2626, %v2639
  %v2641 = vpop.f32.mrf.mxu0
  %v2642 = vadd.f32 %v2628, %v2641
  %2643 = vdwg.mxu0
  %2644 = vmatpush.bf16.msra.mxu0 %v1977
  %2645 = vmatpush.bf16.msra.mxu0 %v1976
  %2646 = vmatpush.bf16.msra.mxu0 %v1975
  %2647 = vmatpush.bf16.msra.mxu0 %v1974
  %2648 = vmatpush.bf16.msra.mxu0 %v1973
  %2649 = vmatpush.bf16.msra.mxu0 %v1972
  %2650 = vmatpush.bf16.msra.mxu0 %v1971
  %2651 = vmatpush.bf16.msra.mxu0 %v1970
  %2652 = vmatmul.bf16.gmra.mxu0 %v693
  %v2653 = vpop.f32.mrf.mxu0
  %v2654 = vadd.f32 %v2640, %v2653
  %v2655 = vpop.f32.mrf.mxu0
  %v2656 = vadd.f32 %v2642, %v2655
  %2657 = vdwg.mxu0
  %2658 = vmatpush.bf16.msra.mxu0 %v1985
  %2659 = vmatpush.bf16.msra.mxu0 %v1984
  %2660 = vmatpush.bf16.msra.mxu0 %v1983
  %2661 = vmatpush.bf16.msra.mxu0 %v1982
  %2662 = vmatpush.bf16.msra.mxu0 %v1981
  %2663 = vmatpush.bf16.msra.mxu0 %v1980
  %2664 = vmatpush.bf16.msra.mxu0 %v1979
  %2665 = vmatpush.bf16.msra.mxu0 %v1978
  %2666 = vmatmul.bf16.gmra.mxu0 %v694
  %v2667 = vpop.f32.mrf.mxu0
  %v2668 = vadd.f32 %v2654, %v2667
  %v2669 = vpop.f32.mrf.mxu0
  %v2670 = vadd.f32 %v2656, %v2669
  %2671 = vdwg.mxu0
  %2672 = vmatpush.bf16.msra.mxu0 %v1993
  %2673 = vmatpush.bf16.msra.mxu0 %v1992
  %2674 = vmatpush.bf16.msra.mxu0 %v1991
  %2675 = vmatpush.bf16.msra.mxu0 %v1990
  %2676 = vmatpush.bf16.msra.mxu0 %v1989
  %2677 = vmatpush.bf16.msra.mxu0 %v1988
  %2678 = vmatpush.bf16.msra.mxu0 %v1987
  %2679 = vmatpush.bf16.msra.mxu0 %v1986
  %2680 = vmatmul.bf16.gmra.mxu0 %v695
  %v2681 = vpop.f32.mrf.mxu0
  %v2682 = vadd.f32 %v2668, %v2681
  %v2683 = vpop.f32.mrf.mxu0
  %v2684 = vadd.f32 %v2670, %v2683
  %2685 = vdwg.mxu0
  %2686 = vmatpush.bf16.msra.mxu0 %v2001
  %2687 = vmatpush.bf16.msra.mxu0 %v2000
  %2688 = vmatpush.bf16.msra.mxu0 %v1999
  %2689 = vmatpush.bf16.msra.mxu0 %v1998
  %2690 = vmatpush.bf16.msra.mxu0 %v1997
  %2691 = vmatpush.bf16.msra.mxu0 %v1996
  %2692 = vmatpush.bf16.msra.mxu0 %v1995
  %2693 = vmatpush.bf16.msra.mxu0 %v1994
  %2694 = vmatmul.bf16.gmra.mxu0 %v696
  %v2695 = vpop.f32.mrf.mxu0
  %v2696 = vadd.f32 %v2682, %v2695
  %v2697 = vpop.f32.mrf.mxu0
  %v2698 = vadd.f32 %v2684, %v2697
  %2699 = vdwg.mxu0
  %2700 = vmatpush.bf16.msra.mxu0 %v2009
  %2701 = vmatpush.bf16.msra.mxu0 %v2008
  %2702 = vmatpush.bf16.msra.mxu0 %v2007
  %2703 = vmatpush.bf16.msra.mxu0 %v2006
  %2704 = vmatpush.bf16.msra.mxu0 %v2005
  %2705 = vmatpush.bf16.msra.mxu0 %v2004
  %2706 = vmatpush.bf16.msra.mxu0 %v2003
  %2707 = vmatpush.bf16.msra.mxu0 %v2002
  %2708 = vmatmul.bf16.gmra.mxu0 %v697
  %v2709 = vpop.f32.mrf.mxu0
  %v2710 = vadd.f32 %v2696, %v2709
  %v2711 = vpop.f32.mrf.mxu0
  %v2712 = vadd.f32 %v2698, %v2711
  %2713 = vdwg.mxu0
  %v2714 = vtanh.pop %v2710
  %v2715 = vtanh.pop %v2712
  %vm2716 = vcmask 64512
  %2717 = vst.msk [vmem:[%s3] sm:$0xff] %vm2716, %v2714
  %2718 = vst.msk [vmem:[%s3 + $0x8] sm:$0xff] %vm2716, %v2715
  // Predicated region
  $region14: #{model_tanh_forward.3} parent=0 // pred_check
    _
  $region15: #{model_tanh_forward.3} parent=0 // pred_check_branch
    %2720 = sbr.rel (0) target = $region17
  $region16: #{model_tanh_forward.3} parent=0 // pred_region
    _
  $region17: #{model_tanh_forward.3} parent=0 // pred_fallthru
    _
  // Predicated region
  $region18: #{model_tanh_forward.3} parent=0 // pred_check
    _
  $region19: #{model_tanh_forward.3} parent=0 // pred_check_branch
    %2722 = sbr.rel (0) target = $region21
  $region20: #{model_tanh_forward.3} parent=0 // pred_region
    _
  $region21: #{model_tanh_forward.3} parent=0 // pred_fallthru
    _

</llo_original>
